<compile_context>
chip_gen: v6e
topology: v6e:2x2x1
jax: 0.10.0
libtpu: 0.0.40
codegen_flags: <defaults>
</compile_context>

<pallas_src>
import functools

import jax
import jax.numpy as jnp
from jax import lax
from jax.experimental import pallas as pl
from jax.experimental.pallas import tpu as pltpu

LANE = 128            # feature (lane) padding width
TM_MAX = 256          # max row tile (amortizes per-grid-step overhead at scale)
USE_BF16_MXU = True   # cast matmul operands to bf16 (f32 accumulation on the MXU)


# ----------------------------------------------------------------------------- helpers
def _round_up(v, m):
    return ((v + m - 1) // m) * m


def _row_tiling(m):
    """Row tile (multiple of 8, capped at TM_MAX) and padded row count."""
    mp = _round_up(max(m, 1), 8)
    tm = min(TM_MAX, mp)
    return tm, _round_up(mp, tm)


def _pad2(x, rows, cols):
    x = x.astype(jnp.float32)
    return jnp.pad(x, ((0, rows - x.shape[0]), (0, cols - x.shape[1])))


def _pad_w(w):
    w = jnp.asarray(w, jnp.float32)
    return jnp.pad(w, ((0, _round_up(w.shape[0], LANE) - w.shape[0]),
                       (0, _round_up(w.shape[1], LANE) - w.shape[1])))


def _pad_b(b):
    b = jnp.asarray(b, jnp.float32).reshape(1, -1)
    return jnp.pad(b, ((0, 0), (0, _round_up(b.shape[1], LANE) - b.shape[1])))


def _mm(a, w, bf16):
    if bf16:
        a = a.astype(jnp.bfloat16)
        w = w.astype(jnp.bfloat16)
    return jnp.dot(a, w, preferred_element_type=jnp.float32)


# ----------------------------------------------------------------------------- kernels
def _fused_mlp_kernel(*refs, n_in, n_rest, acts, bf16):
    """h = act0(sum_i X_i @ W1_i + b1); then h = act_j(h @ W_j + b_j) per extra layer."""
    xs = refs[:n_in]
    w1s = refs[n_in:2 * n_in]
    b1 = refs[2 * n_in]
    rest = refs[2 * n_in + 1:2 * n_in + 1 + 2 * n_rest]
    o_ref = refs[-1]

    h = _mm(xs[0][...], w1s[0][...], bf16)
    for i in range(1, n_in):
        h = h + _mm(xs[i][...], w1s[i][...], bf16)
    h = h + b1[...]
    if acts[0] == "relu":
        h = jnp.maximum(h, 0.0)
    for j in range(n_rest):
        h = _mm(h, rest[2 * j][...], bf16) + rest[2 * j + 1][...]
        if acts[j + 1] == "relu":
            h = jnp.maximum(h, 0.0)
    o_ref[...] = h


def _subnet3_kernel(x_ref, w1_ref, b1_ref, w2_ref, b2_ref, w3_ref, b3_ref, o_ref, *, bf16):
    """SubNet for one modality block (BN folded into layer-1 Linear): 3x Linear+ReLU."""
    # TODO(synk): Dropout is identity in eval mode (no stochastic drop in kernel).
    h = jnp.maximum(_mm(x_ref[0], w1_ref[0], bf16) + b1_ref[0], 0.0)
    h = jnp.maximum(_mm(h, w2_ref[0], bf16) + b2_ref[0], 0.0)
    h = jnp.maximum(_mm(h, w3_ref[0], bf16) + b3_ref[0], 0.0)
    o_ref[0] = h


def _egsage_agg_kernel(tgt_ref, msg_ref, x_ref, waa_ref, wax_ref, b_ref, o_ref, *, bf16):
    """Mean-aggregate per-edge messages onto this node tile, apply the update
    Linear+ReLU and L2-normalize.  One-hot adjacency + degrees built in-kernel."""
    tm = x_ref.shape[0]
    ep = msg_ref.shape[0]
    base = pl.program_id(0) * tm
    node_ids = base + lax.broadcasted_iota(jnp.int32, (tm, ep), 0)
    onehot = (tgt_ref[...] == node_ids).astype(jnp.float32)       # padded tgt = -1 -> no match
    deg = jnp.sum(onehot, axis=-1, keepdims=True)
    inv_deg = jnp.where(deg > 0.0, 1.0 / jnp.maximum(deg, 1.0), 0.0)
    agg = _mm(onehot, msg_ref[...], bf16) * inv_deg               # scatter-mean (0 if isolated)
    out = _mm(agg, waa_ref[...], bf16) + _mm(x_ref[...], wax_ref[...], bf16) + b_ref[...]
    out = jnp.maximum(out, 0.0)
    nrm = jnp.sqrt(jnp.sum(out * out, axis=-1, keepdims=True))
    o_ref[...] = out / jnp.maximum(nrm, 1e-12)                    # F.normalize(p=2, dim=-1)


# ----------------------------------------------------------------------------- wrappers
def fused_mlp(xs, w1s, b1, rest=(), acts=("relu",)):
    """One pallas_call for an MLP whose first layer consumes several input slabs
    (equivalent to concat(xs, -1) @ W1).  All inputs are already lane-padded."""
    m = xs[0].shape[0]
    tm, mp = _row_tiling(m)
    if mp != m:
        xs = [jnp.pad(x, ((0, mp - m), (0, 0))) for x in xs]
    n_out = (rest[-1][0] if rest else w1s[0]).shape[1]

    in_specs, args = [], []
    for x in xs:
        in_specs.append(pl.BlockSpec((tm, x.shape[1]), lambda i: (i, 0)))
        args.append(x)
    for w in w1s:
        in_specs.append(pl.BlockSpec(w.shape, lambda i: (0, 0)))
        args.append(w)
    in_specs.append(pl.BlockSpec(b1.shape, lambda i: (0, 0)))
    args.append(b1)
    for w, b in rest:
        in_specs.append(pl.BlockSpec(w.shape, lambda i: (0, 0)))
        args.append(w)
        in_specs.append(pl.BlockSpec(b.shape, lambda i: (0, 0)))
        args.append(b)

    out = pl.pallas_call(
        functools.partial(_fused_mlp_kernel, n_in=len(xs), n_rest=len(rest),
                          acts=tuple(acts), bf16=USE_BF16_MXU),
        out_shape=jax.ShapeDtypeStruct((mp, n_out), jnp.float32),
        grid=(mp // tm,),
        in_specs=in_specs,
        out_specs=pl.BlockSpec((tm, n_out), lambda i: (i, 0)),
        compiler_params=pltpu.CompilerParams(dimension_semantics=("parallel",)),
    )(*args)
    return out[:m] if mp != m else out


def input_net_fwd(ip, audio_x, video_x, text_x):
    """All three modality SubNets in ONE batched pallas_call (grid = (modality, row-tile))."""
    n_row = audio_x.shape[0]
    tm, mp = _row_tiling(n_row)
    xs = jnp.stack([_pad2(audio_x, mp, LANE),
                    _pad2(video_x, mp, LANE),
                    _pad2(text_x, mp, LANE)])                      # (3, mp, 128)
    row_spec = pl.BlockSpec((1, tm, LANE), lambda m, i: (m, i, 0))
    w_spec = pl.BlockSpec((1, LANE, LANE), lambda m, i: (m, 0, 0))
    b_spec = pl.BlockSpec((1, 1, LANE), lambda m, i: (m, 0, 0))
    out = pl.pallas_call(
        functools.partial(_subnet3_kernel, bf16=USE_BF16_MXU),
        out_shape=jax.ShapeDtypeStruct((3, mp, LANE), jnp.float32),
        grid=(3, mp // tm),
        in_specs=[row_spec, w_spec, b_spec, w_spec, b_spec, w_spec, b_spec],
        out_specs=row_spec,
        compiler_params=pltpu.CompilerParams(dimension_semantics=("parallel", "parallel")),
    )(xs, ip["w1"], ip["b1"], ip["w2"], ip["b2"], ip["w3"], ip["b3"])
    # edge_attr = concat([audio, video, text], axis=0), padded rows removed
    return out[:, :n_row, :].reshape(3 * n_row, LANE)


def egsage_aggregate(tgt_row, msgs, x, wa_a, wa_x, b_agg):
    npad = x.shape[0]
    ep = msgs.shape[0]
    tm, mp = _row_tiling(npad)        # npad already padded -> mp == npad
    # TODO(synk): for very large edge counts, add an "arbitrary" E-tile reduction axis
    # (accumulate message-sums and degrees across edge tiles) instead of loading all
    # messages per node tile; block sizes here are far below VMEM limits on v5e-v7x.
    return pl.pallas_call(
        functools.partial(_egsage_agg_kernel, bf16=USE_BF16_MXU),
        out_shape=jax.ShapeDtypeStruct((mp, LANE), jnp.float32),
        grid=(mp // tm,),
        in_specs=[
            pl.BlockSpec((1, ep), lambda i: (0, 0)),       # edge targets (int32, pad = -1)
            pl.BlockSpec((ep, LANE), lambda i: (0, 0)),    # per-edge messages
            pl.BlockSpec((tm, LANE), lambda i: (i, 0)),    # node-feature tile
            pl.BlockSpec((LANE, LANE), lambda i: (0, 0)),  # W_agg (aggr part)
            pl.BlockSpec((LANE, LANE), lambda i: (0, 0)),  # W_agg (x part)
            pl.BlockSpec((1, LANE), lambda i: (0, 0)),     # b_agg
        ],
        out_specs=pl.BlockSpec((tm, LANE), lambda i: (i, 0)),
        compiler_params=pltpu.CompilerParams(dimension_semantics=("parallel",)),
    )(tgt_row, msgs, x, wa_a, wa_x, b_agg)


# ----------------------------------------------------------------------------- model pieces
def gnn_stack_fwd(gp, x, edge_attr, edge_index):
    """GNNStack forward: 2x (EGSAGE conv + edge-update MLP), then node_post_mlp.
    Node / edge rows are padded once here and stay padded throughout."""
    num_nodes = x.shape[0]
    _, npad = _row_tiling(num_nodes)
    x = _pad2(x, npad, LANE)

    e = edge_index.shape[1]
    _, epad = _row_tiling(e)
    src = jnp.pad(edge_index[0].astype(jnp.int32), (0, epad - e))                     # pad -> row 0 (unused)
    tgt = jnp.pad(edge_index[1].astype(jnp.int32), (0, epad - e), constant_values=-1)  # pad -> no node match
    tgt_row = tgt.reshape(1, epad)
    ea = _pad2(edge_attr, epad, LANE)

    for l, conv in enumerate(gp["convs"]):
        # message: relu([x_src | edge_attr] @ W_msg + b)  (one fused kernel over edge tiles)
        msgs = fused_mlp([x[src], ea], [conv["wm_x"], conv["wm_e"]], conv["b_msg"],
                         acts=("relu",))
        # scatter-mean + update Linear+ReLU + L2-normalize (one fused kernel over node tiles)
        x = egsage_aggregate(tgt_row, msgs, x, conv["wa_a"], conv["wa_x"], conv["b_agg"])
        # edge update: relu([x_i | x_j | edge_attr] @ W + b)
        em = gp["edge_mlp"][l]
        ea = fused_mlp([x[src], x[tgt], ea], [em["w_i"], em["w_j"], em["w_e"]], em["b"],
                       acts=("relu",))
    # node_post_mlp: Linear+ReLU (+Dropout eval) -> Linear, fused into one kernel
    pp = gp["post"]
    x = fused_mlp([x], [pp["w1"]], pp["b1"], rest=[(pp["w2"], pp["b2"])], acts=("relu", "none"))
    return x                                # (npad, 128); rows >= num_nodes / lanes >= node_dim are padding


def multmodality_forward(params, x, audio_x, video_x, text_x,
                         train_edge_index, edge_index, n_row, n_col,
                         edge_in_dim, node_dim, impute_out, predict_out):
    num_nodes = x.shape[0]
    edge_attr = input_net_fwd(params["input"], audio_x, video_x, text_x)   # (3*n_row, 128)
    node_emb = gnn_stack_fwd(params["gnn"], x, edge_attr, train_edge_index)

    ne = n_row * n_col
    ip = params["impute"]
    edge_emb = fused_mlp([node_emb[edge_index[0, :ne]], node_emb[edge_index[1, :ne]]],
                         [ip["w_i"], ip["w_j"]], ip["b1"],
                         rest=[(ip["w_out"], ip["b_out"])], acts=("relu", "none"))
    pr = params["predict"]
    pred = fused_mlp([node_emb[:num_nodes - n_col]], [pr["w"]], pr["b"], acts=("none",))

    # strip row / lane padding once, at the end
    return (edge_attr[:, :edge_in_dim],
            node_emb[:num_nodes, :node_dim],
            edge_emb[:, :impute_out],
            pred[:, :predict_out])


# ----------------------------------------------------------------------------- params
def _dense(key, din, dout):
    k1, k2 = jax.random.split(key)
    w = jax.random.normal(k1, (din, dout), jnp.float32) / jnp.sqrt(float(din))
    b = jax.random.normal(k2, (dout,), jnp.float32) * 0.01
    return w, b


def _subnet_params(key, din, dh):
    ks = jax.random.split(key, 3)
    w1, b1 = _dense(ks[0], din, dh)
    w2, b2 = _dense(ks[1], dh, dh)
    w3, b3 = _dense(ks[2], dh, dh)
    return dict(bn_gamma=jnp.ones((din,)), bn_beta=jnp.zeros((din,)),
                bn_mean=jnp.zeros((din,)), bn_var=jnp.ones((din,)),
                w1=w1, b1=b1, w2=w2, b2=b2, w3=w3, b3=b3)


def init_params(key, *, node_in, edge_in_dim, node_dim, edge_dim,
                audio_in, video_in, text_in, impute_hidden, impute_out, predict_out):
    keys = jax.random.split(key, 16)
    inp = dict(audio=_subnet_params(keys[0], audio_in, edge_in_dim),
               video=_subnet_params(keys[1], video_in, edge_in_dim),
               text=_subnet_params(keys[2], text_in, edge_in_dim))
    convs, edge_mlp = [], []
    nin, ein = node_in, edge_in_dim
    for l in range(2):
        kw = jax.random.split(keys[3 + l], 3)
        w_msg, b_msg = _dense(kw[0], nin + ein, node_dim)
        w_agg, b_agg = _dense(kw[1], nin + node_dim, node_dim)
        convs.append(dict(w_msg=w_msg, b_msg=b_msg, w_agg=w_agg, b_agg=b_agg))
        we, be = _dense(kw[2], node_dim + node_dim + ein, edge_dim)
        edge_mlp.append(dict(w=we, b=be))
        nin, ein = node_dim, edge_dim
    pw1, pb1 = _dense(keys[6], node_dim, node_dim)
    pw2, pb2 = _dense(keys[7], node_dim, node_dim)
    gnn = dict(convs=convs, edge_mlp=edge_mlp,
               post=dict(w1=pw1, b1=pb1, w2=pw2, b2=pb2))
    ihw, ihb = _dense(keys[8], 2 * node_dim, impute_hidden)
    iow, iob = _dense(keys[9], impute_hidden, impute_out)
    impute = dict(hidden=[dict(w=ihw, b=ihb)], out=dict(w=iow, b=iob))
    prw, prb = _dense(keys[10], node_dim, predict_out)
    predict = dict(hidden=[], out=dict(w=prw, b=prb))
    return dict(input=inp, gnn=gnn, impute=impute, predict=predict)


def prepare_params(p, *, node_in, edge_in_dim, node_dim, edge_dim):
    """One-time prep: fold eval-mode BatchNorm into the first SubNet Linear, split
    concat-Linear weights into per-input row blocks, zero-pad everything to 128 lanes,
    and stack the three modality SubNets so InputNet runs as a single batched kernel."""
    del edge_in_dim, edge_dim  # splits depend only on node dims
    eps = 1e-5
    subnets = []
    for mod in ("audio", "video", "text"):
        sp = p["input"][mod]
        scale = sp["bn_gamma"] / jnp.sqrt(sp["bn_var"] + eps)
        shift = sp["bn_beta"] - sp["bn_mean"] * scale
        subnets.append(dict(
            w1=_pad_w(sp["w1"] * scale[:, None]),
            b1=_pad_b(sp["b1"] + shift @ sp["w1"]),
            w2=_pad_w(sp["w2"]), b2=_pad_b(sp["b2"]),
            w3=_pad_w(sp["w3"]), b3=_pad_b(sp["b3"])))
    inp = {k: jnp.stack([s[k] for s in subnets]) for k in subnets[0]}

    convs, edge_mlps = [], []
    nin = node_in
    for l, cv in enumerate(p["gnn"]["convs"]):
        convs.append(dict(
            wm_x=_pad_w(cv["w_msg"][:nin]),             # concat([x_j, edge_attr]) split
            wm_e=_pad_w(cv["w_msg"][nin:]),
            b_msg=_pad_b(cv["b_msg"]),
            wa_a=_pad_w(cv["w_agg"][:node_dim]),        # concat([aggr, x]) split
            wa_x=_pad_w(cv["w_agg"][node_dim:]),
            b_agg=_pad_b(cv["b_agg"])))
        em = p["gnn"]["edge_mlp"][l]
        edge_mlps.append(dict(
            w_i=_pad_w(em["w"][:node_dim]),             # concat([x_i, x_j, edge_attr]) split
            w_j=_pad_w(em["w"][node_dim:2 * node_dim]),
            w_e=_pad_w(em["w"][2 * node_dim:]),
            b=_pad_b(em["b"])))
        nin = node_dim
    post = dict(w1=_pad_w(p["gnn"]["post"]["w1"]), b1=_pad_b(p["gnn"]["post"]["b1"]),
                w2=_pad_w(p["gnn"]["post"]["w2"]), b2=_pad_b(p["gnn"]["post"]["b2"]))
    gnn = dict(convs=convs, edge_mlp=edge_mlps, post=post)

    ih = p["impute"]["hidden"][0]
    impute = dict(w_i=_pad_w(ih["w"][:node_dim]), w_j=_pad_w(ih["w"][node_dim:]),
                  b1=_pad_b(ih["b"]),
                  w_out=_pad_w(p["impute"]["out"]["w"]), b_out=_pad_b(p["impute"]["out"]["b"]))
    predict = dict(w=_pad_w(p["predict"]["out"]["w"]), b=_pad_b(p["predict"]["out"]["b"]))
    return dict(input=inp, gnn=gnn, impute=impute, predict=predict)


# ----------------------------------------------------------------------------- main
if __name__ == "__main__":
    key = jax.random.PRNGKey(0)

    n_row, n_col = 8, 3                      # samples, modalities
    node_in, edge_in_dim, node_dim, edge_dim = 4, 16, 16, 16
    audio_in, video_in, text_in = 10, 12, 20
    impute_hidden, impute_out, predict_out = 16, 1, 1
    num_nodes = n_row + n_col

    kp, kx, ka, kv, kt = jax.random.split(key, 5)
    raw_params = init_params(kp, node_in=node_in, edge_in_dim=edge_in_dim,
                             node_dim=node_dim, edge_dim=edge_dim,
                             audio_in=audio_in, video_in=video_in, text_in=text_in,
                             impute_hidden=impute_hidden, impute_out=impute_out,
                             predict_out=predict_out)
    params = prepare_params(raw_params, node_in=node_in, edge_in_dim=edge_in_dim,
                            node_dim=node_dim, edge_dim=edge_dim)

    x = jax.random.normal(kx, (num_nodes, node_in), jnp.float32)
    audio_x = jax.random.normal(ka, (n_row, audio_in), jnp.float32)
    video_x = jax.random.normal(kv, (n_row, video_in), jnp.float32)
    text_x = jax.random.normal(kt, (n_row, text_in), jnp.float32)

    # bipartite edges: edge e = m*n_row + r connects row node r -> modality node n_row+m
    rows = jnp.tile(jnp.arange(n_row, dtype=jnp.int32), (n_col,))
    mods = n_row + jnp.repeat(jnp.arange(n_col, dtype=jnp.int32), n_row)
    train_edge_index = jnp.stack([rows, mods])     # [2, n_row*n_col]
    edge_index = train_edge_index

    fwd = jax.jit(functools.partial(multmodality_forward,
                                    n_row=n_row, n_col=n_col,
                                    edge_in_dim=edge_in_dim, node_dim=node_dim,
                                    impute_out=impute_out, predict_out=predict_out))
    edge_attr, node_emb, edge_emb, pred = fwd(params, x, audio_x, video_x, text_x,
                                              train_edge_index, edge_index)
    jax.block_until_ready((edge_attr, node_emb, edge_emb, pred))

    assert edge_attr.shape == (n_row * n_col, edge_in_dim)
    assert node_emb.shape == (num_nodes, node_dim)
    assert edge_emb.shape == (n_row * n_col, impute_out)
    assert pred.shape == (n_row, predict_out)
    assert all(bool(jnp.all(jnp.isfinite(t))) for t in (edge_attr, node_emb, edge_emb, pred))
    print("KERNEL_OK")
</pallas_src>

<mosaic_0001>
module attributes {stable_mosaic.version = 11 : i64} {
  func.func @_subnet3_kernel(%arg0: i32, %arg1: i32, %arg2: memref<1x8x128xf32, #tpu.memory_space<vmem>>, %arg3: memref<1x128x128xf32, #tpu.memory_space<vmem>>, %arg4: memref<1x1x128xf32, #tpu.memory_space<vmem>>, %arg5: memref<1x128x128xf32, #tpu.memory_space<vmem>>, %arg6: memref<1x1x128xf32, #tpu.memory_space<vmem>>, %arg7: memref<1x128x128xf32, #tpu.memory_space<vmem>>, %arg8: memref<1x1x128xf32, #tpu.memory_space<vmem>>, %arg9: memref<1x8x128xf32, #tpu.memory_space<vmem>>) attributes {dimension_semantics = [#tpu.dimension_semantics<parallel>, #tpu.dimension_semantics<parallel>], iteration_bounds = array<i64: 3, 1>, scalar_prefetch = 0 : i64, scratch_operands = 0 : i64, tpu.core_type = #tpu.core_type<tc>, window_params = [{transform_indices = @transform_0, window_bounds = array<i64: 1, 8, 128>}, {transform_indices = @transform_1, window_bounds = array<i64: 1, 128, 128>}, {transform_indices = @transform_2, window_bounds = array<i64: 1, 1, 128>}, {transform_indices = @transform_3, window_bounds = array<i64: 1, 128, 128>}, {transform_indices = @transform_4, window_bounds = array<i64: 1, 1, 128>}, {transform_indices = @transform_5, window_bounds = array<i64: 1, 128, 128>}, {transform_indices = @transform_6, window_bounds = array<i64: 1, 1, 128>}, {transform_indices = @transform_7, window_bounds = array<i64: 1, 8, 128>}]} {
    %c0 = arith.constant 0 : index
    %c0_0 = arith.constant 0 : index
    %c0_1 = arith.constant 0 : index
    %0 = vector.load %arg2[%c0, %c0_0, %c0_1] : memref<1x8x128xf32, #tpu.memory_space<vmem>>, vector<1x8x128xf32>
    %1 = vector.shape_cast %0 : vector<1x8x128xf32> to vector<8x128xf32>
    %c0_2 = arith.constant 0 : index
    %c0_3 = arith.constant 0 : index
    %c0_4 = arith.constant 0 : index
    %2 = vector.load %arg3[%c0_2, %c0_3, %c0_4] : memref<1x128x128xf32, #tpu.memory_space<vmem>>, vector<1x128x128xf32>
    %3 = vector.shape_cast %2 : vector<1x128x128xf32> to vector<128x128xf32>
    %4 = arith.truncf %1 : vector<8x128xf32> to vector<8x128xbf16>
    %5 = arith.truncf %3 : vector<128x128xf32> to vector<128x128xbf16>
    %cst = arith.constant dense<0.000000e+00> : vector<8x128xf32>
    %6 = tpu.matmul %4, %5, %cst {dimension_numbers = #tpu.dot_dimension_numbers<[1], [0], [0], [1], [0, 0, 1, 1], [], []>} : vector<8x128xbf16>, vector<128x128xbf16>, vector<8x128xf32> -> vector<8x128xf32>
    %c0_5 = arith.constant 0 : index
    %c0_6 = arith.constant 0 : index
    %c0_7 = arith.constant 0 : index
    %7 = vector.load %arg4[%c0_5, %c0_6, %c0_7] : memref<1x1x128xf32, #tpu.memory_space<vmem>>, vector<1x1x128xf32>
    %8 = vector.shape_cast %7 : vector<1x1x128xf32> to vector<1x128xf32>
    %9 = vector.broadcast %8 : vector<1x128xf32> to vector<8x128xf32>
    %10 = arith.addf %6, %9 : vector<8x128xf32>
    %cst_8 = arith.constant 0.000000e+00 : f32
    %11 = vector.broadcast %cst_8 : f32 to vector<8x128xf32>
    %12 = arith.maximumf %10, %11 : vector<8x128xf32>
    %c0_9 = arith.constant 0 : index
    %c0_10 = arith.constant 0 : index
    %c0_11 = arith.constant 0 : index
    %13 = vector.load %arg5[%c0_9, %c0_10, %c0_11] : memref<1x128x128xf32, #tpu.memory_space<vmem>>, vector<1x128x128xf32>
    %14 = vector.shape_cast %13 : vector<1x128x128xf32> to vector<128x128xf32>
    %15 = arith.truncf %12 : vector<8x128xf32> to vector<8x128xbf16>
    %16 = arith.truncf %14 : vector<128x128xf32> to vector<128x128xbf16>
    %cst_12 = arith.constant dense<0.000000e+00> : vector<8x128xf32>
    %17 = tpu.matmul %15, %16, %cst_12 {dimension_numbers = #tpu.dot_dimension_numbers<[1], [0], [0], [1], [0, 0, 1, 1], [], []>} : vector<8x128xbf16>, vector<128x128xbf16>, vector<8x128xf32> -> vector<8x128xf32>
    %c0_13 = arith.constant 0 : index
    %c0_14 = arith.constant 0 : index
    %c0_15 = arith.constant 0 : index
    %18 = vector.load %arg6[%c0_13, %c0_14, %c0_15] : memref<1x1x128xf32, #tpu.memory_space<vmem>>, vector<1x1x128xf32>
    %19 = vector.shape_cast %18 : vector<1x1x128xf32> to vector<1x128xf32>
    %20 = vector.broadcast %19 : vector<1x128xf32> to vector<8x128xf32>
    %21 = arith.addf %17, %20 : vector<8x128xf32>
    %cst_16 = arith.constant 0.000000e+00 : f32
    %22 = vector.broadcast %cst_16 : f32 to vector<8x128xf32>
    %23 = arith.maximumf %21, %22 : vector<8x128xf32>
    %c0_17 = arith.constant 0 : index
    %c0_18 = arith.constant 0 : index
    %c0_19 = arith.constant 0 : index
    %24 = vector.load %arg7[%c0_17, %c0_18, %c0_19] : memref<1x128x128xf32, #tpu.memory_space<vmem>>, vector<1x128x128xf32>
    %25 = vector.shape_cast %24 : vector<1x128x128xf32> to vector<128x128xf32>
    %26 = arith.truncf %23 : vector<8x128xf32> to vector<8x128xbf16>
    %27 = arith.truncf %25 : vector<128x128xf32> to vector<128x128xbf16>
    %cst_20 = arith.constant dense<0.000000e+00> : vector<8x128xf32>
    %28 = tpu.matmul %26, %27, %cst_20 {dimension_numbers = #tpu.dot_dimension_numbers<[1], [0], [0], [1], [0, 0, 1, 1], [], []>} : vector<8x128xbf16>, vector<128x128xbf16>, vector<8x128xf32> -> vector<8x128xf32>
    %c0_21 = arith.constant 0 : index
    %c0_22 = arith.constant 0 : index
    %c0_23 = arith.constant 0 : index
    %29 = vector.load %arg8[%c0_21, %c0_22, %c0_23] : memref<1x1x128xf32, #tpu.memory_space<vmem>>, vector<1x1x128xf32>
    %30 = vector.shape_cast %29 : vector<1x1x128xf32> to vector<1x128xf32>
    %31 = vector.broadcast %30 : vector<1x128xf32> to vector<8x128xf32>
    %32 = arith.addf %28, %31 : vector<8x128xf32>
    %cst_24 = arith.constant 0.000000e+00 : f32
    %33 = vector.broadcast %cst_24 : f32 to vector<8x128xf32>
    %34 = arith.maximumf %32, %33 : vector<8x128xf32>
    %c0_25 = arith.constant 0 : index
    %c0_26 = arith.constant 0 : index
    %c0_27 = arith.constant 0 : index
    %35 = vector.load %arg9[%c0_25, %c0_26, %c0_27] : memref<1x8x128xf32, #tpu.memory_space<vmem>>, vector<1x8x128xf32>
    %36 = vector.shape_cast %35 : vector<1x8x128xf32> to vector<8x128xf32>
    %37 = vector.shape_cast %34 : vector<8x128xf32> to vector<1x8x128xf32>
    tpu.vector_store %arg9[%c0_25, %c0_26, %c0_27], %37 {strides = array<i32>} : memref<1x8x128xf32, #tpu.memory_space<vmem>>, vector<1x8x128xf32>,
    return
  }
  func.func @transform_0(%arg0: i32, %arg1: i32) -> (i32, i32, i32) {
    %c0_i32 = arith.constant 0 : i32
    %c0_i32_0 = arith.constant 0 : i32
    return %arg0, %arg1, %c0_i32 : i32, i32, i32
  }
  func.func @transform_1(%arg0: i32, %arg1: i32) -> (i32, i32, i32) {
    %c0_i32 = arith.constant 0 : i32
    %c0_i32_0 = arith.constant 0 : i32
    %c0_i32_1 = arith.constant 0 : i32
    return %arg0, %c0_i32, %c0_i32_0 : i32, i32, i32
  }
  func.func @transform_2(%arg0: i32, %arg1: i32) -> (i32, i32, i32) {
    %c0_i32 = arith.constant 0 : i32
    %c0_i32_0 = arith.constant 0 : i32
    %c0_i32_1 = arith.constant 0 : i32
    return %arg0, %c0_i32, %c0_i32_0 : i32, i32, i32
  }
  func.func @transform_3(%arg0: i32, %arg1: i32) -> (i32, i32, i32) {
    %c0_i32 = arith.constant 0 : i32
    %c0_i32_0 = arith.constant 0 : i32
    %c0_i32_1 = arith.constant 0 : i32
    return %arg0, %c0_i32, %c0_i32_0 : i32, i32, i32
  }
  func.func @transform_4(%arg0: i32, %arg1: i32) -> (i32, i32, i32) {
    %c0_i32 = arith.constant 0 : i32
    %c0_i32_0 = arith.constant 0 : i32
    %c0_i32_1 = arith.constant 0 : i32
    return %arg0, %c0_i32, %c0_i32_0 : i32, i32, i32
  }
  func.func @transform_5(%arg0: i32, %arg1: i32) -> (i32, i32, i32) {
    %c0_i32 = arith.constant 0 : i32
    %c0_i32_0 = arith.constant 0 : i32
    %c0_i32_1 = arith.constant 0 : i32
    return %arg0, %c0_i32, %c0_i32_0 : i32, i32, i32
  }
  func.func @transform_6(%arg0: i32, %arg1: i32) -> (i32, i32, i32) {
    %c0_i32 = arith.constant 0 : i32
    %c0_i32_0 = arith.constant 0 : i32
    %c0_i32_1 = arith.constant 0 : i32
    return %arg0, %c0_i32, %c0_i32_0 : i32, i32, i32
  }
  func.func @transform_7(%arg0: i32, %arg1: i32) -> (i32, i32, i32) {
    %c0_i32 = arith.constant 0 : i32
    %c0_i32_0 = arith.constant 0 : i32
    return %arg0, %arg1, %c0_i32 : i32, i32, i32
  }
}

module attributes {stable_mosaic.version = 11 : i64} {
  func.func @_fused_mlp_kernel(%arg0: i32, %arg1: memref<24x128xf32, #tpu.memory_space<vmem>>, %arg2: memref<24x128xf32, #tpu.memory_space<vmem>>, %arg3: memref<128x128xf32, #tpu.memory_space<vmem>>, %arg4: memref<128x128xf32, #tpu.memory_space<vmem>>, %arg5: memref<1x128xf32, #tpu.memory_space<vmem>>, %arg6: memref<24x128xf32, #tpu.memory_space<vmem>>) attributes {dimension_semantics = [#tpu.dimension_semantics<parallel>], iteration_bounds = array<i64: 1>, scalar_prefetch = 0 : i64, scratch_operands = 0 : i64, tpu.core_type = #tpu.core_type<tc>, window_params = [{transform_indices = @transform_0, window_bounds = array<i64: 24, 128>}, {transform_indices = @transform_1, window_bounds = array<i64: 24, 128>}, {pipeline_mode = #tpu.pipeline_mode<synchronous>, transform_indices = @transform_2, window_bounds = array<i64: 128, 128>}, {pipeline_mode = #tpu.pipeline_mode<synchronous>, transform_indices = @transform_3, window_bounds = array<i64: 128, 128>}, {pipeline_mode = #tpu.pipeline_mode<synchronous>, transform_indices = @transform_4, window_bounds = array<i64: 1, 128>}, {transform_indices = @transform_5, window_bounds = array<i64: 24, 128>}]} {
    %c0 = arith.constant 0 : index
    %c0_0 = arith.constant 0 : index
    %0 = vector.load %arg1[%c0, %c0_0] : memref<24x128xf32, #tpu.memory_space<vmem>>, vector<24x128xf32>
    %c0_1 = arith.constant 0 : index
    %c0_2 = arith.constant 0 : index
    %1 = vector.load %arg3[%c0_1, %c0_2] : memref<128x128xf32, #tpu.memory_space<vmem>>, vector<128x128xf32>
    %2 = arith.truncf %0 : vector<24x128xf32> to vector<24x128xbf16>
    %3 = arith.truncf %1 : vector<128x128xf32> to vector<128x128xbf16>
    %cst = arith.constant dense<0.000000e+00> : vector<24x128xf32>
    %4 = tpu.matmul %2, %3, %cst {dimension_numbers = #tpu.dot_dimension_numbers<[1], [0], [0], [1], [0, 0, 1, 1], [], []>} : vector<24x128xbf16>, vector<128x128xbf16>, vector<24x128xf32> -> vector<24x128xf32>
    %c0_3 = arith.constant 0 : index
    %c0_4 = arith.constant 0 : index
    %5 = vector.load %arg2[%c0_3, %c0_4] : memref<24x128xf32, #tpu.memory_space<vmem>>, vector<24x128xf32>
    %c0_5 = arith.constant 0 : index
    %c0_6 = arith.constant 0 : index
    %6 = vector.load %arg4[%c0_5, %c0_6] : memref<128x128xf32, #tpu.memory_space<vmem>>, vector<128x128xf32>
    %7 = arith.truncf %5 : vector<24x128xf32> to vector<24x128xbf16>
    %8 = arith.truncf %6 : vector<128x128xf32> to vector<128x128xbf16>
    %cst_7 = arith.constant dense<0.000000e+00> : vector<24x128xf32>
    %9 = tpu.matmul %7, %8, %cst_7 {dimension_numbers = #tpu.dot_dimension_numbers<[1], [0], [0], [1], [0, 0, 1, 1], [], []>} : vector<24x128xbf16>, vector<128x128xbf16>, vector<24x128xf32> -> vector<24x128xf32>
    %10 = arith.addf %4, %9 : vector<24x128xf32>
    %c0_8 = arith.constant 0 : index
    %c0_9 = arith.constant 0 : index
    %11 = vector.load %arg5[%c0_8, %c0_9] : memref<1x128xf32, #tpu.memory_space<vmem>>, vector<1x128xf32>
    %12 = vector.broadcast %11 : vector<1x128xf32> to vector<24x128xf32>
    %13 = arith.addf %10, %12 : vector<24x128xf32>
    %cst_10 = arith.constant 0.000000e+00 : f32
    %14 = vector.broadcast %cst_10 : f32 to vector<24x128xf32>
    %15 = arith.maximumf %13, %14 : vector<24x128xf32>
    %c0_11 = arith.constant 0 : index
    %c0_12 = arith.constant 0 : index
    %16 = vector.load %arg6[%c0_11, %c0_12] : memref<24x128xf32, #tpu.memory_space<vmem>>, vector<24x128xf32>
    tpu.vector_store %arg6[%c0_11, %c0_12], %15 {strides = array<i32>} : memref<24x128xf32, #tpu.memory_space<vmem>>, vector<24x128xf32>,
    return
  }
  func.func @transform_0(%arg0: i32) -> (i32, i32) {
    %c0_i32 = arith.constant 0 : i32
    %c0_i32_0 = arith.constant 0 : i32
    return %arg0, %c0_i32 : i32, i32
  }
  func.func @transform_1(%arg0: i32) -> (i32, i32) {
    %c0_i32 = arith.constant 0 : i32
    %c0_i32_0 = arith.constant 0 : i32
    return %arg0, %c0_i32 : i32, i32
  }
  func.func @transform_2(%arg0: i32) -> (i32, i32) {
    %c0_i32 = arith.constant 0 : i32
    %c0_i32_0 = arith.constant 0 : i32
    %c0_i32_1 = arith.constant 0 : i32
    return %c0_i32, %c0_i32_0 : i32, i32
  }
  func.func @transform_3(%arg0: i32) -> (i32, i32) {
    %c0_i32 = arith.constant 0 : i32
    %c0_i32_0 = arith.constant 0 : i32
    %c0_i32_1 = arith.constant 0 : i32
    return %c0_i32, %c0_i32_0 : i32, i32
  }
  func.func @transform_4(%arg0: i32) -> (i32, i32) {
    %c0_i32 = arith.constant 0 : i32
    %c0_i32_0 = arith.constant 0 : i32
    %c0_i32_1 = arith.constant 0 : i32
    return %c0_i32, %c0_i32_0 : i32, i32
  }
  func.func @transform_5(%arg0: i32) -> (i32, i32) {
    %c0_i32 = arith.constant 0 : i32
    %c0_i32_0 = arith.constant 0 : i32
    return %arg0, %c0_i32 : i32, i32
  }
}

module attributes {stable_mosaic.version = 11 : i64} {
  func.func @_egsage_agg_kernel(%arg0: i32, %arg1: memref<1x24xi32, #tpu.memory_space<vmem>>, %arg2: memref<24x128xf32, #tpu.memory_space<vmem>>, %arg3: memref<16x128xf32, #tpu.memory_space<vmem>>, %arg4: memref<128x128xf32, #tpu.memory_space<vmem>>, %arg5: memref<128x128xf32, #tpu.memory_space<vmem>>, %arg6: memref<1x128xf32, #tpu.memory_space<vmem>>, %arg7: memref<16x128xf32, #tpu.memory_space<vmem>>) attributes {dimension_semantics = [#tpu.dimension_semantics<parallel>], iteration_bounds = array<i64: 1>, scalar_prefetch = 0 : i64, scratch_operands = 0 : i64, tpu.core_type = #tpu.core_type<tc>, window_params = [{pipeline_mode = #tpu.pipeline_mode<synchronous>, transform_indices = @transform_0, window_bounds = array<i64: 1, 24>}, {pipeline_mode = #tpu.pipeline_mode<synchronous>, transform_indices = @transform_1, window_bounds = array<i64: 24, 128>}, {transform_indices = @transform_2, window_bounds = array<i64: 16, 128>}, {pipeline_mode = #tpu.pipeline_mode<synchronous>, transform_indices = @transform_3, window_bounds = array<i64: 128, 128>}, {pipeline_mode = #tpu.pipeline_mode<synchronous>, transform_indices = @transform_4, window_bounds = array<i64: 128, 128>}, {pipeline_mode = #tpu.pipeline_mode<synchronous>, transform_indices = @transform_5, window_bounds = array<i64: 1, 128>}, {transform_indices = @transform_6, window_bounds = array<i64: 16, 128>}]} {
    %c16_i32 = arith.constant 16 : i32
    %0 = arith.muli %arg0, %c16_i32 : i32
    %1 = tpu.iota {dimensions = array<i32: 0>} : vector<16x24xi32>
    %2 = vector.broadcast %0 : i32 to vector<16x24xi32>
    %3 = arith.addi %2, %1 : vector<16x24xi32>
    %c0 = arith.constant 0 : index
    %c0_0 = arith.constant 0 : index
    %4 = vector.load %arg1[%c0, %c0_0] : memref<1x24xi32, #tpu.memory_space<vmem>>, vector<1x24xi32>
    %5 = vector.broadcast %4 : vector<1x24xi32> to vector<16x24xi32>
    %6 = arith.cmpi eq, %5, %3 : vector<16x24xi32>
    %7 = arith.extui %6 : vector<16x24xi1> to vector<16x24xi32>
    %8 = arith.sitofp %7 : vector<16x24xi32> to vector<16x24xf32>
    %cst = arith.constant dense<0.000000e+00> : vector<16xf32>
    %9 = vector.multi_reduction <add>, %8, %cst [1] : vector<16x24xf32> to vector<16xf32>
    %10 = vector.shape_cast %9 : vector<16xf32> to vector<16x1xf32>
    %cst_1 = arith.constant 0.000000e+00 : f32
    %11 = vector.broadcast %cst_1 : f32 to vector<16x1xf32>
    %12 = arith.cmpf ogt, %10, %11 : vector<16x1xf32>
    %cst_2 = arith.constant 1.000000e+00 : f32
    %13 = vector.broadcast %cst_2 : f32 to vector<16x1xf32>
    %14 = arith.maximumf %10, %13 : vector<16x1xf32>
    %cst_3 = arith.constant 1.000000e+00 : f32
    %15 = vector.broadcast %cst_3 : f32 to vector<16x1xf32>
    %16 = arith.divf %15, %14 : vector<16x1xf32>
    %cst_4 = arith.constant 0.000000e+00 : f32
    %17 = vector.broadcast %cst_4 : f32 to vector<16x1xf32>
    %18 = arith.select %12, %16, %17 : vector<16x1xi1>, vector<16x1xf32>
    %c0_5 = arith.constant 0 : index
    %c0_6 = arith.constant 0 : index
    %19 = vector.load %arg2[%c0_5, %c0_6] : memref<24x128xf32, #tpu.memory_space<vmem>>, vector<24x128xf32>
    %20 = arith.truncf %8 : vector<16x24xf32> to vector<16x24xbf16>
    %21 = arith.truncf %19 : vector<24x128xf32> to vector<24x128xbf16>
    %cst_7 = arith.constant dense<0.000000e+00> : vector<16x128xf32>
    %22 = tpu.matmul %20, %21, %cst_7 {dimension_numbers = #tpu.dot_dimension_numbers<[1], [0], [0], [1], [0, 0, 1, 1], [], []>} : vector<16x24xbf16>, vector<24x128xbf16>, vector<16x128xf32> -> vector<16x128xf32>
    %23 = vector.broadcast %18 : vector<16x1xf32> to vector<16x128xf32>
    %24 = arith.mulf %22, %23 : vector<16x128xf32>
    %c0_8 = arith.constant 0 : index
    %c0_9 = arith.constant 0 : index
    %25 = vector.load %arg4[%c0_8, %c0_9] : memref<128x128xf32, #tpu.memory_space<vmem>>, vector<128x128xf32>
    %26 = arith.truncf %24 : vector<16x128xf32> to vector<16x128xbf16>
    %27 = arith.truncf %25 : vector<128x128xf32> to vector<128x128xbf16>
    %cst_10 = arith.constant dense<0.000000e+00> : vector<16x128xf32>
    %28 = tpu.matmul %26, %27, %cst_10 {dimension_numbers = #tpu.dot_dimension_numbers<[1], [0], [0], [1], [0, 0, 1, 1], [], []>} : vector<16x128xbf16>, vector<128x128xbf16>, vector<16x128xf32> -> vector<16x128xf32>
    %c0_11 = arith.constant 0 : index
    %c0_12 = arith.constant 0 : index
    %29 = vector.load %arg3[%c0_11, %c0_12] : memref<16x128xf32, #tpu.memory_space<vmem>>, vector<16x128xf32>
    %c0_13 = arith.constant 0 : index
    %c0_14 = arith.constant 0 : index
    %30 = vector.load %arg5[%c0_13, %c0_14] : memref<128x128xf32, #tpu.memory_space<vmem>>, vector<128x128xf32>
    %31 = arith.truncf %29 : vector<16x128xf32> to vector<16x128xbf16>
    %32 = arith.truncf %30 : vector<128x128xf32> to vector<128x128xbf16>
    %cst_15 = arith.constant dense<0.000000e+00> : vector<16x128xf32>
    %33 = tpu.matmul %31, %32, %cst_15 {dimension_numbers = #tpu.dot_dimension_numbers<[1], [0], [0], [1], [0, 0, 1, 1], [], []>} : vector<16x128xbf16>, vector<128x128xbf16>, vector<16x128xf32> -> vector<16x128xf32>
    %34 = arith.addf %28, %33 : vector<16x128xf32>
    %c0_16 = arith.constant 0 : index
    %c0_17 = arith.constant 0 : index
    %35 = vector.load %arg6[%c0_16, %c0_17] : memref<1x128xf32, #tpu.memory_space<vmem>>, vector<1x128xf32>
    %36 = vector.broadcast %35 : vector<1x128xf32> to vector<16x128xf32>
    %37 = arith.addf %34, %36 : vector<16x128xf32>
    %cst_18 = arith.constant 0.000000e+00 : f32
    %38 = vector.broadcast %cst_18 : f32 to vector<16x128xf32>
    %39 = arith.maximumf %37, %38 : vector<16x128xf32>
    %40 = arith.mulf %39, %39 : vector<16x128xf32>
    %cst_19 = arith.constant dense<0.000000e+00> : vector<16xf32>
    %41 = vector.multi_reduction <add>, %40, %cst_19 [1] : vector<16x128xf32> to vector<16xf32>
    %42 = vector.shape_cast %41 : vector<16xf32> to vector<16x1xf32>
    %43 = math.sqrt %42 : vector<16x1xf32>
    %cst_20 = arith.constant 9.99999996E-13 : f32
    %44 = vector.broadcast %cst_20 : f32 to vector<16x1xf32>
    %45 = arith.maximumf %43, %44 : vector<16x1xf32>
    %46 = vector.broadcast %45 : vector<16x1xf32> to vector<16x128xf32>
    %47 = arith.divf %39, %46 : vector<16x128xf32>
    %c0_21 = arith.constant 0 : index
    %c0_22 = arith.constant 0 : index
    %48 = vector.load %arg7[%c0_21, %c0_22] : memref<16x128xf32, #tpu.memory_space<vmem>>, vector<16x128xf32>
    tpu.vector_store %arg7[%c0_21, %c0_22], %47 {strides = array<i32>} : memref<16x128xf32, #tpu.memory_space<vmem>>, vector<16x128xf32>,
    return
  }
  func.func @transform_0(%arg0: i32) -> (i32, i32) {
    %c0_i32 = arith.constant 0 : i32
    %c0_i32_0 = arith.constant 0 : i32
    %c0_i32_1 = arith.constant 0 : i32
    return %c0_i32, %c0_i32_0 : i32, i32
  }
  func.func @transform_1(%arg0: i32) -> (i32, i32) {
    %c0_i32 = arith.constant 0 : i32
    %c0_i32_0 = arith.constant 0 : i32
    %c0_i32_1 = arith.constant 0 : i32
    return %c0_i32, %c0_i32_0 : i32, i32
  }
  func.func @transform_2(%arg0: i32) -> (i32, i32) {
    %c0_i32 = arith.constant 0 : i32
    %c0_i32_0 = arith.constant 0 : i32
    return %arg0, %c0_i32 : i32, i32
  }
  func.func @transform_3(%arg0: i32) -> (i32, i32) {
    %c0_i32 = arith.constant 0 : i32
    %c0_i32_0 = arith.constant 0 : i32
    %c0_i32_1 = arith.constant 0 : i32
    return %c0_i32, %c0_i32_0 : i32, i32
  }
  func.func @transform_4(%arg0: i32) -> (i32, i32) {
    %c0_i32 = arith.constant 0 : i32
    %c0_i32_0 = arith.constant 0 : i32
    %c0_i32_1 = arith.constant 0 : i32
    return %c0_i32, %c0_i32_0 : i32, i32
  }
  func.func @transform_5(%arg0: i32) -> (i32, i32) {
    %c0_i32 = arith.constant 0 : i32
    %c0_i32_0 = arith.constant 0 : i32
    %c0_i32_1 = arith.constant 0 : i32
    return %c0_i32, %c0_i32_0 : i32, i32
  }
  func.func @transform_6(%arg0: i32) -> (i32, i32) {
    %c0_i32 = arith.constant 0 : i32
    %c0_i32_0 = arith.constant 0 : i32
    return %arg0, %c0_i32 : i32, i32
  }
}

module attributes {stable_mosaic.version = 11 : i64} {
  func.func @_fused_mlp_kernel(%arg0: i32, %arg1: memref<24x128xf32, #tpu.memory_space<vmem>>, %arg2: memref<24x128xf32, #tpu.memory_space<vmem>>, %arg3: memref<24x128xf32, #tpu.memory_space<vmem>>, %arg4: memref<128x128xf32, #tpu.memory_space<vmem>>, %arg5: memref<128x128xf32, #tpu.memory_space<vmem>>, %arg6: memref<128x128xf32, #tpu.memory_space<vmem>>, %arg7: memref<1x128xf32, #tpu.memory_space<vmem>>, %arg8: memref<24x128xf32, #tpu.memory_space<vmem>>) attributes {dimension_semantics = [#tpu.dimension_semantics<parallel>], iteration_bounds = array<i64: 1>, scalar_prefetch = 0 : i64, scratch_operands = 0 : i64, tpu.core_type = #tpu.core_type<tc>, window_params = [{transform_indices = @transform_0, window_bounds = array<i64: 24, 128>}, {transform_indices = @transform_1, window_bounds = array<i64: 24, 128>}, {transform_indices = @transform_2, window_bounds = array<i64: 24, 128>}, {pipeline_mode = #tpu.pipeline_mode<synchronous>, transform_indices = @transform_3, window_bounds = array<i64: 128, 128>}, {pipeline_mode = #tpu.pipeline_mode<synchronous>, transform_indices = @transform_4, window_bounds = array<i64: 128, 128>}, {pipeline_mode = #tpu.pipeline_mode<synchronous>, transform_indices = @transform_5, window_bounds = array<i64: 128, 128>}, {pipeline_mode = #tpu.pipeline_mode<synchronous>, transform_indices = @transform_6, window_bounds = array<i64: 1, 128>}, {transform_indices = @transform_7, window_bounds = array<i64: 24, 128>}]} {
    %c0 = arith.constant 0 : index
    %c0_0 = arith.constant 0 : index
    %0 = vector.load %arg1[%c0, %c0_0] : memref<24x128xf32, #tpu.memory_space<vmem>>, vector<24x128xf32>
    %c0_1 = arith.constant 0 : index
    %c0_2 = arith.constant 0 : index
    %1 = vector.load %arg4[%c0_1, %c0_2] : memref<128x128xf32, #tpu.memory_space<vmem>>, vector<128x128xf32>
    %2 = arith.truncf %0 : vector<24x128xf32> to vector<24x128xbf16>
    %3 = arith.truncf %1 : vector<128x128xf32> to vector<128x128xbf16>
    %cst = arith.constant dense<0.000000e+00> : vector<24x128xf32>
    %4 = tpu.matmul %2, %3, %cst {dimension_numbers = #tpu.dot_dimension_numbers<[1], [0], [0], [1], [0, 0, 1, 1], [], []>} : vector<24x128xbf16>, vector<128x128xbf16>, vector<24x128xf32> -> vector<24x128xf32>
    %c0_3 = arith.constant 0 : index
    %c0_4 = arith.constant 0 : index
    %5 = vector.load %arg2[%c0_3, %c0_4] : memref<24x128xf32, #tpu.memory_space<vmem>>, vector<24x128xf32>
    %c0_5 = arith.constant 0 : index
    %c0_6 = arith.constant 0 : index
    %6 = vector.load %arg5[%c0_5, %c0_6] : memref<128x128xf32, #tpu.memory_space<vmem>>, vector<128x128xf32>
    %7 = arith.truncf %5 : vector<24x128xf32> to vector<24x128xbf16>
    %8 = arith.truncf %6 : vector<128x128xf32> to vector<128x128xbf16>
    %cst_7 = arith.constant dense<0.000000e+00> : vector<24x128xf32>
    %9 = tpu.matmul %7, %8, %cst_7 {dimension_numbers = #tpu.dot_dimension_numbers<[1], [0], [0], [1], [0, 0, 1, 1], [], []>} : vector<24x128xbf16>, vector<128x128xbf16>, vector<24x128xf32> -> vector<24x128xf32>
    %10 = arith.addf %4, %9 : vector<24x128xf32>
    %c0_8 = arith.constant 0 : index
    %c0_9 = arith.constant 0 : index
    %11 = vector.load %arg3[%c0_8, %c0_9] : memref<24x128xf32, #tpu.memory_space<vmem>>, vector<24x128xf32>
    %c0_10 = arith.constant 0 : index
    %c0_11 = arith.constant 0 : index
    %12 = vector.load %arg6[%c0_10, %c0_11] : memref<128x128xf32, #tpu.memory_space<vmem>>, vector<128x128xf32>
    %13 = arith.truncf %11 : vector<24x128xf32> to vector<24x128xbf16>
    %14 = arith.truncf %12 : vector<128x128xf32> to vector<128x128xbf16>
    %cst_12 = arith.constant dense<0.000000e+00> : vector<24x128xf32>
    %15 = tpu.matmul %13, %14, %cst_12 {dimension_numbers = #tpu.dot_dimension_numbers<[1], [0], [0], [1], [0, 0, 1, 1], [], []>} : vector<24x128xbf16>, vector<128x128xbf16>, vector<24x128xf32> -> vector<24x128xf32>
    %16 = arith.addf %10, %15 : vector<24x128xf32>
    %c0_13 = arith.constant 0 : index
    %c0_14 = arith.constant 0 : index
    %17 = vector.load %arg7[%c0_13, %c0_14] : memref<1x128xf32, #tpu.memory_space<vmem>>, vector<1x128xf32>
    %18 = vector.broadcast %17 : vector<1x128xf32> to vector<24x128xf32>
    %19 = arith.addf %16, %18 : vector<24x128xf32>
    %cst_15 = arith.constant 0.000000e+00 : f32
    %20 = vector.broadcast %cst_15 : f32 to vector<24x128xf32>
    %21 = arith.maximumf %19, %20 : vector<24x128xf32>
    %c0_16 = arith.constant 0 : index
    %c0_17 = arith.constant 0 : index
    %22 = vector.load %arg8[%c0_16, %c0_17] : memref<24x128xf32, #tpu.memory_space<vmem>>, vector<24x128xf32>
    tpu.vector_store %arg8[%c0_16, %c0_17], %21 {strides = array<i32>} : memref<24x128xf32, #tpu.memory_space<vmem>>, vector<24x128xf32>,
    return
  }
  func.func @transform_0(%arg0: i32) -> (i32, i32) {
    %c0_i32 = arith.constant 0 : i32
    %c0_i32_0 = arith.constant 0 : i32
    return %arg0, %c0_i32 : i32, i32
  }
  func.func @transform_1(%arg0: i32) -> (i32, i32) {
    %c0_i32 = arith.constant 0 : i32
    %c0_i32_0 = arith.constant 0 : i32
    return %arg0, %c0_i32 : i32, i32
  }
  func.func @transform_2(%arg0: i32) -> (i32, i32) {
    %c0_i32 = arith.constant 0 : i32
    %c0_i32_0 = arith.constant 0 : i32
    return %arg0, %c0_i32 : i32, i32
  }
  func.func @transform_3(%arg0: i32) -> (i32, i32) {
    %c0_i32 = arith.constant 0 : i32
    %c0_i32_0 = arith.constant 0 : i32
    %c0_i32_1 = arith.constant 0 : i32
    return %c0_i32, %c0_i32_0 : i32, i32
  }
  func.func @transform_4(%arg0: i32) -> (i32, i32) {
    %c0_i32 = arith.constant 0 : i32
    %c0_i32_0 = arith.constant 0 : i32
    %c0_i32_1 = arith.constant 0 : i32
    return %c0_i32, %c0_i32_0 : i32, i32
  }
  func.func @transform_5(%arg0: i32) -> (i32, i32) {
    %c0_i32 = arith.constant 0 : i32
    %c0_i32_0 = arith.constant 0 : i32
    %c0_i32_1 = arith.constant 0 : i32
    return %c0_i32, %c0_i32_0 : i32, i32
  }
  func.func @transform_6(%arg0: i32) -> (i32, i32) {
    %c0_i32 = arith.constant 0 : i32
    %c0_i32_0 = arith.constant 0 : i32
    %c0_i32_1 = arith.constant 0 : i32
    return %c0_i32, %c0_i32_0 : i32, i32
  }
  func.func @transform_7(%arg0: i32) -> (i32, i32) {
    %c0_i32 = arith.constant 0 : i32
    %c0_i32_0 = arith.constant 0 : i32
    return %arg0, %c0_i32 : i32, i32
  }
}

module attributes {stable_mosaic.version = 11 : i64} {
  func.func @_fused_mlp_kernel(%arg0: i32, %arg1: memref<16x128xf32, #tpu.memory_space<vmem>>, %arg2: memref<128x128xf32, #tpu.memory_space<vmem>>, %arg3: memref<1x128xf32, #tpu.memory_space<vmem>>, %arg4: memref<128x128xf32, #tpu.memory_space<vmem>>, %arg5: memref<1x128xf32, #tpu.memory_space<vmem>>, %arg6: memref<16x128xf32, #tpu.memory_space<vmem>>) attributes {dimension_semantics = [#tpu.dimension_semantics<parallel>], iteration_bounds = array<i64: 1>, scalar_prefetch = 0 : i64, scratch_operands = 0 : i64, tpu.core_type = #tpu.core_type<tc>, window_params = [{transform_indices = @transform_0, window_bounds = array<i64: 16, 128>}, {pipeline_mode = #tpu.pipeline_mode<synchronous>, transform_indices = @transform_1, window_bounds = array<i64: 128, 128>}, {pipeline_mode = #tpu.pipeline_mode<synchronous>, transform_indices = @transform_2, window_bounds = array<i64: 1, 128>}, {pipeline_mode = #tpu.pipeline_mode<synchronous>, transform_indices = @transform_3, window_bounds = array<i64: 128, 128>}, {pipeline_mode = #tpu.pipeline_mode<synchronous>, transform_indices = @transform_4, window_bounds = array<i64: 1, 128>}, {transform_indices = @transform_5, window_bounds = array<i64: 16, 128>}]} {
    %c0 = arith.constant 0 : index
    %c0_0 = arith.constant 0 : index
    %0 = vector.load %arg1[%c0, %c0_0] : memref<16x128xf32, #tpu.memory_space<vmem>>, vector<16x128xf32>
    %c0_1 = arith.constant 0 : index
    %c0_2 = arith.constant 0 : index
    %1 = vector.load %arg2[%c0_1, %c0_2] : memref<128x128xf32, #tpu.memory_space<vmem>>, vector<128x128xf32>
    %2 = arith.truncf %0 : vector<16x128xf32> to vector<16x128xbf16>
    %3 = arith.truncf %1 : vector<128x128xf32> to vector<128x128xbf16>
    %cst = arith.constant dense<0.000000e+00> : vector<16x128xf32>
    %4 = tpu.matmul %2, %3, %cst {dimension_numbers = #tpu.dot_dimension_numbers<[1], [0], [0], [1], [0, 0, 1, 1], [], []>} : vector<16x128xbf16>, vector<128x128xbf16>, vector<16x128xf32> -> vector<16x128xf32>
    %c0_3 = arith.constant 0 : index
    %c0_4 = arith.constant 0 : index
    %5 = vector.load %arg3[%c0_3, %c0_4] : memref<1x128xf32, #tpu.memory_space<vmem>>, vector<1x128xf32>
    %6 = vector.broadcast %5 : vector<1x128xf32> to vector<16x128xf32>
    %7 = arith.addf %4, %6 : vector<16x128xf32>
    %cst_5 = arith.constant 0.000000e+00 : f32
    %8 = vector.broadcast %cst_5 : f32 to vector<16x128xf32>
    %9 = arith.maximumf %7, %8 : vector<16x128xf32>
    %c0_6 = arith.constant 0 : index
    %c0_7 = arith.constant 0 : index
    %10 = vector.load %arg4[%c0_6, %c0_7] : memref<128x128xf32, #tpu.memory_space<vmem>>, vector<128x128xf32>
    %11 = arith.truncf %9 : vector<16x128xf32> to vector<16x128xbf16>
    %12 = arith.truncf %10 : vector<128x128xf32> to vector<128x128xbf16>
    %cst_8 = arith.constant dense<0.000000e+00> : vector<16x128xf32>
    %13 = tpu.matmul %11, %12, %cst_8 {dimension_numbers = #tpu.dot_dimension_numbers<[1], [0], [0], [1], [0, 0, 1, 1], [], []>} : vector<16x128xbf16>, vector<128x128xbf16>, vector<16x128xf32> -> vector<16x128xf32>
    %c0_9 = arith.constant 0 : index
    %c0_10 = arith.constant 0 : index
    %14 = vector.load %arg5[%c0_9, %c0_10] : memref<1x128xf32, #tpu.memory_space<vmem>>, vector<1x128xf32>
    %15 = vector.broadcast %14 : vector<1x128xf32> to vector<16x128xf32>
    %16 = arith.addf %13, %15 : vector<16x128xf32>
    %c0_11 = arith.constant 0 : index
    %c0_12 = arith.constant 0 : index
    %17 = vector.load %arg6[%c0_11, %c0_12] : memref<16x128xf32, #tpu.memory_space<vmem>>, vector<16x128xf32>
    tpu.vector_store %arg6[%c0_11, %c0_12], %16 {strides = array<i32>} : memref<16x128xf32, #tpu.memory_space<vmem>>, vector<16x128xf32>,
    return
  }
  func.func @transform_0(%arg0: i32) -> (i32, i32) {
    %c0_i32 = arith.constant 0 : i32
    %c0_i32_0 = arith.constant 0 : i32
    return %arg0, %c0_i32 : i32, i32
  }
  func.func @transform_1(%arg0: i32) -> (i32, i32) {
    %c0_i32 = arith.constant 0 : i32
    %c0_i32_0 = arith.constant 0 : i32
    %c0_i32_1 = arith.constant 0 : i32
    return %c0_i32, %c0_i32_0 : i32, i32
  }
  func.func @transform_2(%arg0: i32) -> (i32, i32) {
    %c0_i32 = arith.constant 0 : i32
    %c0_i32_0 = arith.constant 0 : i32
    %c0_i32_1 = arith.constant 0 : i32
    return %c0_i32, %c0_i32_0 : i32, i32
  }
  func.func @transform_3(%arg0: i32) -> (i32, i32) {
    %c0_i32 = arith.constant 0 : i32
    %c0_i32_0 = arith.constant 0 : i32
    %c0_i32_1 = arith.constant 0 : i32
    return %c0_i32, %c0_i32_0 : i32, i32
  }
  func.func @transform_4(%arg0: i32) -> (i32, i32) {
    %c0_i32 = arith.constant 0 : i32
    %c0_i32_0 = arith.constant 0 : i32
    %c0_i32_1 = arith.constant 0 : i32
    return %c0_i32, %c0_i32_0 : i32, i32
  }
  func.func @transform_5(%arg0: i32) -> (i32, i32) {
    %c0_i32 = arith.constant 0 : i32
    %c0_i32_0 = arith.constant 0 : i32
    return %arg0, %c0_i32 : i32, i32
  }
}

module attributes {stable_mosaic.version = 11 : i64} {
  func.func @_fused_mlp_kernel(%arg0: i32, %arg1: memref<24x128xf32, #tpu.memory_space<vmem>>, %arg2: memref<24x128xf32, #tpu.memory_space<vmem>>, %arg3: memref<128x128xf32, #tpu.memory_space<vmem>>, %arg4: memref<128x128xf32, #tpu.memory_space<vmem>>, %arg5: memref<1x128xf32, #tpu.memory_space<vmem>>, %arg6: memref<128x128xf32, #tpu.memory_space<vmem>>, %arg7: memref<1x128xf32, #tpu.memory_space<vmem>>, %arg8: memref<24x128xf32, #tpu.memory_space<vmem>>) attributes {dimension_semantics = [#tpu.dimension_semantics<parallel>], iteration_bounds = array<i64: 1>, scalar_prefetch = 0 : i64, scratch_operands = 0 : i64, tpu.core_type = #tpu.core_type<tc>, window_params = [{transform_indices = @transform_0, window_bounds = array<i64: 24, 128>}, {transform_indices = @transform_1, window_bounds = array<i64: 24, 128>}, {pipeline_mode = #tpu.pipeline_mode<synchronous>, transform_indices = @transform_2, window_bounds = array<i64: 128, 128>}, {pipeline_mode = #tpu.pipeline_mode<synchronous>, transform_indices = @transform_3, window_bounds = array<i64: 128, 128>}, {pipeline_mode = #tpu.pipeline_mode<synchronous>, transform_indices = @transform_4, window_bounds = array<i64: 1, 128>}, {pipeline_mode = #tpu.pipeline_mode<synchronous>, transform_indices = @transform_5, window_bounds = array<i64: 128, 128>}, {pipeline_mode = #tpu.pipeline_mode<synchronous>, transform_indices = @transform_6, window_bounds = array<i64: 1, 128>}, {transform_indices = @transform_7, window_bounds = array<i64: 24, 128>}]} {
    %c0 = arith.constant 0 : index
    %c0_0 = arith.constant 0 : index
    %0 = vector.load %arg1[%c0, %c0_0] : memref<24x128xf32, #tpu.memory_space<vmem>>, vector<24x128xf32>
    %c0_1 = arith.constant 0 : index
    %c0_2 = arith.constant 0 : index
    %1 = vector.load %arg3[%c0_1, %c0_2] : memref<128x128xf32, #tpu.memory_space<vmem>>, vector<128x128xf32>
    %2 = arith.truncf %0 : vector<24x128xf32> to vector<24x128xbf16>
    %3 = arith.truncf %1 : vector<128x128xf32> to vector<128x128xbf16>
    %cst = arith.constant dense<0.000000e+00> : vector<24x128xf32>
    %4 = tpu.matmul %2, %3, %cst {dimension_numbers = #tpu.dot_dimension_numbers<[1], [0], [0], [1], [0, 0, 1, 1], [], []>} : vector<24x128xbf16>, vector<128x128xbf16>, vector<24x128xf32> -> vector<24x128xf32>
    %c0_3 = arith.constant 0 : index
    %c0_4 = arith.constant 0 : index
    %5 = vector.load %arg2[%c0_3, %c0_4] : memref<24x128xf32, #tpu.memory_space<vmem>>, vector<24x128xf32>
    %c0_5 = arith.constant 0 : index
    %c0_6 = arith.constant 0 : index
    %6 = vector.load %arg4[%c0_5, %c0_6] : memref<128x128xf32, #tpu.memory_space<vmem>>, vector<128x128xf32>
    %7 = arith.truncf %5 : vector<24x128xf32> to vector<24x128xbf16>
    %8 = arith.truncf %6 : vector<128x128xf32> to vector<128x128xbf16>
    %cst_7 = arith.constant dense<0.000000e+00> : vector<24x128xf32>
    %9 = tpu.matmul %7, %8, %cst_7 {dimension_numbers = #tpu.dot_dimension_numbers<[1], [0], [0], [1], [0, 0, 1, 1], [], []>} : vector<24x128xbf16>, vector<128x128xbf16>, vector<24x128xf32> -> vector<24x128xf32>
    %10 = arith.addf %4, %9 : vector<24x128xf32>
    %c0_8 = arith.constant 0 : index
    %c0_9 = arith.constant 0 : index
    %11 = vector.load %arg5[%c0_8, %c0_9] : memref<1x128xf32, #tpu.memory_space<vmem>>, vector<1x128xf32>
    %12 = vector.broadcast %11 : vector<1x128xf32> to vector<24x128xf32>
    %13 = arith.addf %10, %12 : vector<24x128xf32>
    %cst_10 = arith.constant 0.000000e+00 : f32
    %14 = vector.broadcast %cst_10 : f32 to vector<24x128xf32>
    %15 = arith.maximumf %13, %14 : vector<24x128xf32>
    %c0_11 = arith.constant 0 : index
    %c0_12 = arith.constant 0 : index
    %16 = vector.load %arg6[%c0_11, %c0_12] : memref<128x128xf32, #tpu.memory_space<vmem>>, vector<128x128xf32>
    %17 = arith.truncf %15 : vector<24x128xf32> to vector<24x128xbf16>
    %18 = arith.truncf %16 : vector<128x128xf32> to vector<128x128xbf16>
    %cst_13 = arith.constant dense<0.000000e+00> : vector<24x128xf32>
    %19 = tpu.matmul %17, %18, %cst_13 {dimension_numbers = #tpu.dot_dimension_numbers<[1], [0], [0], [1], [0, 0, 1, 1], [], []>} : vector<24x128xbf16>, vector<128x128xbf16>, vector<24x128xf32> -> vector<24x128xf32>
    %c0_14 = arith.constant 0 : index
    %c0_15 = arith.constant 0 : index
    %20 = vector.load %arg7[%c0_14, %c0_15] : memref<1x128xf32, #tpu.memory_space<vmem>>, vector<1x128xf32>
    %21 = vector.broadcast %20 : vector<1x128xf32> to vector<24x128xf32>
    %22 = arith.addf %19, %21 : vector<24x128xf32>
    %c0_16 = arith.constant 0 : index
    %c0_17 = arith.constant 0 : index
    %23 = vector.load %arg8[%c0_16, %c0_17] : memref<24x128xf32, #tpu.memory_space<vmem>>, vector<24x128xf32>
    tpu.vector_store %arg8[%c0_16, %c0_17], %22 {strides = array<i32>} : memref<24x128xf32, #tpu.memory_space<vmem>>, vector<24x128xf32>,
    return
  }
  func.func @transform_0(%arg0: i32) -> (i32, i32) {
    %c0_i32 = arith.constant 0 : i32
    %c0_i32_0 = arith.constant 0 : i32
    return %arg0, %c0_i32 : i32, i32
  }
  func.func @transform_1(%arg0: i32) -> (i32, i32) {
    %c0_i32 = arith.constant 0 : i32
    %c0_i32_0 = arith.constant 0 : i32
    return %arg0, %c0_i32 : i32, i32
  }
  func.func @transform_2(%arg0: i32) -> (i32, i32) {
    %c0_i32 = arith.constant 0 : i32
    %c0_i32_0 = arith.constant 0 : i32
    %c0_i32_1 = arith.constant 0 : i32
    return %c0_i32, %c0_i32_0 : i32, i32
  }
  func.func @transform_3(%arg0: i32) -> (i32, i32) {
    %c0_i32 = arith.constant 0 : i32
    %c0_i32_0 = arith.constant 0 : i32
    %c0_i32_1 = arith.constant 0 : i32
    return %c0_i32, %c0_i32_0 : i32, i32
  }
  func.func @transform_4(%arg0: i32) -> (i32, i32) {
    %c0_i32 = arith.constant 0 : i32
    %c0_i32_0 = arith.constant 0 : i32
    %c0_i32_1 = arith.constant 0 : i32
    return %c0_i32, %c0_i32_0 : i32, i32
  }
  func.func @transform_5(%arg0: i32) -> (i32, i32) {
    %c0_i32 = arith.constant 0 : i32
    %c0_i32_0 = arith.constant 0 : i32
    %c0_i32_1 = arith.constant 0 : i32
    return %c0_i32, %c0_i32_0 : i32, i32
  }
  func.func @transform_6(%arg0: i32) -> (i32, i32) {
    %c0_i32 = arith.constant 0 : i32
    %c0_i32_0 = arith.constant 0 : i32
    %c0_i32_1 = arith.constant 0 : i32
    return %c0_i32, %c0_i32_0 : i32, i32
  }
  func.func @transform_7(%arg0: i32) -> (i32, i32) {
    %c0_i32 = arith.constant 0 : i32
    %c0_i32_0 = arith.constant 0 : i32
    return %arg0, %c0_i32 : i32, i32
  }
}

module attributes {stable_mosaic.version = 11 : i64} {
  func.func @_fused_mlp_kernel(%arg0: i32, %arg1: memref<8x128xf32, #tpu.memory_space<vmem>>, %arg2: memref<128x128xf32, #tpu.memory_space<vmem>>, %arg3: memref<1x128xf32, #tpu.memory_space<vmem>>, %arg4: memref<8x128xf32, #tpu.memory_space<vmem>>) attributes {dimension_semantics = [#tpu.dimension_semantics<parallel>], iteration_bounds = array<i64: 1>, scalar_prefetch = 0 : i64, scratch_operands = 0 : i64, tpu.core_type = #tpu.core_type<tc>, window_params = [{transform_indices = @transform_0, window_bounds = array<i64: 8, 128>}, {pipeline_mode = #tpu.pipeline_mode<synchronous>, transform_indices = @transform_1, window_bounds = array<i64: 128, 128>}, {pipeline_mode = #tpu.pipeline_mode<synchronous>, transform_indices = @transform_2, window_bounds = array<i64: 1, 128>}, {transform_indices = @transform_3, window_bounds = array<i64: 8, 128>}]} {
    %c0 = arith.constant 0 : index
    %c0_0 = arith.constant 0 : index
    %0 = vector.load %arg1[%c0, %c0_0] : memref<8x128xf32, #tpu.memory_space<vmem>>, vector<8x128xf32>
    %c0_1 = arith.constant 0 : index
    %c0_2 = arith.constant 0 : index
    %1 = vector.load %arg2[%c0_1, %c0_2] : memref<128x128xf32, #tpu.memory_space<vmem>>, vector<128x128xf32>
    %2 = arith.truncf %0 : vector<8x128xf32> to vector<8x128xbf16>
    %3 = arith.truncf %1 : vector<128x128xf32> to vector<128x128xbf16>
    %cst = arith.constant dense<0.000000e+00> : vector<8x128xf32>
    %4 = tpu.matmul %2, %3, %cst {dimension_numbers = #tpu.dot_dimension_numbers<[1], [0], [0], [1], [0, 0, 1, 1], [], []>} : vector<8x128xbf16>, vector<128x128xbf16>, vector<8x128xf32> -> vector<8x128xf32>
    %c0_3 = arith.constant 0 : index
    %c0_4 = arith.constant 0 : index
    %5 = vector.load %arg3[%c0_3, %c0_4] : memref<1x128xf32, #tpu.memory_space<vmem>>, vector<1x128xf32>
    %6 = vector.broadcast %5 : vector<1x128xf32> to vector<8x128xf32>
    %7 = arith.addf %4, %6 : vector<8x128xf32>
    %c0_5 = arith.constant 0 : index
    %c0_6 = arith.constant 0 : index
    %8 = vector.load %arg4[%c0_5, %c0_6] : memref<8x128xf32, #tpu.memory_space<vmem>>, vector<8x128xf32>
    tpu.vector_store %arg4[%c0_5, %c0_6], %7 {strides = array<i32>} : memref<8x128xf32, #tpu.memory_space<vmem>>, vector<8x128xf32>,
    return
  }
  func.func @transform_0(%arg0: i32) -> (i32, i32) {
    %c0_i32 = arith.constant 0 : i32
    %c0_i32_0 = arith.constant 0 : i32
    return %arg0, %c0_i32 : i32, i32
  }
  func.func @transform_1(%arg0: i32) -> (i32, i32) {
    %c0_i32 = arith.constant 0 : i32
    %c0_i32_0 = arith.constant 0 : i32
    %c0_i32_1 = arith.constant 0 : i32
    return %c0_i32, %c0_i32_0 : i32, i32
  }
  func.func @transform_2(%arg0: i32) -> (i32, i32) {
    %c0_i32 = arith.constant 0 : i32
    %c0_i32_0 = arith.constant 0 : i32
    %c0_i32_1 = arith.constant 0 : i32
    return %c0_i32, %c0_i32_0 : i32, i32
  }
  func.func @transform_3(%arg0: i32) -> (i32, i32) {
    %c0_i32 = arith.constant 0 : i32
    %c0_i32_0 = arith.constant 0 : i32
    return %arg0, %c0_i32 : i32, i32
  }
}

</mosaic_0001>

<llo_original>
// kernel: multmodality_forward.10
$region0: #{multmodality_forward.10}
  #allocation0 [shape = 'u32[]', space=smem, size = 0x4, offset = 0x4, fixed_abs, tag = 'smem constant byte address 0x4 - core index']
  #allocation1 [shape = 'u32[144,128]{1,0:T(1,128)}', space=vmem, size = 0x12000, scoped, tag = 'internal scratch']
  %s0 = inlined_call_operand.vmem [shape: f32[24,128], index: 0, kind: input, shape index: {}]
  %s1 = inlined_call_operand.vmem [shape: f32[24,128], index: 1, kind: input, shape index: {}]
  %s2 = inlined_call_operand.vmem [shape: f32[128,128], index: 2, kind: input, shape index: {}]
  %s3 = inlined_call_operand.vmem [shape: f32[128,128], index: 3, kind: input, shape index: {}]
  %s4 = inlined_call_operand.vmem [shape: f32[1,128], index: 4, kind: input, shape index: {}]
  %s5 = inlined_call_operand.vmem [shape: f32[24,128], index: 5, kind: output, shape index: {}]
  %s6 = sld [smem:[#allocation0]]
  $region30: #{multmodality_forward.10} parent=0
    _
  %s8 = ssub.s32 1, %s6
  %s9 = scalar_select 0, %s8, %s6
  // Predicated region
  $region2: #{multmodality_forward.10} parent=0 // pred_check
    _
  $region3: #{multmodality_forward.10} parent=0 // pred_check_branch
    %11 = sbr.rel (0) target = $region5
  $region4: #{multmodality_forward.10} parent=0 // pred_region
    _
  $region5: #{multmodality_forward.10} parent=0 // pred_fallthru
    _
  // Predicated region
  $region6: #{multmodality_forward.10} parent=0 // pred_check
    _
  $region7: #{multmodality_forward.10} parent=0 // pred_check_branch
    %13 = sbr.rel (0) target = $region9
  $region8: #{multmodality_forward.10} parent=0 // pred_region
    _
  $region9: #{multmodality_forward.10} parent=0 // pred_fallthru
    _
  // Predicated region
  $region10: #{multmodality_forward.10} parent=0 // pred_check
    _
  $region11: #{multmodality_forward.10} parent=0 // pred_check_branch
    %15 = sbr.rel (0) target = $region13
  $region12: #{multmodality_forward.10} parent=0 // pred_region
    _
  $region13: #{multmodality_forward.10} parent=0 // pred_fallthru
    _
  // Predicated region
  $region14: #{multmodality_forward.10} parent=0 // pred_check
    _
  $region15: #{multmodality_forward.10} parent=0 // pred_check_branch
    %17 = sbr.rel (0) target = $region17
  $region16: #{multmodality_forward.10} parent=0 // pred_region
    _
  $region17: #{multmodality_forward.10} parent=0 // pred_fallthru
    _
  // Predicated region
  $region18: #{multmodality_forward.10} parent=0 // pred_check
    _
  $region19: #{multmodality_forward.10} parent=0 // pred_check_branch
    %19 = sbr.rel (0) target = $region21
  $region20: #{multmodality_forward.10} parent=0 // pred_region
    _
  $region21: #{multmodality_forward.10} parent=0 // pred_fallthru
    _
  %v21 = vld [vmem:[%s0] sm:$0xff]
  %v22 = vld [vmem:[%s0 + $0x8] sm:$0xff]
  %v23 = vld [vmem:[%s0 + $0x10] sm:$0xff]
  %v24 = vld [vmem:[%s2] sm:$0xff]
  %v25 = vld [vmem:[%s2 + $0x8] sm:$0xff]
  %v26 = vld [vmem:[%s2 + $0x10] sm:$0xff]
  %v27 = vld [vmem:[%s2 + $0x18] sm:$0xff]
  %v28 = vld [vmem:[%s2 + $0x20] sm:$0xff]
  %v29 = vld [vmem:[%s2 + $0x28] sm:$0xff]
  %v30 = vld [vmem:[%s2 + $0x30] sm:$0xff]
  %v31 = vld [vmem:[%s2 + $0x38] sm:$0xff]
  %v32 = vld [vmem:[%s2 + $0x40] sm:$0xff]
  %v33 = vld [vmem:[%s2 + $0x48] sm:$0xff]
  %v34 = vld [vmem:[%s2 + $0x50] sm:$0xff]
  %v35 = vld [vmem:[%s2 + $0x58] sm:$0xff]
  %v36 = vld [vmem:[%s2 + $0x60] sm:$0xff]
  %v37 = vld [vmem:[%s2 + $0x68] sm:$0xff]
  %v38 = vld [vmem:[%s2 + $0x70] sm:$0xff]
  %v39 = vld [vmem:[%s2 + $0x78] sm:$0xff]
  %v40 = vpack.c.bf16 %v22, %v21
  %v41 = vpack.c.bf16 %v23, %v23
  %v42 = vpack.c.bf16 %v25, %v24
  %v43 = vpack.c.bf16 %v27, %v26
  %v44 = vpack.c.bf16 %v29, %v28
  %v45 = vpack.c.bf16 %v31, %v30
  %v46 = vpack.c.bf16 %v33, %v32
  %v47 = vpack.c.bf16 %v35, %v34
  %v48 = vpack.c.bf16 %v37, %v36
  %v49 = vpack.c.bf16 %v39, %v38
  %v50 = vld [vmem:[%s1] sm:$0xff]
  %v51 = vld [vmem:[%s1 + $0x8] sm:$0xff]
  %v52 = vld [vmem:[%s1 + $0x10] sm:$0xff]
  %v53 = vld [vmem:[%s3] sm:$0xff]
  %v54 = vld [vmem:[%s3 + $0x8] sm:$0xff]
  %v55 = vld [vmem:[%s3 + $0x10] sm:$0xff]
  %v56 = vld [vmem:[%s3 + $0x18] sm:$0xff]
  %v57 = vld [vmem:[%s3 + $0x20] sm:$0xff]
  %v58 = vld [vmem:[%s3 + $0x28] sm:$0xff]
  %v59 = vld [vmem:[%s3 + $0x30] sm:$0xff]
  %v60 = vld [vmem:[%s3 + $0x38] sm:$0xff]
  %v61 = vld [vmem:[%s3 + $0x40] sm:$0xff]
  %v62 = vld [vmem:[%s3 + $0x48] sm:$0xff]
  %v63 = vld [vmem:[%s3 + $0x50] sm:$0xff]
  %v64 = vld [vmem:[%s3 + $0x58] sm:$0xff]
  %v65 = vld [vmem:[%s3 + $0x60] sm:$0xff]
  %v66 = vld [vmem:[%s3 + $0x68] sm:$0xff]
  %v67 = vld [vmem:[%s3 + $0x70] sm:$0xff]
  %v68 = vld [vmem:[%s3 + $0x78] sm:$0xff]
  %v69 = vpack.c.bf16 %v51, %v50
  %v70 = vpack.c.bf16 %v52, %v52
  %v71 = vpack.c.bf16 %v54, %v53
  %v72 = vpack.c.bf16 %v56, %v55
  %v73 = vpack.c.bf16 %v58, %v57
  %v74 = vpack.c.bf16 %v60, %v59
  %v75 = vpack.c.bf16 %v62, %v61
  %v76 = vpack.c.bf16 %v64, %v63
  %v77 = vpack.c.bf16 %v66, %v65
  %v78 = vpack.c.bf16 %v68, %v67
  %79 = vmatprep.subr.bf16.mxu0 0
  %80 = vmatpush1.bf16.msra.mxu0 %v78
  %81 = vmatprep.subr.bf16.mxu0 0
  %82 = vmatpush1.bf16.msra.mxu0 %v77
  %83 = vmatprep.subr.bf16.mxu0 0
  %84 = vmatpush1.bf16.msra.mxu0 %v76
  %85 = vmatprep.subr.bf16.mxu0 0
  %86 = vmatpush1.bf16.msra.mxu0 %v75
  %87 = vmatprep.subr.bf16.mxu0 0
  %88 = vmatpush1.bf16.msra.mxu0 %v74
  %89 = vmatprep.subr.bf16.mxu0 0
  %90 = vmatpush1.bf16.msra.mxu0 %v73
  %91 = vmatprep.subr.bf16.mxu0 0
  %92 = vmatpush1.bf16.msra.mxu0 %v72
  %93 = vmatprep.subr.bf16.mxu0 0
  %94 = vmatpush1.bf16.msra.mxu0 %v71
  %95 = vmatprep.subr.bf16.mxu0 0
  %96 = vmatpush2.bf16.msra.mxu0 0
  %97 = vmatprep.subr.bf16.mxu0 0
  %98 = vmatpush2.bf16.msra.mxu0 0
  %99 = vmatprep.subr.bf16.mxu0 0
  %100 = vmatpush2.bf16.msra.mxu0 0
  %101 = vmatprep.subr.bf16.mxu0 0
  %102 = vmatpush2.bf16.msra.mxu0 0
  %103 = vmatprep.subr.bf16.mxu0 0
  %104 = vmatpush2.bf16.msra.mxu0 0
  %105 = vmatprep.subr.bf16.mxu0 0
  %106 = vmatpush2.bf16.msra.mxu0 0
  %107 = vmatprep.subr.bf16.mxu0 0
  %108 = vmatpush2.bf16.msra.mxu0 0
  %109 = vmatprep.subr.bf16.mxu0 0
  %110 = vmatpush2.bf16.msra.mxu0 0
  %111 = vmatprep.mubr.bf16.mxu0 0
  %112 = vmatmul.mubr.bf16.gmra.mxu0 %v69
  %v113 = vpop.f32.mrf.mxu0
  %v114 = vadd.f32 0.0, %v113
  %v115 = vpop.f32.mrf.mxu0
  %v116 = vpop.f32.mrf.mxu0
  %v117 = vadd.f32 0.0, %v116
  %v118 = vpop.f32.mrf.mxu0
  %119 = vmatprep.mubr.bf16.mxu0 0
  %120 = vmatmul.mubr.bf16.gmra.mxu0 %v70
  %v121 = vpop.f32.mrf.mxu0
  %v122 = vadd.f32 0.0, %v121
  %v123 = vpop.f32.mrf.mxu0
  %v124 = vpop.f32.mrf.mxu0
  %v125 = vpop.f32.mrf.mxu0
  %126 = vdwg.mxu0
  %127 = vmatprep.subr.bf16.mxu0 0
  %128 = vmatpush1.bf16.msra.mxu0 %v49
  %129 = vmatprep.subr.bf16.mxu0 0
  %130 = vmatpush1.bf16.msra.mxu0 %v48
  %131 = vmatprep.subr.bf16.mxu0 0
  %132 = vmatpush1.bf16.msra.mxu0 %v47
  %133 = vmatprep.subr.bf16.mxu0 0
  %134 = vmatpush1.bf16.msra.mxu0 %v46
  %135 = vmatprep.subr.bf16.mxu0 0
  %136 = vmatpush1.bf16.msra.mxu0 %v45
  %137 = vmatprep.subr.bf16.mxu0 0
  %138 = vmatpush1.bf16.msra.mxu0 %v44
  %139 = vmatprep.subr.bf16.mxu0 0
  %140 = vmatpush1.bf16.msra.mxu0 %v43
  %141 = vmatprep.subr.bf16.mxu0 0
  %142 = vmatpush1.bf16.msra.mxu0 %v42
  %143 = vmatprep.subr.bf16.mxu0 0
  %144 = vmatpush2.bf16.msra.mxu0 0
  %145 = vmatprep.subr.bf16.mxu0 0
  %146 = vmatpush2.bf16.msra.mxu0 0
  %147 = vmatprep.subr.bf16.mxu0 0
  %148 = vmatpush2.bf16.msra.mxu0 0
  %149 = vmatprep.subr.bf16.mxu0 0
  %150 = vmatpush2.bf16.msra.mxu0 0
  %151 = vmatprep.subr.bf16.mxu0 0
  %152 = vmatpush2.bf16.msra.mxu0 0
  %153 = vmatprep.subr.bf16.mxu0 0
  %154 = vmatpush2.bf16.msra.mxu0 0
  %155 = vmatprep.subr.bf16.mxu0 0
  %156 = vmatpush2.bf16.msra.mxu0 0
  %157 = vmatprep.subr.bf16.mxu0 0
  %158 = vmatpush2.bf16.msra.mxu0 0
  %159 = vmatprep.mubr.bf16.mxu0 0
  %160 = vmatmul.mubr.bf16.gmra.mxu0 %v40
  %v161 = vpop.f32.mrf.mxu0
  %v162 = vadd.f32 %v114, %v161
  %v163 = vpop.f32.mrf.mxu0
  %v164 = vpop.f32.mrf.mxu0
  %v165 = vadd.f32 %v117, %v164
  %v166 = vpop.f32.mrf.mxu0
  %167 = vmatprep.mubr.bf16.mxu0 0
  %168 = vmatmul.mubr.bf16.gmra.mxu0 %v41
  %v169 = vpop.f32.mrf.mxu0
  %v170 = vadd.f32 %v122, %v169
  %v171 = vpop.f32.mrf.mxu0
  %v172 = vpop.f32.mrf.mxu0
  %v173 = vpop.f32.mrf.mxu0
  %174 = vdwg.mxu0
  %v175 = vld [vmem:[%s4] sm:$0x1]
  %v177 = vlaneseq
  %v178 = vshrl.u32 %v177, 7
  %v179 = vsub.s32 0, %v178
  %v180 = vrot.slane %v175, %v179
  %v182 = vadd.f32 %v162, %v180
  %v183 = vadd.f32 %v165, %v180
  %v184 = vadd.f32 %v170, %v180
  %v185 = vmax.f32 %v182, 0.0
  %v186 = vmax.f32 %v183, 0.0
  %v187 = vmax.f32 %v184, 0.0
  %188 = vst [vmem:[%s5] sm:$0xff] %v185
  %189 = vst [vmem:[%s5 + $0x8] sm:$0xff] %v186
  %190 = vst [vmem:[%s5 + $0x10] sm:$0xff] %v187
  // Predicated region
  $region22: #{multmodality_forward.10} parent=0 // pred_check
    _
  $region23: #{multmodality_forward.10} parent=0 // pred_check_branch
    %192 = sbr.rel (0) target = $region25
  $region24: #{multmodality_forward.10} parent=0 // pred_region
    _
  $region25: #{multmodality_forward.10} parent=0 // pred_fallthru
    _
  // Predicated region
  $region26: #{multmodality_forward.10} parent=0 // pred_check
    _
  $region27: #{multmodality_forward.10} parent=0 // pred_check_branch
    %194 = sbr.rel (0) target = $region29
  $region28: #{multmodality_forward.10} parent=0 // pred_region
    _
  $region29: #{multmodality_forward.10} parent=0 // pred_fallthru
    _

// kernel: multmodality_forward.9
$region0: #{multmodality_forward.9}
  #allocation0 [shape = 'u32[]', space=smem, size = 0x4, offset = 0x4, fixed_abs, tag = 'smem constant byte address 0x4 - core index']
  #allocation1 [shape = 'u32[144,128]{1,0:T(1,128)}', space=vmem, size = 0x12000, scoped, tag = 'internal scratch']
  %s0 = inlined_call_operand.vmem [shape: f32[3,8,128], index: 0, kind: input, shape index: {}]
  %s1 = inlined_call_operand.vmem [shape: f32[3,128,128], index: 1, kind: input, shape index: {}]
  %s2 = inlined_call_operand.vmem [shape: f32[3,1,128], index: 2, kind: input, shape index: {}]
  %s3 = inlined_call_operand.hbm [shape: f32[3,128,128], index: 3, kind: input, shape index: {}]
  %s4 = inlined_call_operand.vmem [shape: f32[3,1,128], index: 4, kind: input, shape index: {}]
  %s5 = inlined_call_operand.hbm [shape: f32[3,128,128], index: 5, kind: input, shape index: {}]
  %s6 = inlined_call_operand.vmem [shape: f32[3,1,128], index: 6, kind: input, shape index: {}]
  %s7 = inlined_call_operand.vmem [shape: f32[3,8,128], index: 7, kind: output, shape index: {}]
  %s8 = sld [smem:[#allocation0]]
  $region69: #{multmodality_forward.9} parent=0
    _
  %s10 = ssub.s32 1, %s8
  %s11 = scalar_select 0, %s10, %s8
  $region1: #{multmodality_forward.9} parent=0
    #allocation2 [shape = 'u8[131072]{0}', space=vmem, size = 0x20000, scoped, tag = 'input window, operand 3']
    #allocation3 [shape = 's32[2]{0}', space=sflag, size = 0x8, scoped, tag = 'scoped memory for multmodality_forward.9']
    #allocation4 [shape = 'u8[131072]{0}', space=vmem, size = 0x20000, scoped, tag = 'input window, operand 5']
    #allocation5 [shape = 's32[2]{0}', space=sflag, size = 0x8, scoped, tag = 'scoped memory for multmodality_forward.9']
    %12 = vsyncpa [#allocation3], 0
    %s13 = scalar_lea.sflag [#allocation3], 1
    %14 = vsyncpa %s13, 0
    %15 = vsyncpa [#allocation5], 0
    %s16 = scalar_lea.sflag [#allocation5], 1
    %17 = vsyncpa %s16, 0
    loop: start=0, step=1, limit=5
    $region2: #{multmodality_forward.9} parent=1 // loop_pre_header
      _
    $region3: #{multmodality_forward.9} parent=1 // loop_header
      %s19 = sphi 0, %s23
      %p20 = scmp.ge.s32.totalorder %s19, 5
      %s26 = sphi 0, %s38
      %s27 = sphi 0, %s34
      %s28 = sphi 0, %s26
      %s29 = sphi 0, %s27
      %s30 = sphi 0, %s28
      %s31 = sphi 0, %s29
      %s43 = sphi 0, %s45
      %s46 = sphi 0, %s43
      %s47 = sphi 0, %s46
      %s63 = sphi 0, %s47
      %s69 = sphi 0, %s71
      %s72 = sphi 0, %s69
      %s73 = sphi 0, %s72
      %s89 = sphi 0, %s73
      %s95 = sphi 0, %s97
      %s98 = sphi 0, %s95
      %s99 = sphi 0, %s98
      %s115 = sphi 0, %s99
      %s121 = sphi 0, %s123
      %s124 = sphi 0, %s121
      %s125 = sphi 0, %s124
      %s141 = sphi 0, %s125
      %s147 = sphi 0, %s149
      %s150 = sphi 0, %s147
      %s151 = sphi 0, %s150
      %s167 = sphi 0, %s151
      %s173 = sphi 0, %s175
      %s176 = sphi 0, %s173
      %s177 = sphi 0, %s176
      %s193 = sphi 0, %s177
      %s199 = sphi 0, %s201
      %s202 = sphi 0, %s199
      %s203 = sphi 0, %s202
      %s219 = sphi 0, %s203
      %s227 = sphi 0, %s229
      %s230 = sphi 0, %s227
      %s231 = sphi 0, %s230
      %s247 = sphi 0, %s231
    $region4: #{multmodality_forward.9} parent=1 // loop_header_branch
      %22 = sbr.rel (%p20) target = $region8
    $region5: #{multmodality_forward.9} parent=1 // loop_body
      %s24 = ssub.s32 %s19, 1
      %s25 = ssub.s32 %s19, 2
      %s32 = sadd.s32 1, %s27
      %p33 = scmp.ge.s32.totalorder %s32, 1
      %s34 = scalar_select %p33, 0, %s32
      %s35 = sadd.s32 1, %s26
      %s36 = scalar_select %p33, %s35, %s26
      %p37 = scmp.ge.s32.totalorder %s36, 3
      %s38 = scalar_select %p37, 0, %s36
      %s39 = ssub.s32 %s26, %s38
      %s40 = ssub.s32 %s27, %s34
      %s41 = sor.u32 %s39, %s40
      %p42 = scmp.eq.s32.totalorder %s41, 0
      %s44 = sadd.s32 %s43, 1
      %s45 = scalar_select %p42, %s43, %s44
      %p48 = pneg %p42
      %p49 = scmp.eq.s32.totalorder %s19, 2
      %p50 = por %p48, %p49
      %p51 = scmp.ne.s32.totalorder %s43, %s46
      %p52 = scmp.eq.s32.totalorder %s19, 0
      %p53 = por %p51, %p52
      %p54 = scmp.ne.s32.totalorder %s43, %s46
      %p55 = scmp.eq.s32.totalorder %s24, 2
      %p56 = por %p54, %p55
      %p57 = scmp.ne.s32.totalorder %s46, %s47
      %p58 = scmp.eq.s32.totalorder %s24, 0
      %p59 = por %p57, %p58
      %p60 = scmp.ne.s32.totalorder %s46, %s47
      %p61 = scmp.eq.s32.totalorder %s25, 2
      %p62 = por %p60, %p61
      %p64 = scmp.ne.s32.totalorder %s47, %s63
      %p65 = scmp.eq.s32.totalorder %s25, 0
      %p66 = por %p64, %p65
      %s67 = ssub.s32 %s26, %s38
      %p68 = scmp.eq.s32.totalorder %s67, 0
      %s70 = sadd.s32 %s69, 1
      %s71 = scalar_select %p68, %s69, %s70
      %p74 = pneg %p68
      %p75 = scmp.eq.s32.totalorder %s19, 2
      %p76 = por %p74, %p75
      %p77 = scmp.ne.s32.totalorder %s69, %s72
      %p78 = scmp.eq.s32.totalorder %s19, 0
      %p79 = por %p77, %p78
      %p80 = scmp.ne.s32.totalorder %s69, %s72
      %p81 = scmp.eq.s32.totalorder %s24, 2
      %p82 = por %p80, %p81
      %p83 = scmp.ne.s32.totalorder %s72, %s73
      %p84 = scmp.eq.s32.totalorder %s24, 0
      %p85 = por %p83, %p84
      %p86 = scmp.ne.s32.totalorder %s72, %s73
      %p87 = scmp.eq.s32.totalorder %s25, 2
      %p88 = por %p86, %p87
      %p90 = scmp.ne.s32.totalorder %s73, %s89
      %p91 = scmp.eq.s32.totalorder %s25, 0
      %p92 = por %p90, %p91
      %s93 = ssub.s32 %s26, %s38
      %p94 = scmp.eq.s32.totalorder %s93, 0
      %s96 = sadd.s32 %s95, 1
      %s97 = scalar_select %p94, %s95, %s96
      %p100 = pneg %p94
      %p101 = scmp.eq.s32.totalorder %s19, 2
      %p102 = por %p100, %p101
      %p103 = scmp.ne.s32.totalorder %s95, %s98
      %p104 = scmp.eq.s32.totalorder %s19, 0
      %p105 = por %p103, %p104
      %p106 = scmp.ne.s32.totalorder %s95, %s98
      %p107 = scmp.eq.s32.totalorder %s24, 2
      %p108 = por %p106, %p107
      %p109 = scmp.ne.s32.totalorder %s98, %s99
      %p110 = scmp.eq.s32.totalorder %s24, 0
      %p111 = por %p109, %p110
      %p112 = scmp.ne.s32.totalorder %s98, %s99
      %p113 = scmp.eq.s32.totalorder %s25, 2
      %p114 = por %p112, %p113
      %p116 = scmp.ne.s32.totalorder %s99, %s115
      %p117 = scmp.eq.s32.totalorder %s25, 0
      %p118 = por %p116, %p117
      %s119 = ssub.s32 %s26, %s38
      %p120 = scmp.eq.s32.totalorder %s119, 0
      %s122 = sadd.s32 %s121, 1
      %s123 = scalar_select %p120, %s121, %s122
      %p126 = pneg %p120
      %p127 = scmp.eq.s32.totalorder %s19, 2
      %p128 = por %p126, %p127
      %p129 = scmp.ne.s32.totalorder %s121, %s124
      %p130 = scmp.eq.s32.totalorder %s19, 0
      %p131 = por %p129, %p130
      %p132 = scmp.ne.s32.totalorder %s121, %s124
      %p133 = scmp.eq.s32.totalorder %s24, 2
      %p134 = por %p132, %p133
      %p135 = scmp.ne.s32.totalorder %s124, %s125
      %p136 = scmp.eq.s32.totalorder %s24, 0
      %p137 = por %p135, %p136
      %p138 = scmp.ne.s32.totalorder %s124, %s125
      %p139 = scmp.eq.s32.totalorder %s25, 2
      %p140 = por %p138, %p139
      %p142 = scmp.ne.s32.totalorder %s125, %s141
      %p143 = scmp.eq.s32.totalorder %s25, 0
      %p144 = por %p142, %p143
      %s145 = ssub.s32 %s26, %s38
      %p146 = scmp.eq.s32.totalorder %s145, 0
      %s148 = sadd.s32 %s147, 1
      %s149 = scalar_select %p146, %s147, %s148
      %p152 = pneg %p146
      %p153 = scmp.eq.s32.totalorder %s19, 2
      %p154 = por %p152, %p153
      %p155 = scmp.ne.s32.totalorder %s147, %s150
      %p156 = scmp.eq.s32.totalorder %s19, 0
      %p157 = por %p155, %p156
      %p158 = scmp.ne.s32.totalorder %s147, %s150
      %p159 = scmp.eq.s32.totalorder %s24, 2
      %p160 = por %p158, %p159
      %p161 = scmp.ne.s32.totalorder %s150, %s151
      %p162 = scmp.eq.s32.totalorder %s24, 0
      %p163 = por %p161, %p162
      %p164 = scmp.ne.s32.totalorder %s150, %s151
      %p165 = scmp.eq.s32.totalorder %s25, 2
      %p166 = por %p164, %p165
      %p168 = scmp.ne.s32.totalorder %s151, %s167
      %p169 = scmp.eq.s32.totalorder %s25, 0
      %p170 = por %p168, %p169
      %s171 = ssub.s32 %s26, %s38
      %p172 = scmp.eq.s32.totalorder %s171, 0
      %s174 = sadd.s32 %s173, 1
      %s175 = scalar_select %p172, %s173, %s174
      %p178 = pneg %p172
      %p179 = scmp.eq.s32.totalorder %s19, 2
      %p180 = por %p178, %p179
      %p181 = scmp.ne.s32.totalorder %s173, %s176
      %p182 = scmp.eq.s32.totalorder %s19, 0
      %p183 = por %p181, %p182
      %p184 = scmp.ne.s32.totalorder %s173, %s176
      %p185 = scmp.eq.s32.totalorder %s24, 2
      %p186 = por %p184, %p185
      %p187 = scmp.ne.s32.totalorder %s176, %s177
      %p188 = scmp.eq.s32.totalorder %s24, 0
      %p189 = por %p187, %p188
      %p190 = scmp.ne.s32.totalorder %s176, %s177
      %p191 = scmp.eq.s32.totalorder %s25, 2
      %p192 = por %p190, %p191
      %p194 = scmp.ne.s32.totalorder %s177, %s193
      %p195 = scmp.eq.s32.totalorder %s25, 0
      %p196 = por %p194, %p195
      %s197 = ssub.s32 %s26, %s38
      %p198 = scmp.eq.s32.totalorder %s197, 0
      %s200 = sadd.s32 %s199, 1
      %s201 = scalar_select %p198, %s199, %s200
      %p204 = pneg %p198
      %p205 = scmp.eq.s32.totalorder %s19, 2
      %p206 = por %p204, %p205
      %p207 = scmp.ne.s32.totalorder %s199, %s202
      %p208 = scmp.eq.s32.totalorder %s19, 0
      %p209 = por %p207, %p208
      %p210 = scmp.ne.s32.totalorder %s199, %s202
      %p211 = scmp.eq.s32.totalorder %s24, 2
      %p212 = por %p210, %p211
      %p213 = scmp.ne.s32.totalorder %s202, %s203
      %p214 = scmp.eq.s32.totalorder %s24, 0
      %p215 = por %p213, %p214
      %p216 = scmp.ne.s32.totalorder %s202, %s203
      %p217 = scmp.eq.s32.totalorder %s25, 2
      %p218 = por %p216, %p217
      %p220 = scmp.ne.s32.totalorder %s203, %s219
      %p221 = scmp.eq.s32.totalorder %s25, 0
      %p222 = por %p220, %p221
      %s223 = ssub.s32 %s26, %s38
      %s224 = ssub.s32 %s27, %s34
      %s225 = sor.u32 %s223, %s224
      %p226 = scmp.eq.s32.totalorder %s225, 0
      %s228 = sadd.s32 %s227, 1
      %s229 = scalar_select %p226, %s227, %s228
      %p232 = pneg %p226
      %p233 = scmp.eq.s32.totalorder %s19, 2
      %p234 = por %p232, %p233
      %p235 = scmp.ne.s32.totalorder %s227, %s230
      %p236 = scmp.eq.s32.totalorder %s19, 0
      %p237 = por %p235, %p236
      %p238 = scmp.ne.s32.totalorder %s227, %s230
      %p239 = scmp.eq.s32.totalorder %s24, 2
      %p240 = por %p238, %p239
      %p241 = scmp.ne.s32.totalorder %s230, %s231
      %p242 = scmp.eq.s32.totalorder %s24, 0
      %p243 = por %p241, %p242
      %p244 = scmp.ne.s32.totalorder %s230, %s231
      %p245 = scmp.eq.s32.totalorder %s25, 2
      %p246 = por %p244, %p245
      %p248 = scmp.ne.s32.totalorder %s231, %s247
      %p249 = scmp.eq.s32.totalorder %s25, 0
      %p250 = por %p248, %p249
      %p251 = scmp.le.s32.totalorder 1, %s19
      %p252 = scmp.lt.s32.totalorder %s19, 4
      %p253 = pnand %p251, %p252
      %p254 = pneg %p253
      // Predicated region
      $region9: #{multmodality_forward.9} parent=5 // pred_check
        _
      $region10: #{multmodality_forward.9} parent=5 // pred_check_branch
        %256 = sbr.rel (%p253) target = $region12
      $region11: #{multmodality_forward.9} parent=5 // pred_region
        %s257 = ssub.s32 %s19, 1
      $region12: #{multmodality_forward.9} parent=5 // pred_fallthru
        _
      %p258 = scmp.lt.s32.totalorder %s19, 3
      // Predicated region
      $region13: #{multmodality_forward.9} parent=5 // pred_check
        %p259 = pneg %p258
      $region14: #{multmodality_forward.9} parent=5 // pred_check_branch
        %261 = sbr.rel (%p259) target = $region16
      $region15: #{multmodality_forward.9} parent=5 // pred_region
        // Predicated region
        $region17: #{multmodality_forward.9} parent=15 // pred_check
          %p262 = pneg %p53
        $region18: #{multmodality_forward.9} parent=15 // pred_check_branch
          %264 = sbr.rel (%p262) target = $region20
        $region19: #{multmodality_forward.9} parent=15 // pred_region
          %p265 = scmp.lt.s32.totalorder %s26, 2
          %s266 = scalar_select %p265, %s26, 2
          %p267 = scmp.lt.s32.totalorder %s27, 0
          %s268 = scalar_select %p267, %s27, 0
          %s269 = sadd.s32 %s268, %s266
          %s270 = smul.addr %s269, 8
          %s271 = scalar_lea.vmem %s0, %s270
        $region20: #{multmodality_forward.9} parent=15 // pred_fallthru
          _
        // Predicated region
        $region21: #{multmodality_forward.9} parent=15 // pred_check
          %p272 = pneg %p79
        $region22: #{multmodality_forward.9} parent=15 // pred_check_branch
          %274 = sbr.rel (%p272) target = $region24
        $region23: #{multmodality_forward.9} parent=15 // pred_region
          %p275 = scmp.lt.s32.totalorder %s26, 2
          %s276 = scalar_select %p275, %s26, 2
          %s277 = smul.addr %s276, 16
          %s278 = smul.addr %s277, 8
          %s279 = scalar_lea.vmem %s1, %s278
        $region24: #{multmodality_forward.9} parent=15 // pred_fallthru
          _
        // Predicated region
        $region25: #{multmodality_forward.9} parent=15 // pred_check
          %p280 = pneg %p105
        $region26: #{multmodality_forward.9} parent=15 // pred_check_branch
          %282 = sbr.rel (%p280) target = $region28
        $region27: #{multmodality_forward.9} parent=15 // pred_region
          %p283 = scmp.lt.s32.totalorder %s26, 2
          %s284 = scalar_select %p283, %s26, 2
          %s285 = scalar_lea.vmem %s2, %s284
        $region28: #{multmodality_forward.9} parent=15 // pred_fallthru
          _
        // Predicated region
        $region29: #{multmodality_forward.9} parent=15 // pred_check
          %p286 = pneg %p131
        $region30: #{multmodality_forward.9} parent=15 // pred_check_branch
          %288 = sbr.rel (%p286) target = $region32
        $region31: #{multmodality_forward.9} parent=15 // pred_region
          %s289 = sand.u32 %s121, 1
          %s290 = scalar_lea.sflag [#allocation3], %s289
          %s291 = sand.u32 %s121, 1
          %s292 = smul.addr %s291, 128
          %s293 = scalar_lea.vmem [#allocation2], %s292
          %s295 = ssub.s32 2048, 2048
          %296 = vsyncadd %s290, %s295
          %s297 = smul.addr %s26, 16
          %s298 = smul.addr %s297, 128
          %s299 = scalar_lea.hbm %s3, %s298
          %s300 = sshll.u32 %s293, 4
          %s301 = int_to_ptr.vmem [resolvable:$true] %s300
          %306 = dma.hbm_to_vmem [thread:$0]  %s299, 2048, %s301, %s290, 128, 128, 8
        $region32: #{multmodality_forward.9} parent=15 // pred_fallthru
          _
        // Predicated region
        $region33: #{multmodality_forward.9} parent=15 // pred_check
          %p307 = pneg %p157
        $region34: #{multmodality_forward.9} parent=15 // pred_check_branch
          %309 = sbr.rel (%p307) target = $region36
        $region35: #{multmodality_forward.9} parent=15 // pred_region
          %p310 = scmp.lt.s32.totalorder %s26, 2
          %s311 = scalar_select %p310, %s26, 2
          %s312 = scalar_lea.vmem %s4, %s311
        $region36: #{multmodality_forward.9} parent=15 // pred_fallthru
          _
        // Predicated region
        $region37: #{multmodality_forward.9} parent=15 // pred_check
          %p313 = pneg %p183
        $region38: #{multmodality_forward.9} parent=15 // pred_check_branch
          %315 = sbr.rel (%p313) target = $region40
        $region39: #{multmodality_forward.9} parent=15 // pred_region
          %s316 = sand.u32 %s173, 1
          %s317 = scalar_lea.sflag [#allocation5], %s316
          %s318 = sand.u32 %s173, 1
          %s319 = smul.addr %s318, 128
          %s320 = scalar_lea.vmem [#allocation4], %s319
          %s322 = ssub.s32 2048, 2048
          %323 = vsyncadd %s317, %s322
          %s324 = smul.addr %s26, 16
          %s325 = smul.addr %s324, 128
          %s326 = scalar_lea.hbm %s5, %s325
          %s327 = sshll.u32 %s320, 4
          %s328 = int_to_ptr.vmem [resolvable:$true] %s327
          %333 = dma.hbm_to_vmem [thread:$0]  %s326, 2048, %s328, %s317, 128, 128, 8
        $region40: #{multmodality_forward.9} parent=15 // pred_fallthru
          _
        // Predicated region
        $region41: #{multmodality_forward.9} parent=15 // pred_check
          %p334 = pneg %p209
        $region42: #{multmodality_forward.9} parent=15 // pred_check_branch
          %336 = sbr.rel (%p334) target = $region44
        $region43: #{multmodality_forward.9} parent=15 // pred_region
          %p337 = scmp.lt.s32.totalorder %s26, 2
          %s338 = scalar_select %p337, %s26, 2
          %s339 = scalar_lea.vmem %s6, %s338
        $region44: #{multmodality_forward.9} parent=15 // pred_fallthru
          _
      $region16: #{multmodality_forward.9} parent=5 // pred_fallthru
        _
      %p340 = scmp.le.s32.totalorder 1, %s19
      %p341 = scmp.lt.s32.totalorder %s19, 4
      %p342 = pnand %p340, %p341
      %p343 = pneg %p342
      // Predicated region
      $region45: #{multmodality_forward.9} parent=5 // pred_check
        _
      $region46: #{multmodality_forward.9} parent=5 // pred_check_branch
        %345 = sbr.rel (%p342) target = $region48
      $region47: #{multmodality_forward.9} parent=5 // pred_region
        %s346 = ssub.s32 %s19, 1
        %s347 = sand.u32 %s124, 1
        %s348 = scalar_lea.sflag [#allocation3], %s347
        %s349 = sand.u32 %s124, 1
        %s350 = smul.addr %s349, 128
        %s351 = scalar_lea.vmem [#allocation2], %s350
        // Predicated region
        $region49: #{multmodality_forward.9} parent=47 // pred_check
          %p352 = pneg %p137
        $region50: #{multmodality_forward.9} parent=47 // pred_check_branch
          %354 = sbr.rel (%p352) target = $region52
        $region51: #{multmodality_forward.9} parent=47 // pred_region
          %355 = dma.done %s348, 2048
        $region52: #{multmodality_forward.9} parent=47 // pred_fallthru
          _
        %s356 = sand.u32 %s176, 1
        %s357 = scalar_lea.sflag [#allocation5], %s356
        %s358 = sand.u32 %s176, 1
        %s359 = smul.addr %s358, 128
        %s360 = scalar_lea.vmem [#allocation4], %s359
        // Predicated region
        $region53: #{multmodality_forward.9} parent=47 // pred_check
          %p361 = pneg %p189
        $region54: #{multmodality_forward.9} parent=47 // pred_check_branch
          %363 = sbr.rel (%p361) target = $region56
        $region55: #{multmodality_forward.9} parent=47 // pred_region
          %364 = dma.done %s357, 2048
        $region56: #{multmodality_forward.9} parent=47 // pred_fallthru
          _
        %p365 = scmp.lt.s32.totalorder %s28, 2
        %s366 = scalar_select %p365, %s28, 2
        %p367 = scmp.lt.s32.totalorder %s29, 0
        %s368 = scalar_select %p367, %s29, 0
        %s369 = sadd.s32 %s368, %s366
        %s370 = smul.addr %s369, 8
        %s371 = scalar_lea.vmem %s0, %s370
        %p372 = pneg %p59
        %p373 = pneg %p56
        %p374 = scmp.lt.s32.totalorder %s28, 2
        %s375 = scalar_select %p374, %s28, 2
        %s376 = smul.addr %s375, 16
        %s377 = smul.addr %s376, 8
        %s378 = scalar_lea.vmem %s1, %s377
        %p379 = pneg %p85
        %p380 = pneg %p82
        %p381 = scmp.lt.s32.totalorder %s28, 2
        %s382 = scalar_select %p381, %s28, 2
        %s383 = scalar_lea.vmem %s2, %s382
        %p384 = pneg %p111
        %p385 = pneg %p108
        %s386 = sand.u32 %s124, 1
        %s387 = scalar_lea.sflag [#allocation3], %s386
        %s388 = sand.u32 %s124, 1
        %s389 = smul.addr %s388, 128
        %s390 = scalar_lea.vmem [#allocation2], %s389
        %p391 = pneg %p137
        %p392 = pneg %p134
        %p393 = scmp.lt.s32.totalorder %s28, 2
        %s394 = scalar_select %p393, %s28, 2
        %s395 = scalar_lea.vmem %s4, %s394
        %p396 = pneg %p163
        %p397 = pneg %p160
        %s398 = sand.u32 %s176, 1
        %s399 = scalar_lea.sflag [#allocation5], %s398
        %s400 = sand.u32 %s176, 1
        %s401 = smul.addr %s400, 128
        %s402 = scalar_lea.vmem [#allocation4], %s401
        %p403 = pneg %p189
        %p404 = pneg %p186
        %p405 = scmp.lt.s32.totalorder %s28, 2
        %s406 = scalar_select %p405, %s28, 2
        %s407 = scalar_lea.vmem %s6, %s406
        %p408 = pneg %p215
        %p409 = pneg %p212
        %p410 = pneg %p243
        %p411 = pneg %p240
        %p412 = scmp.lt.s32.totalorder %s28, 2
        %s413 = scalar_select %p412, %s28, 2
        %p414 = scmp.lt.s32.totalorder %s29, 0
        %s415 = scalar_select %p414, %s29, 0
        %s416 = sadd.s32 %s415, %s413
        %s417 = smul.addr %s416, 8
        %s418 = scalar_lea.vmem %s7, %s417
        %p419 = scmp.lt.s32.totalorder %s28, 2
        %s420 = scalar_select %p419, %s28, 2
        %p421 = scmp.lt.s32.totalorder %s29, 0
        %s422 = scalar_select %p421, %s29, 0
        %s423 = sadd.s32 %s422, %s420
        %s424 = smul.addr %s423, 8
        %s425 = scalar_lea.vmem %s0, %s424
        %p426 = scmp.lt.s32.totalorder %s28, 2
        %s427 = scalar_select %p426, %s28, 2
        %s428 = smul.addr %s427, 16
        %s429 = smul.addr %s428, 8
        %s430 = scalar_lea.vmem %s1, %s429
        %p431 = scmp.lt.s32.totalorder %s28, 2
        %s432 = scalar_select %p431, %s28, 2
        %s433 = scalar_lea.vmem %s2, %s432
        %p434 = scmp.lt.s32.totalorder %s28, 2
        %s435 = scalar_select %p434, %s28, 2
        %s436 = scalar_lea.vmem %s4, %s435
        %p437 = scmp.lt.s32.totalorder %s28, 2
        %s438 = scalar_select %p437, %s28, 2
        %s439 = scalar_lea.vmem %s6, %s438
        %p440 = scmp.lt.s32.totalorder %s28, 2
        %s441 = scalar_select %p440, %s28, 2
        %p442 = scmp.lt.s32.totalorder %s29, 0
        %s443 = scalar_select %p442, %s29, 0
        %s444 = sadd.s32 %s443, %s441
        %s445 = smul.addr %s444, 8
        %s446 = scalar_lea.vmem %s7, %s445
        %v448 = vld [vmem:[%s425] sm:$0xff]
        %v449 = vld [vmem:[%s430] sm:$0xff]
        %v450 = vld [vmem:[%s430 + $0x8] sm:$0xff]
        %v451 = vld [vmem:[%s430 + $0x10] sm:$0xff]
        %v452 = vld [vmem:[%s430 + $0x18] sm:$0xff]
        %v453 = vld [vmem:[%s430 + $0x20] sm:$0xff]
        %v454 = vld [vmem:[%s430 + $0x28] sm:$0xff]
        %v455 = vld [vmem:[%s430 + $0x30] sm:$0xff]
        %v456 = vld [vmem:[%s430 + $0x38] sm:$0xff]
        %v457 = vld [vmem:[%s430 + $0x40] sm:$0xff]
        %v458 = vld [vmem:[%s430 + $0x48] sm:$0xff]
        %v459 = vld [vmem:[%s430 + $0x50] sm:$0xff]
        %v460 = vld [vmem:[%s430 + $0x58] sm:$0xff]
        %v461 = vld [vmem:[%s430 + $0x60] sm:$0xff]
        %v462 = vld [vmem:[%s430 + $0x68] sm:$0xff]
        %v463 = vld [vmem:[%s430 + $0x70] sm:$0xff]
        %v464 = vld [vmem:[%s430 + $0x78] sm:$0xff]
        %v465 = vpack.c.bf16 %v448, %v448
        %v466 = vpack.c.bf16 %v450, %v449
        %v467 = vpack.c.bf16 %v452, %v451
        %v468 = vpack.c.bf16 %v454, %v453
        %v469 = vpack.c.bf16 %v456, %v455
        %v470 = vpack.c.bf16 %v458, %v457
        %v471 = vpack.c.bf16 %v460, %v459
        %v472 = vpack.c.bf16 %v462, %v461
        %v473 = vpack.c.bf16 %v464, %v463
        %v474 = vld [vmem:[%s433] sm:$0x1]
        %v476 = vlaneseq
        %v477 = vshrl.u32 %v476, 7
        %v478 = vsub.s32 0, %v477
        %v479 = vrot.slane %v474, %v478
        %481 = vmatprep.subr.bf16.mxu0 0
        %482 = vmatpush1.bf16.msra.mxu0 %v473
        %483 = vmatprep.subr.bf16.mxu0 0
        %484 = vmatpush1.bf16.msra.mxu0 %v472
        %485 = vmatprep.subr.bf16.mxu0 0
        %486 = vmatpush1.bf16.msra.mxu0 %v471
        %487 = vmatprep.subr.bf16.mxu0 0
        %488 = vmatpush1.bf16.msra.mxu0 %v470
        %489 = vmatprep.subr.bf16.mxu0 0
        %490 = vmatpush1.bf16.msra.mxu0 %v469
        %491 = vmatprep.subr.bf16.mxu0 0
        %492 = vmatpush1.bf16.msra.mxu0 %v468
        %493 = vmatprep.subr.bf16.mxu0 0
        %494 = vmatpush1.bf16.msra.mxu0 %v467
        %495 = vmatprep.subr.bf16.mxu0 0
        %496 = vmatpush1.bf16.msra.mxu0 %v466
        %497 = vmatprep.subr.bf16.mxu0 0
        %498 = vmatpush2.bf16.msra.mxu0 0
        %499 = vmatprep.subr.bf16.mxu0 0
        %500 = vmatpush2.bf16.msra.mxu0 0
        %501 = vmatprep.subr.bf16.mxu0 0
        %502 = vmatpush2.bf16.msra.mxu0 0
        %503 = vmatprep.subr.bf16.mxu0 0
        %504 = vmatpush2.bf16.msra.mxu0 0
        %505 = vmatprep.subr.bf16.mxu0 0
        %506 = vmatpush2.bf16.msra.mxu0 0
        %507 = vmatprep.subr.bf16.mxu0 0
        %508 = vmatpush2.bf16.msra.mxu0 0
        %509 = vmatprep.subr.bf16.mxu0 0
        %510 = vmatpush2.bf16.msra.mxu0 0
        %511 = vmatprep.subr.bf16.mxu0 0
        %512 = vmatpush2.bf16.msra.mxu0 0
        %513 = vmatprep.mubr.bf16.mxu0 0
        %514 = vmatmul.mubr.bf16.gmra.mxu0 %v465
        %v515 = vpop.f32.mrf.mxu0
        %v516 = vadd.f32 %v479, %v515
        %v517 = vpop.f32.mrf.mxu0
        %v518 = vpop.f32.mrf.mxu0
        %v519 = vpop.f32.mrf.mxu0
        %520 = vdwg.mxu0
        %v521 = vmax.f32 %v516, 0.0
        %v522 = vld [vmem:[%s351] sm:$0xff]
        %v523 = vld [vmem:[%s351 + $0x8] sm:$0xff]
        %v524 = vld [vmem:[%s351 + $0x10] sm:$0xff]
        %v525 = vld [vmem:[%s351 + $0x18] sm:$0xff]
        %v526 = vld [vmem:[%s351 + $0x20] sm:$0xff]
        %v527 = vld [vmem:[%s351 + $0x28] sm:$0xff]
        %v528 = vld [vmem:[%s351 + $0x30] sm:$0xff]
        %v529 = vld [vmem:[%s351 + $0x38] sm:$0xff]
        %v530 = vld [vmem:[%s351 + $0x40] sm:$0xff]
        %v531 = vld [vmem:[%s351 + $0x48] sm:$0xff]
        %v532 = vld [vmem:[%s351 + $0x50] sm:$0xff]
        %v533 = vld [vmem:[%s351 + $0x58] sm:$0xff]
        %v534 = vld [vmem:[%s351 + $0x60] sm:$0xff]
        %v535 = vld [vmem:[%s351 + $0x68] sm:$0xff]
        %v536 = vld [vmem:[%s351 + $0x70] sm:$0xff]
        %v537 = vld [vmem:[%s351 + $0x78] sm:$0xff]
        %v538 = vpack.c.bf16 %v521, %v521
        %v539 = vpack.c.bf16 %v523, %v522
        %v540 = vpack.c.bf16 %v525, %v524
        %v541 = vpack.c.bf16 %v527, %v526
        %v542 = vpack.c.bf16 %v529, %v528
        %v543 = vpack.c.bf16 %v531, %v530
        %v544 = vpack.c.bf16 %v533, %v532
        %v545 = vpack.c.bf16 %v535, %v534
        %v546 = vpack.c.bf16 %v537, %v536
        %v547 = vld [vmem:[%s436] sm:$0x1]
        %v549 = vlaneseq
        %v550 = vshrl.u32 %v549, 7
        %v551 = vsub.s32 0, %v550
        %v552 = vrot.slane %v547, %v551
        %554 = vmatprep.subr.bf16.mxu0 0
        %555 = vmatpush1.bf16.msra.mxu0 %v546
        %556 = vmatprep.subr.bf16.mxu0 0
        %557 = vmatpush1.bf16.msra.mxu0 %v545
        %558 = vmatprep.subr.bf16.mxu0 0
        %559 = vmatpush1.bf16.msra.mxu0 %v544
        %560 = vmatprep.subr.bf16.mxu0 0
        %561 = vmatpush1.bf16.msra.mxu0 %v543
        %562 = vmatprep.subr.bf16.mxu0 0
        %563 = vmatpush1.bf16.msra.mxu0 %v542
        %564 = vmatprep.subr.bf16.mxu0 0
        %565 = vmatpush1.bf16.msra.mxu0 %v541
        %566 = vmatprep.subr.bf16.mxu0 0
        %567 = vmatpush1.bf16.msra.mxu0 %v540
        %568 = vmatprep.subr.bf16.mxu0 0
        %569 = vmatpush1.bf16.msra.mxu0 %v539
        %570 = vmatprep.subr.bf16.mxu0 0
        %571 = vmatpush2.bf16.msra.mxu0 0
        %572 = vmatprep.subr.bf16.mxu0 0
        %573 = vmatpush2.bf16.msra.mxu0 0
        %574 = vmatprep.subr.bf16.mxu0 0
        %575 = vmatpush2.bf16.msra.mxu0 0
        %576 = vmatprep.subr.bf16.mxu0 0
        %577 = vmatpush2.bf16.msra.mxu0 0
        %578 = vmatprep.subr.bf16.mxu0 0
        %579 = vmatpush2.bf16.msra.mxu0 0
        %580 = vmatprep.subr.bf16.mxu0 0
        %581 = vmatpush2.bf16.msra.mxu0 0
        %582 = vmatprep.subr.bf16.mxu0 0
        %583 = vmatpush2.bf16.msra.mxu0 0
        %584 = vmatprep.subr.bf16.mxu0 0
        %585 = vmatpush2.bf16.msra.mxu0 0
        %586 = vmatprep.mubr.bf16.mxu0 0
        %587 = vmatmul.mubr.bf16.gmra.mxu0 %v538
        %v588 = vpop.f32.mrf.mxu0
        %v589 = vadd.f32 %v552, %v588
        %v590 = vpop.f32.mrf.mxu0
        %v591 = vpop.f32.mrf.mxu0
        %v592 = vpop.f32.mrf.mxu0
        %593 = vdwg.mxu0
        %v594 = vmax.f32 %v589, 0.0
        %v595 = vld [vmem:[%s360] sm:$0xff]
        %v596 = vld [vmem:[%s360 + $0x8] sm:$0xff]
        %v597 = vld [vmem:[%s360 + $0x10] sm:$0xff]
        %v598 = vld [vmem:[%s360 + $0x18] sm:$0xff]
        %v599 = vld [vmem:[%s360 + $0x20] sm:$0xff]
        %v600 = vld [vmem:[%s360 + $0x28] sm:$0xff]
        %v601 = vld [vmem:[%s360 + $0x30] sm:$0xff]
        %v602 = vld [vmem:[%s360 + $0x38] sm:$0xff]
        %v603 = vld [vmem:[%s360 + $0x40] sm:$0xff]
        %v604 = vld [vmem:[%s360 + $0x48] sm:$0xff]
        %v605 = vld [vmem:[%s360 + $0x50] sm:$0xff]
        %v606 = vld [vmem:[%s360 + $0x58] sm:$0xff]
        %v607 = vld [vmem:[%s360 + $0x60] sm:$0xff]
        %v608 = vld [vmem:[%s360 + $0x68] sm:$0xff]
        %v609 = vld [vmem:[%s360 + $0x70] sm:$0xff]
        %v610 = vld [vmem:[%s360 + $0x78] sm:$0xff]
        %v611 = vpack.c.bf16 %v594, %v594
        %v612 = vpack.c.bf16 %v596, %v595
        %v613 = vpack.c.bf16 %v598, %v597
        %v614 = vpack.c.bf16 %v600, %v599
        %v615 = vpack.c.bf16 %v602, %v601
        %v616 = vpack.c.bf16 %v604, %v603
        %v617 = vpack.c.bf16 %v606, %v605
        %v618 = vpack.c.bf16 %v608, %v607
        %v619 = vpack.c.bf16 %v610, %v609
        %v620 = vld [vmem:[%s439] sm:$0x1]
        %v622 = vlaneseq
        %v623 = vshrl.u32 %v622, 7
        %v624 = vsub.s32 0, %v623
        %v625 = vrot.slane %v620, %v624
        %627 = vmatprep.subr.bf16.mxu0 0
        %628 = vmatpush1.bf16.msra.mxu0 %v619
        %629 = vmatprep.subr.bf16.mxu0 0
        %630 = vmatpush1.bf16.msra.mxu0 %v618
        %631 = vmatprep.subr.bf16.mxu0 0
        %632 = vmatpush1.bf16.msra.mxu0 %v617
        %633 = vmatprep.subr.bf16.mxu0 0
        %634 = vmatpush1.bf16.msra.mxu0 %v616
        %635 = vmatprep.subr.bf16.mxu0 0
        %636 = vmatpush1.bf16.msra.mxu0 %v615
        %637 = vmatprep.subr.bf16.mxu0 0
        %638 = vmatpush1.bf16.msra.mxu0 %v614
        %639 = vmatprep.subr.bf16.mxu0 0
        %640 = vmatpush1.bf16.msra.mxu0 %v613
        %641 = vmatprep.subr.bf16.mxu0 0
        %642 = vmatpush1.bf16.msra.mxu0 %v612
        %643 = vmatprep.subr.bf16.mxu0 0
        %644 = vmatpush2.bf16.msra.mxu0 0
        %645 = vmatprep.subr.bf16.mxu0 0
        %646 = vmatpush2.bf16.msra.mxu0 0
        %647 = vmatprep.subr.bf16.mxu0 0
        %648 = vmatpush2.bf16.msra.mxu0 0
        %649 = vmatprep.subr.bf16.mxu0 0
        %650 = vmatpush2.bf16.msra.mxu0 0
        %651 = vmatprep.subr.bf16.mxu0 0
        %652 = vmatpush2.bf16.msra.mxu0 0
        %653 = vmatprep.subr.bf16.mxu0 0
        %654 = vmatpush2.bf16.msra.mxu0 0
        %655 = vmatprep.subr.bf16.mxu0 0
        %656 = vmatpush2.bf16.msra.mxu0 0
        %657 = vmatprep.subr.bf16.mxu0 0
        %658 = vmatpush2.bf16.msra.mxu0 0
        %659 = vmatprep.mubr.bf16.mxu0 0
        %660 = vmatmul.mubr.bf16.gmra.mxu0 %v611
        %v661 = vpop.f32.mrf.mxu0
        %v662 = vadd.f32 %v625, %v661
        %v663 = vpop.f32.mrf.mxu0
        %v664 = vpop.f32.mrf.mxu0
        %v665 = vpop.f32.mrf.mxu0
        %666 = vdwg.mxu0
        %v667 = vmax.f32 %v662, 0.0
        %668 = vst [vmem:[%s446] sm:$0xff] %v667
        %p669 = scmp.lt.s32.totalorder %s28, 2
        %s670 = scalar_select %p669, %s28, 2
        %p671 = scmp.lt.s32.totalorder %s29, 0
        %s672 = scalar_select %p671, %s29, 0
        %s673 = sadd.s32 %s672, %s670
        %s674 = smul.addr %s673, 8
        %s675 = scalar_lea.vmem %s7, %s674
        // Predicated region
        $region57: #{multmodality_forward.9} parent=47 // pred_check
          %p676 = pneg %p240
        $region58: #{multmodality_forward.9} parent=47 // pred_check_branch
          %678 = sbr.rel (%p676) target = $region60
        $region59: #{multmodality_forward.9} parent=47 // pred_region
          _
        $region60: #{multmodality_forward.9} parent=47 // pred_fallthru
          _
      $region48: #{multmodality_forward.9} parent=5 // pred_fallthru
        _
      %p679 = scmp.le.s32.totalorder 2, %s19
      // Predicated region
      $region61: #{multmodality_forward.9} parent=5 // pred_check
        %p680 = pneg %p679
      $region62: #{multmodality_forward.9} parent=5 // pred_check_branch
        %682 = sbr.rel (%p680) target = $region64
      $region63: #{multmodality_forward.9} parent=5 // pred_region
        %s683 = ssub.s32 %s19, 2
        // Predicated region
        $region65: #{multmodality_forward.9} parent=63 // pred_check
          %p684 = pneg %p246
        $region66: #{multmodality_forward.9} parent=63 // pred_check_branch
          %686 = sbr.rel (%p684) target = $region68
        $region67: #{multmodality_forward.9} parent=63 // pred_region
          %p687 = scmp.lt.s32.totalorder %s30, 2
          %s688 = scalar_select %p687, %s30, 2
          %p689 = scmp.lt.s32.totalorder %s31, 0
          %s690 = scalar_select %p689, %s31, 0
          %s691 = sadd.s32 %s690, %s688
          %s692 = smul.addr %s691, 8
          %s693 = scalar_lea.vmem %s7, %s692
        $region68: #{multmodality_forward.9} parent=63 // pred_fallthru
          _
      $region64: #{multmodality_forward.9} parent=5 // pred_fallthru
        _
    $region6: #{multmodality_forward.9} parent=1 // loop_footer
      %s23 = sadd.s32 1, %s19
    $region7: #{multmodality_forward.9} parent=1 // loop_footer_branch
      %18 = sbr.rel target = $region3
    $region8: #{multmodality_forward.9} parent=1 // loop_exit
      _
    %694 = vsyncpa [#allocation3], 1
    %s695 = scalar_lea.sflag [#allocation3], 1
    %696 = vsyncpa %s695, 1
    %697 = vsyncpa [#allocation5], 1
    %s698 = scalar_lea.sflag [#allocation5], 1
    %699 = vsyncpa %s698, 1

// kernel: multmodality_forward.12
$region0: #{multmodality_forward.12}
  #allocation0 [shape = 'u32[]', space=smem, size = 0x4, offset = 0x4, fixed_abs, tag = 'smem constant byte address 0x4 - core index']
  #allocation1 [shape = 'u32[144,128]{1,0:T(1,128)}', space=vmem, size = 0x12000, scoped, tag = 'internal scratch']
  %s0 = inlined_call_operand.vmem [shape: f32[24,128], index: 0, kind: input, shape index: {}]
  %s1 = inlined_call_operand.vmem [shape: f32[24,128], index: 1, kind: input, shape index: {}]
  %s2 = inlined_call_operand.vmem [shape: f32[24,128], index: 2, kind: input, shape index: {}]
  %s3 = inlined_call_operand.vmem [shape: f32[128,128], index: 3, kind: input, shape index: {}]
  %s4 = inlined_call_operand.vmem [shape: f32[128,128], index: 4, kind: input, shape index: {}]
  %s5 = inlined_call_operand.vmem [shape: f32[128,128], index: 5, kind: input, shape index: {}]
  %s6 = inlined_call_operand.vmem [shape: f32[1,128], index: 6, kind: input, shape index: {}]
  %s7 = inlined_call_operand.vmem [shape: f32[24,128], index: 7, kind: output, shape index: {}]
  %s8 = sld [smem:[#allocation0]]
  $region38: #{multmodality_forward.12} parent=0
    _
  %s10 = ssub.s32 1, %s8
  %s11 = scalar_select 0, %s10, %s8
  // Predicated region
  $region2: #{multmodality_forward.12} parent=0 // pred_check
    _
  $region3: #{multmodality_forward.12} parent=0 // pred_check_branch
    %13 = sbr.rel (0) target = $region5
  $region4: #{multmodality_forward.12} parent=0 // pred_region
    _
  $region5: #{multmodality_forward.12} parent=0 // pred_fallthru
    _
  // Predicated region
  $region6: #{multmodality_forward.12} parent=0 // pred_check
    _
  $region7: #{multmodality_forward.12} parent=0 // pred_check_branch
    %15 = sbr.rel (0) target = $region9
  $region8: #{multmodality_forward.12} parent=0 // pred_region
    _
  $region9: #{multmodality_forward.12} parent=0 // pred_fallthru
    _
  // Predicated region
  $region10: #{multmodality_forward.12} parent=0 // pred_check
    _
  $region11: #{multmodality_forward.12} parent=0 // pred_check_branch
    %17 = sbr.rel (0) target = $region13
  $region12: #{multmodality_forward.12} parent=0 // pred_region
    _
  $region13: #{multmodality_forward.12} parent=0 // pred_fallthru
    _
  // Predicated region
  $region14: #{multmodality_forward.12} parent=0 // pred_check
    _
  $region15: #{multmodality_forward.12} parent=0 // pred_check_branch
    %19 = sbr.rel (0) target = $region17
  $region16: #{multmodality_forward.12} parent=0 // pred_region
    _
  $region17: #{multmodality_forward.12} parent=0 // pred_fallthru
    _
  // Predicated region
  $region18: #{multmodality_forward.12} parent=0 // pred_check
    _
  $region19: #{multmodality_forward.12} parent=0 // pred_check_branch
    %21 = sbr.rel (0) target = $region21
  $region20: #{multmodality_forward.12} parent=0 // pred_region
    _
  $region21: #{multmodality_forward.12} parent=0 // pred_fallthru
    _
  // Predicated region
  $region22: #{multmodality_forward.12} parent=0 // pred_check
    _
  $region23: #{multmodality_forward.12} parent=0 // pred_check_branch
    %23 = sbr.rel (0) target = $region25
  $region24: #{multmodality_forward.12} parent=0 // pred_region
    _
  $region25: #{multmodality_forward.12} parent=0 // pred_fallthru
    _
  // Predicated region
  $region26: #{multmodality_forward.12} parent=0 // pred_check
    _
  $region27: #{multmodality_forward.12} parent=0 // pred_check_branch
    %25 = sbr.rel (0) target = $region29
  $region28: #{multmodality_forward.12} parent=0 // pred_region
    _
  $region29: #{multmodality_forward.12} parent=0 // pred_fallthru
    _
  %v27 = vld [vmem:[%s0] sm:$0xff]
  %v28 = vld [vmem:[%s0 + $0x8] sm:$0xff]
  %v29 = vld [vmem:[%s0 + $0x10] sm:$0xff]
  %v30 = vld [vmem:[%s3] sm:$0xff]
  %v31 = vld [vmem:[%s3 + $0x8] sm:$0xff]
  %v32 = vld [vmem:[%s3 + $0x10] sm:$0xff]
  %v33 = vld [vmem:[%s3 + $0x18] sm:$0xff]
  %v34 = vld [vmem:[%s3 + $0x20] sm:$0xff]
  %v35 = vld [vmem:[%s3 + $0x28] sm:$0xff]
  %v36 = vld [vmem:[%s3 + $0x30] sm:$0xff]
  %v37 = vld [vmem:[%s3 + $0x38] sm:$0xff]
  %v38 = vld [vmem:[%s3 + $0x40] sm:$0xff]
  %v39 = vld [vmem:[%s3 + $0x48] sm:$0xff]
  %v40 = vld [vmem:[%s3 + $0x50] sm:$0xff]
  %v41 = vld [vmem:[%s3 + $0x58] sm:$0xff]
  %v42 = vld [vmem:[%s3 + $0x60] sm:$0xff]
  %v43 = vld [vmem:[%s3 + $0x68] sm:$0xff]
  %v44 = vld [vmem:[%s3 + $0x70] sm:$0xff]
  %v45 = vld [vmem:[%s3 + $0x78] sm:$0xff]
  %v46 = vpack.c.bf16 %v28, %v27
  %v47 = vpack.c.bf16 %v29, %v29
  %v48 = vpack.c.bf16 %v31, %v30
  %v49 = vpack.c.bf16 %v33, %v32
  %v50 = vpack.c.bf16 %v35, %v34
  %v51 = vpack.c.bf16 %v37, %v36
  %v52 = vpack.c.bf16 %v39, %v38
  %v53 = vpack.c.bf16 %v41, %v40
  %v54 = vpack.c.bf16 %v43, %v42
  %v55 = vpack.c.bf16 %v45, %v44
  %v56 = vld [vmem:[%s1] sm:$0xff]
  %v57 = vld [vmem:[%s1 + $0x8] sm:$0xff]
  %v58 = vld [vmem:[%s1 + $0x10] sm:$0xff]
  %v59 = vld [vmem:[%s4] sm:$0xff]
  %v60 = vld [vmem:[%s4 + $0x8] sm:$0xff]
  %v61 = vld [vmem:[%s4 + $0x10] sm:$0xff]
  %v62 = vld [vmem:[%s4 + $0x18] sm:$0xff]
  %v63 = vld [vmem:[%s4 + $0x20] sm:$0xff]
  %v64 = vld [vmem:[%s4 + $0x28] sm:$0xff]
  %v65 = vld [vmem:[%s4 + $0x30] sm:$0xff]
  %v66 = vld [vmem:[%s4 + $0x38] sm:$0xff]
  %v67 = vld [vmem:[%s4 + $0x40] sm:$0xff]
  %v68 = vld [vmem:[%s4 + $0x48] sm:$0xff]
  %v69 = vld [vmem:[%s4 + $0x50] sm:$0xff]
  %v70 = vld [vmem:[%s4 + $0x58] sm:$0xff]
  %v71 = vld [vmem:[%s4 + $0x60] sm:$0xff]
  %v72 = vld [vmem:[%s4 + $0x68] sm:$0xff]
  %v73 = vld [vmem:[%s4 + $0x70] sm:$0xff]
  %v74 = vld [vmem:[%s4 + $0x78] sm:$0xff]
  %v75 = vpack.c.bf16 %v57, %v56
  %v76 = vpack.c.bf16 %v58, %v58
  %v77 = vpack.c.bf16 %v60, %v59
  %v78 = vpack.c.bf16 %v62, %v61
  %v79 = vpack.c.bf16 %v64, %v63
  %v80 = vpack.c.bf16 %v66, %v65
  %v81 = vpack.c.bf16 %v68, %v67
  %v82 = vpack.c.bf16 %v70, %v69
  %v83 = vpack.c.bf16 %v72, %v71
  %v84 = vpack.c.bf16 %v74, %v73
  %85 = vmatprep.subr.bf16.mxu0 0
  %86 = vmatpush1.bf16.msra.mxu0 %v84
  %87 = vmatprep.subr.bf16.mxu0 0
  %88 = vmatpush1.bf16.msra.mxu0 %v83
  %89 = vmatprep.subr.bf16.mxu0 0
  %90 = vmatpush1.bf16.msra.mxu0 %v82
  %91 = vmatprep.subr.bf16.mxu0 0
  %92 = vmatpush1.bf16.msra.mxu0 %v81
  %93 = vmatprep.subr.bf16.mxu0 0
  %94 = vmatpush1.bf16.msra.mxu0 %v80
  %95 = vmatprep.subr.bf16.mxu0 0
  %96 = vmatpush1.bf16.msra.mxu0 %v79
  %97 = vmatprep.subr.bf16.mxu0 0
  %98 = vmatpush1.bf16.msra.mxu0 %v78
  %99 = vmatprep.subr.bf16.mxu0 0
  %100 = vmatpush1.bf16.msra.mxu0 %v77
  %101 = vmatprep.subr.bf16.mxu0 0
  %102 = vmatpush2.bf16.msra.mxu0 0
  %103 = vmatprep.subr.bf16.mxu0 0
  %104 = vmatpush2.bf16.msra.mxu0 0
  %105 = vmatprep.subr.bf16.mxu0 0
  %106 = vmatpush2.bf16.msra.mxu0 0
  %107 = vmatprep.subr.bf16.mxu0 0
  %108 = vmatpush2.bf16.msra.mxu0 0
  %109 = vmatprep.subr.bf16.mxu0 0
  %110 = vmatpush2.bf16.msra.mxu0 0
  %111 = vmatprep.subr.bf16.mxu0 0
  %112 = vmatpush2.bf16.msra.mxu0 0
  %113 = vmatprep.subr.bf16.mxu0 0
  %114 = vmatpush2.bf16.msra.mxu0 0
  %115 = vmatprep.subr.bf16.mxu0 0
  %116 = vmatpush2.bf16.msra.mxu0 0
  %117 = vmatprep.mubr.bf16.mxu0 0
  %118 = vmatmul.mubr.bf16.gmra.mxu0 %v75
  %v119 = vpop.f32.mrf.mxu0
  %v120 = vadd.f32 0.0, %v119
  %v121 = vpop.f32.mrf.mxu0
  %v122 = vpop.f32.mrf.mxu0
  %v123 = vadd.f32 0.0, %v122
  %v124 = vpop.f32.mrf.mxu0
  %125 = vmatprep.mubr.bf16.mxu0 0
  %126 = vmatmul.mubr.bf16.gmra.mxu0 %v76
  %v127 = vpop.f32.mrf.mxu0
  %v128 = vadd.f32 0.0, %v127
  %v129 = vpop.f32.mrf.mxu0
  %v130 = vpop.f32.mrf.mxu0
  %v131 = vpop.f32.mrf.mxu0
  %132 = vdwg.mxu0
  %133 = vmatprep.subr.bf16.mxu0 0
  %134 = vmatpush1.bf16.msra.mxu0 %v55
  %135 = vmatprep.subr.bf16.mxu0 0
  %136 = vmatpush1.bf16.msra.mxu0 %v54
  %137 = vmatprep.subr.bf16.mxu0 0
  %138 = vmatpush1.bf16.msra.mxu0 %v53
  %139 = vmatprep.subr.bf16.mxu0 0
  %140 = vmatpush1.bf16.msra.mxu0 %v52
  %141 = vmatprep.subr.bf16.mxu0 0
  %142 = vmatpush1.bf16.msra.mxu0 %v51
  %143 = vmatprep.subr.bf16.mxu0 0
  %144 = vmatpush1.bf16.msra.mxu0 %v50
  %145 = vmatprep.subr.bf16.mxu0 0
  %146 = vmatpush1.bf16.msra.mxu0 %v49
  %147 = vmatprep.subr.bf16.mxu0 0
  %148 = vmatpush1.bf16.msra.mxu0 %v48
  %149 = vmatprep.subr.bf16.mxu0 0
  %150 = vmatpush2.bf16.msra.mxu0 0
  %151 = vmatprep.subr.bf16.mxu0 0
  %152 = vmatpush2.bf16.msra.mxu0 0
  %153 = vmatprep.subr.bf16.mxu0 0
  %154 = vmatpush2.bf16.msra.mxu0 0
  %155 = vmatprep.subr.bf16.mxu0 0
  %156 = vmatpush2.bf16.msra.mxu0 0
  %157 = vmatprep.subr.bf16.mxu0 0
  %158 = vmatpush2.bf16.msra.mxu0 0
  %159 = vmatprep.subr.bf16.mxu0 0
  %160 = vmatpush2.bf16.msra.mxu0 0
  %161 = vmatprep.subr.bf16.mxu0 0
  %162 = vmatpush2.bf16.msra.mxu0 0
  %163 = vmatprep.subr.bf16.mxu0 0
  %164 = vmatpush2.bf16.msra.mxu0 0
  %165 = vmatprep.mubr.bf16.mxu0 0
  %166 = vmatmul.mubr.bf16.gmra.mxu0 %v46
  %v167 = vpop.f32.mrf.mxu0
  %v168 = vadd.f32 %v120, %v167
  %v169 = vpop.f32.mrf.mxu0
  %v170 = vpop.f32.mrf.mxu0
  %v171 = vadd.f32 %v123, %v170
  %v172 = vpop.f32.mrf.mxu0
  %173 = vmatprep.mubr.bf16.mxu0 0
  %174 = vmatmul.mubr.bf16.gmra.mxu0 %v47
  %v175 = vpop.f32.mrf.mxu0
  %v176 = vadd.f32 %v128, %v175
  %v177 = vpop.f32.mrf.mxu0
  %v178 = vpop.f32.mrf.mxu0
  %v179 = vpop.f32.mrf.mxu0
  %180 = vdwg.mxu0
  %v181 = vld [vmem:[%s2] sm:$0xff]
  %v182 = vld [vmem:[%s2 + $0x8] sm:$0xff]
  %v183 = vld [vmem:[%s2 + $0x10] sm:$0xff]
  %v184 = vld [vmem:[%s5] sm:$0xff]
  %v185 = vld [vmem:[%s5 + $0x8] sm:$0xff]
  %v186 = vld [vmem:[%s5 + $0x10] sm:$0xff]
  %v187 = vld [vmem:[%s5 + $0x18] sm:$0xff]
  %v188 = vld [vmem:[%s5 + $0x20] sm:$0xff]
  %v189 = vld [vmem:[%s5 + $0x28] sm:$0xff]
  %v190 = vld [vmem:[%s5 + $0x30] sm:$0xff]
  %v191 = vld [vmem:[%s5 + $0x38] sm:$0xff]
  %v192 = vld [vmem:[%s5 + $0x40] sm:$0xff]
  %v193 = vld [vmem:[%s5 + $0x48] sm:$0xff]
  %v194 = vld [vmem:[%s5 + $0x50] sm:$0xff]
  %v195 = vld [vmem:[%s5 + $0x58] sm:$0xff]
  %v196 = vld [vmem:[%s5 + $0x60] sm:$0xff]
  %v197 = vld [vmem:[%s5 + $0x68] sm:$0xff]
  %v198 = vld [vmem:[%s5 + $0x70] sm:$0xff]
  %v199 = vld [vmem:[%s5 + $0x78] sm:$0xff]
  %v200 = vpack.c.bf16 %v182, %v181
  %v201 = vpack.c.bf16 %v183, %v183
  %v202 = vpack.c.bf16 %v185, %v184
  %v203 = vpack.c.bf16 %v187, %v186
  %v204 = vpack.c.bf16 %v189, %v188
  %v205 = vpack.c.bf16 %v191, %v190
  %v206 = vpack.c.bf16 %v193, %v192
  %v207 = vpack.c.bf16 %v195, %v194
  %v208 = vpack.c.bf16 %v197, %v196
  %v209 = vpack.c.bf16 %v199, %v198
  %210 = vmatprep.subr.bf16.mxu0 0
  %211 = vmatpush1.bf16.msra.mxu0 %v209
  %212 = vmatprep.subr.bf16.mxu0 0
  %213 = vmatpush1.bf16.msra.mxu0 %v208
  %214 = vmatprep.subr.bf16.mxu0 0
  %215 = vmatpush1.bf16.msra.mxu0 %v207
  %216 = vmatprep.subr.bf16.mxu0 0
  %217 = vmatpush1.bf16.msra.mxu0 %v206
  %218 = vmatprep.subr.bf16.mxu0 0
  %219 = vmatpush1.bf16.msra.mxu0 %v205
  %220 = vmatprep.subr.bf16.mxu0 0
  %221 = vmatpush1.bf16.msra.mxu0 %v204
  %222 = vmatprep.subr.bf16.mxu0 0
  %223 = vmatpush1.bf16.msra.mxu0 %v203
  %224 = vmatprep.subr.bf16.mxu0 0
  %225 = vmatpush1.bf16.msra.mxu0 %v202
  %226 = vmatprep.subr.bf16.mxu0 0
  %227 = vmatpush2.bf16.msra.mxu0 0
  %228 = vmatprep.subr.bf16.mxu0 0
  %229 = vmatpush2.bf16.msra.mxu0 0
  %230 = vmatprep.subr.bf16.mxu0 0
  %231 = vmatpush2.bf16.msra.mxu0 0
  %232 = vmatprep.subr.bf16.mxu0 0
  %233 = vmatpush2.bf16.msra.mxu0 0
  %234 = vmatprep.subr.bf16.mxu0 0
  %235 = vmatpush2.bf16.msra.mxu0 0
  %236 = vmatprep.subr.bf16.mxu0 0
  %237 = vmatpush2.bf16.msra.mxu0 0
  %238 = vmatprep.subr.bf16.mxu0 0
  %239 = vmatpush2.bf16.msra.mxu0 0
  %240 = vmatprep.subr.bf16.mxu0 0
  %241 = vmatpush2.bf16.msra.mxu0 0
  %242 = vmatprep.mubr.bf16.mxu0 0
  %243 = vmatmul.mubr.bf16.gmra.mxu0 %v200
  %v244 = vpop.f32.mrf.mxu0
  %v245 = vadd.f32 0.0, %v244
  %v246 = vpop.f32.mrf.mxu0
  %v247 = vpop.f32.mrf.mxu0
  %v248 = vadd.f32 0.0, %v247
  %v249 = vpop.f32.mrf.mxu0
  %250 = vmatprep.mubr.bf16.mxu0 0
  %251 = vmatmul.mubr.bf16.gmra.mxu0 %v201
  %v252 = vpop.f32.mrf.mxu0
  %v253 = vadd.f32 0.0, %v252
  %v254 = vpop.f32.mrf.mxu0
  %v255 = vpop.f32.mrf.mxu0
  %v256 = vpop.f32.mrf.mxu0
  %257 = vdwg.mxu0
  %v258 = vadd.f32 %v168, %v245
  %v259 = vadd.f32 %v171, %v248
  %v260 = vadd.f32 %v176, %v253
  %v261 = vld [vmem:[%s6] sm:$0x1]
  %v263 = vlaneseq
  %v264 = vshrl.u32 %v263, 7
  %v265 = vsub.s32 0, %v264
  %v266 = vrot.slane %v261, %v265
  %v268 = vadd.f32 %v258, %v266
  %v269 = vadd.f32 %v259, %v266
  %v270 = vadd.f32 %v260, %v266
  %v271 = vmax.f32 %v268, 0.0
  %v272 = vmax.f32 %v269, 0.0
  %v273 = vmax.f32 %v270, 0.0
  %274 = vst [vmem:[%s7] sm:$0xff] %v271
  %275 = vst [vmem:[%s7 + $0x8] sm:$0xff] %v272
  %276 = vst [vmem:[%s7 + $0x10] sm:$0xff] %v273
  // Predicated region
  $region30: #{multmodality_forward.12} parent=0 // pred_check
    _
  $region31: #{multmodality_forward.12} parent=0 // pred_check_branch
    %278 = sbr.rel (0) target = $region33
  $region32: #{multmodality_forward.12} parent=0 // pred_region
    _
  $region33: #{multmodality_forward.12} parent=0 // pred_fallthru
    _
  // Predicated region
  $region34: #{multmodality_forward.12} parent=0 // pred_check
    _
  $region35: #{multmodality_forward.12} parent=0 // pred_check_branch
    %280 = sbr.rel (0) target = $region37
  $region36: #{multmodality_forward.12} parent=0 // pred_region
    _
  $region37: #{multmodality_forward.12} parent=0 // pred_fallthru
    _

// kernel: multmodality_forward.11
$region0: #{multmodality_forward.11}
  #allocation0 [shape = 'u32[]', space=smem, size = 0x4, offset = 0x4, fixed_abs, tag = 'smem constant byte address 0x4 - core index']
  #allocation1 [shape = 'u32[144,128]{1,0:T(1,128)}', space=vmem, size = 0x12000, scoped, tag = 'internal scratch']
  %s0 = inlined_call_operand.vmem [shape: s32[1,24], index: 0, kind: input, shape index: {}]
  %s1 = inlined_call_operand.vmem [shape: f32[24,128], index: 1, kind: input, shape index: {}]
  %s2 = inlined_call_operand.vmem [shape: f32[16,128], index: 2, kind: input, shape index: {}]
  %s3 = inlined_call_operand.vmem [shape: f32[128,128], index: 3, kind: input, shape index: {}]
  %s4 = inlined_call_operand.vmem [shape: f32[128,128], index: 4, kind: input, shape index: {}]
  %s5 = inlined_call_operand.vmem [shape: f32[1,128], index: 5, kind: input, shape index: {}]
  %s6 = inlined_call_operand.vmem [shape: f32[16,128], index: 6, kind: output, shape index: {}]
  %s7 = sld [smem:[#allocation0]]
  $region34: #{multmodality_forward.11} parent=0
    _
  %s9 = ssub.s32 1, %s7
  %s10 = scalar_select 0, %s9, %s7
  // Predicated region
  $region2: #{multmodality_forward.11} parent=0 // pred_check
    _
  $region3: #{multmodality_forward.11} parent=0 // pred_check_branch
    %12 = sbr.rel (0) target = $region5
  $region4: #{multmodality_forward.11} parent=0 // pred_region
    _
  $region5: #{multmodality_forward.11} parent=0 // pred_fallthru
    _
  // Predicated region
  $region6: #{multmodality_forward.11} parent=0 // pred_check
    _
  $region7: #{multmodality_forward.11} parent=0 // pred_check_branch
    %14 = sbr.rel (0) target = $region9
  $region8: #{multmodality_forward.11} parent=0 // pred_region
    _
  $region9: #{multmodality_forward.11} parent=0 // pred_fallthru
    _
  // Predicated region
  $region10: #{multmodality_forward.11} parent=0 // pred_check
    _
  $region11: #{multmodality_forward.11} parent=0 // pred_check_branch
    %16 = sbr.rel (0) target = $region13
  $region12: #{multmodality_forward.11} parent=0 // pred_region
    _
  $region13: #{multmodality_forward.11} parent=0 // pred_fallthru
    _
  // Predicated region
  $region14: #{multmodality_forward.11} parent=0 // pred_check
    _
  $region15: #{multmodality_forward.11} parent=0 // pred_check_branch
    %18 = sbr.rel (0) target = $region17
  $region16: #{multmodality_forward.11} parent=0 // pred_region
    _
  $region17: #{multmodality_forward.11} parent=0 // pred_fallthru
    _
  // Predicated region
  $region18: #{multmodality_forward.11} parent=0 // pred_check
    _
  $region19: #{multmodality_forward.11} parent=0 // pred_check_branch
    %20 = sbr.rel (0) target = $region21
  $region20: #{multmodality_forward.11} parent=0 // pred_region
    _
  $region21: #{multmodality_forward.11} parent=0 // pred_fallthru
    _
  // Predicated region
  $region22: #{multmodality_forward.11} parent=0 // pred_check
    _
  $region23: #{multmodality_forward.11} parent=0 // pred_check_branch
    %22 = sbr.rel (0) target = $region25
  $region24: #{multmodality_forward.11} parent=0 // pred_region
    _
  $region25: #{multmodality_forward.11} parent=0 // pred_fallthru
    _
  %s24 = smul.u32 0, 16
  %v25 = vlaneseq
  %v26 = vshrl.u32 %v25, 7
  %v27 = vadd.s32 %v26, 8
  %v28 = vstv %s24
  %v29 = vadd.s32 %v28, %v26
  %v30 = vadd.s32 %v28, %v27
  %v31 = vld [vmem:[%s0] sm:$0x1]
  %v32 = vlaneseq
  %v33 = vshrl.u32 %v32, 7
  %v34 = vsub.s32 0, %v33
  %v35 = vrot.slane %v31, %v34
  %vm36 = vcmp.eq.s32.totalorder %v35, %v29
  %vm37 = vcmp.eq.s32.totalorder %v35, %v30
  %v38 = vsel %vm36, 1, 0
  %v39 = vsel %vm37, 1, 0
  %v40 = vcvt.s32.f32 %v38
  %v41 = vcvt.s32.f32 %v39
  %vm42 = vcmask 195584
  %v43 = vsel %vm42, %v40, 0.0
  %44 = vadd.xlane.f32.xlu0 %v43
  %v45 = vpop.xlane.xlu0 %44
  %v46 = vsel %vm42, %v41, 0.0
  %47 = vadd.xlane.f32.xlu0 %v46
  %v48 = vpop.xlane.xlu0 %47
  %vm49 = vcmp.gt.f32.partialorder %v45, 0.0
  %vm50 = vcmp.gt.f32.partialorder %v48, 0.0
  %v51 = vmax.f32 %v45, 1.0
  %v52 = vmax.f32 %v48, 1.0
  %v53 = vrcp.pop %v51
  %v54 = vmul.f32 1.0, %v53
  %v55 = vrcp.pop %v52
  %v56 = vmul.f32 1.0, %v55
  %v57 = vsel %vm49, %v54, 0.0
  %v58 = vsel %vm50, %v56, 0.0
  %v59 = vld [vmem:[%s1] sm:$0xff]
  %v60 = vld [vmem:[%s1 + $0x8] sm:$0xff]
  %v61 = vld [vmem:[%s1 + $0x10] sm:$0xff]
  %v62 = vpack.c.bf16 %v41, %v40
  %v63 = vpack.c.bf16 %v60, %v59
  %v64 = vpack.c.bf16 %v61, %v61
  %v66 = vsel %vm42, %v62, 0
  %vm68 = vcmask 1043456
  %v70 = vsel %vm68, %v64, 0
  %72 = vmatprep.subr.bf16.mxu0 0
  %73 = vmatpush1.bf16.msra.mxu0 0
  %74 = vmatprep.subr.bf16.mxu0 0
  %75 = vmatpush1.bf16.msra.mxu0 0
  %76 = vmatprep.subr.bf16.mxu0 0
  %77 = vmatpush1.bf16.msra.mxu0 0
  %78 = vmatprep.subr.bf16.mxu0 0
  %79 = vmatpush1.bf16.msra.mxu0 0
  %80 = vmatprep.subr.bf16.mxu0 0
  %81 = vmatpush1.bf16.msra.mxu0 0
  %82 = vmatprep.subr.bf16.mxu0 0
  %83 = vmatpush1.bf16.msra.mxu0 0
  %84 = vmatprep.subr.bf16.mxu0 0
  %85 = vmatpush1.bf16.msra.mxu0 %v70
  %86 = vmatprep.subr.bf16.mxu0 0
  %87 = vmatpush1.bf16.msra.mxu0 %v63
  %88 = vmatprep.subr.bf16.mxu0 0
  %89 = vmatpush2.bf16.msra.mxu0 0
  %90 = vmatprep.subr.bf16.mxu0 0
  %91 = vmatpush2.bf16.msra.mxu0 0
  %92 = vmatprep.subr.bf16.mxu0 0
  %93 = vmatpush2.bf16.msra.mxu0 0
  %94 = vmatprep.subr.bf16.mxu0 0
  %95 = vmatpush2.bf16.msra.mxu0 0
  %96 = vmatprep.subr.bf16.mxu0 0
  %97 = vmatpush2.bf16.msra.mxu0 0
  %98 = vmatprep.subr.bf16.mxu0 0
  %99 = vmatpush2.bf16.msra.mxu0 0
  %100 = vmatprep.subr.bf16.mxu0 0
  %101 = vmatpush2.bf16.msra.mxu0 0
  %102 = vmatprep.subr.bf16.mxu0 0
  %103 = vmatpush2.bf16.msra.mxu0 0
  %104 = vmatprep.mubr.bf16.mxu0 0
  %105 = vmatmul.mubr.bf16.gmra.mxu0 %v66
  %v106 = vpop.f32.mrf.mxu0
  %v107 = vadd.f32 0.0, %v106
  %v108 = vpop.f32.mrf.mxu0
  %v109 = vpop.f32.mrf.mxu0
  %v110 = vadd.f32 0.0, %v109
  %v111 = vpop.f32.mrf.mxu0
  %112 = vdwg.mxu0
  %v113 = vmul.f32 %v107, %v57
  %v114 = vmul.f32 %v110, %v58
  %v115 = vld [vmem:[%s3] sm:$0xff]
  %v116 = vld [vmem:[%s3 + $0x8] sm:$0xff]
  %v117 = vld [vmem:[%s3 + $0x10] sm:$0xff]
  %v118 = vld [vmem:[%s3 + $0x18] sm:$0xff]
  %v119 = vld [vmem:[%s3 + $0x20] sm:$0xff]
  %v120 = vld [vmem:[%s3 + $0x28] sm:$0xff]
  %v121 = vld [vmem:[%s3 + $0x30] sm:$0xff]
  %v122 = vld [vmem:[%s3 + $0x38] sm:$0xff]
  %v123 = vld [vmem:[%s3 + $0x40] sm:$0xff]
  %v124 = vld [vmem:[%s3 + $0x48] sm:$0xff]
  %v125 = vld [vmem:[%s3 + $0x50] sm:$0xff]
  %v126 = vld [vmem:[%s3 + $0x58] sm:$0xff]
  %v127 = vld [vmem:[%s3 + $0x60] sm:$0xff]
  %v128 = vld [vmem:[%s3 + $0x68] sm:$0xff]
  %v129 = vld [vmem:[%s3 + $0x70] sm:$0xff]
  %v130 = vld [vmem:[%s3 + $0x78] sm:$0xff]
  %v131 = vpack.c.bf16 %v114, %v113
  %v132 = vpack.c.bf16 %v116, %v115
  %v133 = vpack.c.bf16 %v118, %v117
  %v134 = vpack.c.bf16 %v120, %v119
  %v135 = vpack.c.bf16 %v122, %v121
  %v136 = vpack.c.bf16 %v124, %v123
  %v137 = vpack.c.bf16 %v126, %v125
  %v138 = vpack.c.bf16 %v128, %v127
  %v139 = vpack.c.bf16 %v130, %v129
  %v140 = vld [vmem:[%s2] sm:$0xff]
  %v141 = vld [vmem:[%s2 + $0x8] sm:$0xff]
  %v142 = vld [vmem:[%s4] sm:$0xff]
  %v143 = vld [vmem:[%s4 + $0x8] sm:$0xff]
  %v144 = vld [vmem:[%s4 + $0x10] sm:$0xff]
  %v145 = vld [vmem:[%s4 + $0x18] sm:$0xff]
  %v146 = vld [vmem:[%s4 + $0x20] sm:$0xff]
  %v147 = vld [vmem:[%s4 + $0x28] sm:$0xff]
  %v148 = vld [vmem:[%s4 + $0x30] sm:$0xff]
  %v149 = vld [vmem:[%s4 + $0x38] sm:$0xff]
  %v150 = vld [vmem:[%s4 + $0x40] sm:$0xff]
  %v151 = vld [vmem:[%s4 + $0x48] sm:$0xff]
  %v152 = vld [vmem:[%s4 + $0x50] sm:$0xff]
  %v153 = vld [vmem:[%s4 + $0x58] sm:$0xff]
  %v154 = vld [vmem:[%s4 + $0x60] sm:$0xff]
  %v155 = vld [vmem:[%s4 + $0x68] sm:$0xff]
  %v156 = vld [vmem:[%s4 + $0x70] sm:$0xff]
  %v157 = vld [vmem:[%s4 + $0x78] sm:$0xff]
  %v158 = vpack.c.bf16 %v141, %v140
  %v159 = vpack.c.bf16 %v143, %v142
  %v160 = vpack.c.bf16 %v145, %v144
  %v161 = vpack.c.bf16 %v147, %v146
  %v162 = vpack.c.bf16 %v149, %v148
  %v163 = vpack.c.bf16 %v151, %v150
  %v164 = vpack.c.bf16 %v153, %v152
  %v165 = vpack.c.bf16 %v155, %v154
  %v166 = vpack.c.bf16 %v157, %v156
  %167 = vmatprep.subr.bf16.mxu0 0
  %168 = vmatpush1.bf16.msra.mxu0 %v166
  %169 = vmatprep.subr.bf16.mxu0 0
  %170 = vmatpush1.bf16.msra.mxu0 %v165
  %171 = vmatprep.subr.bf16.mxu0 0
  %172 = vmatpush1.bf16.msra.mxu0 %v164
  %173 = vmatprep.subr.bf16.mxu0 0
  %174 = vmatpush1.bf16.msra.mxu0 %v163
  %175 = vmatprep.subr.bf16.mxu0 0
  %176 = vmatpush1.bf16.msra.mxu0 %v162
  %177 = vmatprep.subr.bf16.mxu0 0
  %178 = vmatpush1.bf16.msra.mxu0 %v161
  %179 = vmatprep.subr.bf16.mxu0 0
  %180 = vmatpush1.bf16.msra.mxu0 %v160
  %181 = vmatprep.subr.bf16.mxu0 0
  %182 = vmatpush1.bf16.msra.mxu0 %v159
  %183 = vmatprep.subr.bf16.mxu0 0
  %184 = vmatpush2.bf16.msra.mxu0 0
  %185 = vmatprep.subr.bf16.mxu0 0
  %186 = vmatpush2.bf16.msra.mxu0 0
  %187 = vmatprep.subr.bf16.mxu0 0
  %188 = vmatpush2.bf16.msra.mxu0 0
  %189 = vmatprep.subr.bf16.mxu0 0
  %190 = vmatpush2.bf16.msra.mxu0 0
  %191 = vmatprep.subr.bf16.mxu0 0
  %192 = vmatpush2.bf16.msra.mxu0 0
  %193 = vmatprep.subr.bf16.mxu0 0
  %194 = vmatpush2.bf16.msra.mxu0 0
  %195 = vmatprep.subr.bf16.mxu0 0
  %196 = vmatpush2.bf16.msra.mxu0 0
  %197 = vmatprep.subr.bf16.mxu0 0
  %198 = vmatpush2.bf16.msra.mxu0 0
  %199 = vmatprep.mubr.bf16.mxu0 0
  %200 = vmatmul.mubr.bf16.gmra.mxu0 %v158
  %v201 = vpop.f32.mrf.mxu0
  %v202 = vadd.f32 0.0, %v201
  %v203 = vpop.f32.mrf.mxu0
  %v204 = vpop.f32.mrf.mxu0
  %v205 = vadd.f32 0.0, %v204
  %v206 = vpop.f32.mrf.mxu0
  %207 = vdwg.mxu0
  %208 = vmatprep.subr.bf16.mxu0 0
  %209 = vmatpush1.bf16.msra.mxu0 %v139
  %210 = vmatprep.subr.bf16.mxu0 0
  %211 = vmatpush1.bf16.msra.mxu0 %v138
  %212 = vmatprep.subr.bf16.mxu0 0
  %213 = vmatpush1.bf16.msra.mxu0 %v137
  %214 = vmatprep.subr.bf16.mxu0 0
  %215 = vmatpush1.bf16.msra.mxu0 %v136
  %216 = vmatprep.subr.bf16.mxu0 0
  %217 = vmatpush1.bf16.msra.mxu0 %v135
  %218 = vmatprep.subr.bf16.mxu0 0
  %219 = vmatpush1.bf16.msra.mxu0 %v134
  %220 = vmatprep.subr.bf16.mxu0 0
  %221 = vmatpush1.bf16.msra.mxu0 %v133
  %222 = vmatprep.subr.bf16.mxu0 0
  %223 = vmatpush1.bf16.msra.mxu0 %v132
  %224 = vmatprep.subr.bf16.mxu0 0
  %225 = vmatpush2.bf16.msra.mxu0 0
  %226 = vmatprep.subr.bf16.mxu0 0
  %227 = vmatpush2.bf16.msra.mxu0 0
  %228 = vmatprep.subr.bf16.mxu0 0
  %229 = vmatpush2.bf16.msra.mxu0 0
  %230 = vmatprep.subr.bf16.mxu0 0
  %231 = vmatpush2.bf16.msra.mxu0 0
  %232 = vmatprep.subr.bf16.mxu0 0
  %233 = vmatpush2.bf16.msra.mxu0 0
  %234 = vmatprep.subr.bf16.mxu0 0
  %235 = vmatpush2.bf16.msra.mxu0 0
  %236 = vmatprep.subr.bf16.mxu0 0
  %237 = vmatpush2.bf16.msra.mxu0 0
  %238 = vmatprep.subr.bf16.mxu0 0
  %239 = vmatpush2.bf16.msra.mxu0 0
  %240 = vmatprep.mubr.bf16.mxu0 0
  %241 = vmatmul.mubr.bf16.gmra.mxu0 %v131
  %v242 = vpop.f32.mrf.mxu0
  %v243 = vadd.f32 %v202, %v242
  %v244 = vpop.f32.mrf.mxu0
  %v245 = vpop.f32.mrf.mxu0
  %v246 = vadd.f32 %v205, %v245
  %v247 = vpop.f32.mrf.mxu0
  %248 = vdwg.mxu0
  %v249 = vld [vmem:[%s5] sm:$0x1]
  %v251 = vlaneseq
  %v252 = vshrl.u32 %v251, 7
  %v253 = vsub.s32 0, %v252
  %v254 = vrot.slane %v249, %v253
  %v256 = vadd.f32 %v243, %v254
  %v257 = vadd.f32 %v246, %v254
  %v258 = vmax.f32 %v256, 0.0
  %v259 = vmax.f32 %v257, 0.0
  %v260 = vmul.f32 %v258, %v258
  %v261 = vmul.f32 %v259, %v259
  %262 = vadd.xlane.f32.xlu0 %v260
  %v263 = vpop.xlane.xlu0 %262
  %264 = vadd.xlane.f32.xlu0 %v261
  %v265 = vpop.xlane.xlu0 %264
  %v266 = vrsqrt.pop %v263
  %v267 = vmul.f32 %v263, %v266
  %vm268 = vcmp.eq.f32.partialorder %v263, inf
  %v269 = vsel %vm268, %v263, %v267
  %vm270 = vcmp.eq.f32.partialorder %v263, 0.0
  %v271 = vand.u32 %v263, 2147483648
  %v272 = vsel %vm270, %v271, %v269
  %v273 = vrsqrt.pop %v265
  %v274 = vmul.f32 %v265, %v273
  %vm275 = vcmp.eq.f32.partialorder %v265, inf
  %v276 = vsel %vm275, %v265, %v274
  %vm277 = vcmp.eq.f32.partialorder %v265, 0.0
  %v278 = vand.u32 %v265, 2147483648
  %v279 = vsel %vm277, %v278, %v276
  %v280 = vmax.f32 %v272, 1e-12
  %v281 = vmax.f32 %v279, 1e-12
  %v282 = vrcp.pop %v280
  %v283 = vmul.f32 %v258, %v282
  %v284 = vrcp.pop %v281
  %v285 = vmul.f32 %v259, %v284
  %286 = vst [vmem:[%s6] sm:$0xff] %v283
  %287 = vst [vmem:[%s6 + $0x8] sm:$0xff] %v285
  // Predicated region
  $region26: #{multmodality_forward.11} parent=0 // pred_check
    _
  $region27: #{multmodality_forward.11} parent=0 // pred_check_branch
    %289 = sbr.rel (0) target = $region29
  $region28: #{multmodality_forward.11} parent=0 // pred_region
    _
  $region29: #{multmodality_forward.11} parent=0 // pred_fallthru
    _
  // Predicated region
  $region30: #{multmodality_forward.11} parent=0 // pred_check
    _
  $region31: #{multmodality_forward.11} parent=0 // pred_check_branch
    %291 = sbr.rel (0) target = $region33
  $region32: #{multmodality_forward.11} parent=0 // pred_region
    _
  $region33: #{multmodality_forward.11} parent=0 // pred_fallthru
    _

// kernel: multmodality_forward.15
$region0: #{multmodality_forward.15}
  #allocation0 [shape = 'u32[]', space=smem, size = 0x4, offset = 0x4, fixed_abs, tag = 'smem constant byte address 0x4 - core index']
  #allocation1 [shape = 'u32[144,128]{1,0:T(1,128)}', space=vmem, size = 0x12000, scoped, tag = 'internal scratch']
  %s0 = inlined_call_operand.vmem [shape: f32[16,128], index: 0, kind: input, shape index: {}]
  %s1 = inlined_call_operand.vmem [shape: f32[128,128], index: 1, kind: input, shape index: {}]
  %s2 = inlined_call_operand.vmem [shape: f32[1,128], index: 2, kind: input, shape index: {}]
  %s3 = inlined_call_operand.vmem [shape: f32[128,128], index: 3, kind: input, shape index: {}]
  %s4 = inlined_call_operand.vmem [shape: f32[1,128], index: 4, kind: input, shape index: {}]
  %s5 = inlined_call_operand.vmem [shape: f32[16,128], index: 5, kind: output, shape index: {}]
  %s6 = sld [smem:[#allocation0]]
  $region30: #{multmodality_forward.15} parent=0
    _
  %s8 = ssub.s32 1, %s6
  %s9 = scalar_select 0, %s8, %s6
  // Predicated region
  $region2: #{multmodality_forward.15} parent=0 // pred_check
    _
  $region3: #{multmodality_forward.15} parent=0 // pred_check_branch
    %11 = sbr.rel (0) target = $region5
  $region4: #{multmodality_forward.15} parent=0 // pred_region
    _
  $region5: #{multmodality_forward.15} parent=0 // pred_fallthru
    _
  // Predicated region
  $region6: #{multmodality_forward.15} parent=0 // pred_check
    _
  $region7: #{multmodality_forward.15} parent=0 // pred_check_branch
    %13 = sbr.rel (0) target = $region9
  $region8: #{multmodality_forward.15} parent=0 // pred_region
    _
  $region9: #{multmodality_forward.15} parent=0 // pred_fallthru
    _
  // Predicated region
  $region10: #{multmodality_forward.15} parent=0 // pred_check
    _
  $region11: #{multmodality_forward.15} parent=0 // pred_check_branch
    %15 = sbr.rel (0) target = $region13
  $region12: #{multmodality_forward.15} parent=0 // pred_region
    _
  $region13: #{multmodality_forward.15} parent=0 // pred_fallthru
    _
  // Predicated region
  $region14: #{multmodality_forward.15} parent=0 // pred_check
    _
  $region15: #{multmodality_forward.15} parent=0 // pred_check_branch
    %17 = sbr.rel (0) target = $region17
  $region16: #{multmodality_forward.15} parent=0 // pred_region
    _
  $region17: #{multmodality_forward.15} parent=0 // pred_fallthru
    _
  // Predicated region
  $region18: #{multmodality_forward.15} parent=0 // pred_check
    _
  $region19: #{multmodality_forward.15} parent=0 // pred_check_branch
    %19 = sbr.rel (0) target = $region21
  $region20: #{multmodality_forward.15} parent=0 // pred_region
    _
  $region21: #{multmodality_forward.15} parent=0 // pred_fallthru
    _
  %v21 = vld [vmem:[%s0] sm:$0xff]
  %v22 = vld [vmem:[%s0 + $0x8] sm:$0xff]
  %v23 = vld [vmem:[%s1] sm:$0xff]
  %v24 = vld [vmem:[%s1 + $0x8] sm:$0xff]
  %v25 = vld [vmem:[%s1 + $0x10] sm:$0xff]
  %v26 = vld [vmem:[%s1 + $0x18] sm:$0xff]
  %v27 = vld [vmem:[%s1 + $0x20] sm:$0xff]
  %v28 = vld [vmem:[%s1 + $0x28] sm:$0xff]
  %v29 = vld [vmem:[%s1 + $0x30] sm:$0xff]
  %v30 = vld [vmem:[%s1 + $0x38] sm:$0xff]
  %v31 = vld [vmem:[%s1 + $0x40] sm:$0xff]
  %v32 = vld [vmem:[%s1 + $0x48] sm:$0xff]
  %v33 = vld [vmem:[%s1 + $0x50] sm:$0xff]
  %v34 = vld [vmem:[%s1 + $0x58] sm:$0xff]
  %v35 = vld [vmem:[%s1 + $0x60] sm:$0xff]
  %v36 = vld [vmem:[%s1 + $0x68] sm:$0xff]
  %v37 = vld [vmem:[%s1 + $0x70] sm:$0xff]
  %v38 = vld [vmem:[%s1 + $0x78] sm:$0xff]
  %v39 = vpack.c.bf16 %v22, %v21
  %v40 = vpack.c.bf16 %v24, %v23
  %v41 = vpack.c.bf16 %v26, %v25
  %v42 = vpack.c.bf16 %v28, %v27
  %v43 = vpack.c.bf16 %v30, %v29
  %v44 = vpack.c.bf16 %v32, %v31
  %v45 = vpack.c.bf16 %v34, %v33
  %v46 = vpack.c.bf16 %v36, %v35
  %v47 = vpack.c.bf16 %v38, %v37
  %v48 = vld [vmem:[%s2] sm:$0x1]
  %v50 = vlaneseq
  %v51 = vshrl.u32 %v50, 7
  %v52 = vsub.s32 0, %v51
  %v53 = vrot.slane %v48, %v52
  %55 = vmatprep.subr.bf16.mxu0 0
  %56 = vmatpush1.bf16.msra.mxu0 %v47
  %57 = vmatprep.subr.bf16.mxu0 0
  %58 = vmatpush1.bf16.msra.mxu0 %v46
  %59 = vmatprep.subr.bf16.mxu0 0
  %60 = vmatpush1.bf16.msra.mxu0 %v45
  %61 = vmatprep.subr.bf16.mxu0 0
  %62 = vmatpush1.bf16.msra.mxu0 %v44
  %63 = vmatprep.subr.bf16.mxu0 0
  %64 = vmatpush1.bf16.msra.mxu0 %v43
  %65 = vmatprep.subr.bf16.mxu0 0
  %66 = vmatpush1.bf16.msra.mxu0 %v42
  %67 = vmatprep.subr.bf16.mxu0 0
  %68 = vmatpush1.bf16.msra.mxu0 %v41
  %69 = vmatprep.subr.bf16.mxu0 0
  %70 = vmatpush1.bf16.msra.mxu0 %v40
  %71 = vmatprep.subr.bf16.mxu0 0
  %72 = vmatpush2.bf16.msra.mxu0 0
  %73 = vmatprep.subr.bf16.mxu0 0
  %74 = vmatpush2.bf16.msra.mxu0 0
  %75 = vmatprep.subr.bf16.mxu0 0
  %76 = vmatpush2.bf16.msra.mxu0 0
  %77 = vmatprep.subr.bf16.mxu0 0
  %78 = vmatpush2.bf16.msra.mxu0 0
  %79 = vmatprep.subr.bf16.mxu0 0
  %80 = vmatpush2.bf16.msra.mxu0 0
  %81 = vmatprep.subr.bf16.mxu0 0
  %82 = vmatpush2.bf16.msra.mxu0 0
  %83 = vmatprep.subr.bf16.mxu0 0
  %84 = vmatpush2.bf16.msra.mxu0 0
  %85 = vmatprep.subr.bf16.mxu0 0
  %86 = vmatpush2.bf16.msra.mxu0 0
  %87 = vmatprep.mubr.bf16.mxu0 0
  %88 = vmatmul.mubr.bf16.gmra.mxu0 %v39
  %v89 = vpop.f32.mrf.mxu0
  %v90 = vadd.f32 %v53, %v89
  %v91 = vpop.f32.mrf.mxu0
  %v92 = vpop.f32.mrf.mxu0
  %v93 = vadd.f32 %v53, %v92
  %v94 = vpop.f32.mrf.mxu0
  %95 = vdwg.mxu0
  %v96 = vmax.f32 %v90, 0.0
  %v97 = vmax.f32 %v93, 0.0
  %v98 = vld [vmem:[%s3] sm:$0xff]
  %v99 = vld [vmem:[%s3 + $0x8] sm:$0xff]
  %v100 = vld [vmem:[%s3 + $0x10] sm:$0xff]
  %v101 = vld [vmem:[%s3 + $0x18] sm:$0xff]
  %v102 = vld [vmem:[%s3 + $0x20] sm:$0xff]
  %v103 = vld [vmem:[%s3 + $0x28] sm:$0xff]
  %v104 = vld [vmem:[%s3 + $0x30] sm:$0xff]
  %v105 = vld [vmem:[%s3 + $0x38] sm:$0xff]
  %v106 = vld [vmem:[%s3 + $0x40] sm:$0xff]
  %v107 = vld [vmem:[%s3 + $0x48] sm:$0xff]
  %v108 = vld [vmem:[%s3 + $0x50] sm:$0xff]
  %v109 = vld [vmem:[%s3 + $0x58] sm:$0xff]
  %v110 = vld [vmem:[%s3 + $0x60] sm:$0xff]
  %v111 = vld [vmem:[%s3 + $0x68] sm:$0xff]
  %v112 = vld [vmem:[%s3 + $0x70] sm:$0xff]
  %v113 = vld [vmem:[%s3 + $0x78] sm:$0xff]
  %v114 = vpack.c.bf16 %v97, %v96
  %v115 = vpack.c.bf16 %v99, %v98
  %v116 = vpack.c.bf16 %v101, %v100
  %v117 = vpack.c.bf16 %v103, %v102
  %v118 = vpack.c.bf16 %v105, %v104
  %v119 = vpack.c.bf16 %v107, %v106
  %v120 = vpack.c.bf16 %v109, %v108
  %v121 = vpack.c.bf16 %v111, %v110
  %v122 = vpack.c.bf16 %v113, %v112
  %v123 = vld [vmem:[%s4] sm:$0x1]
  %v125 = vlaneseq
  %v126 = vshrl.u32 %v125, 7
  %v127 = vsub.s32 0, %v126
  %v128 = vrot.slane %v123, %v127
  %130 = vmatprep.subr.bf16.mxu0 0
  %131 = vmatpush1.bf16.msra.mxu0 %v122
  %132 = vmatprep.subr.bf16.mxu0 0
  %133 = vmatpush1.bf16.msra.mxu0 %v121
  %134 = vmatprep.subr.bf16.mxu0 0
  %135 = vmatpush1.bf16.msra.mxu0 %v120
  %136 = vmatprep.subr.bf16.mxu0 0
  %137 = vmatpush1.bf16.msra.mxu0 %v119
  %138 = vmatprep.subr.bf16.mxu0 0
  %139 = vmatpush1.bf16.msra.mxu0 %v118
  %140 = vmatprep.subr.bf16.mxu0 0
  %141 = vmatpush1.bf16.msra.mxu0 %v117
  %142 = vmatprep.subr.bf16.mxu0 0
  %143 = vmatpush1.bf16.msra.mxu0 %v116
  %144 = vmatprep.subr.bf16.mxu0 0
  %145 = vmatpush1.bf16.msra.mxu0 %v115
  %146 = vmatprep.subr.bf16.mxu0 0
  %147 = vmatpush2.bf16.msra.mxu0 0
  %148 = vmatprep.subr.bf16.mxu0 0
  %149 = vmatpush2.bf16.msra.mxu0 0
  %150 = vmatprep.subr.bf16.mxu0 0
  %151 = vmatpush2.bf16.msra.mxu0 0
  %152 = vmatprep.subr.bf16.mxu0 0
  %153 = vmatpush2.bf16.msra.mxu0 0
  %154 = vmatprep.subr.bf16.mxu0 0
  %155 = vmatpush2.bf16.msra.mxu0 0
  %156 = vmatprep.subr.bf16.mxu0 0
  %157 = vmatpush2.bf16.msra.mxu0 0
  %158 = vmatprep.subr.bf16.mxu0 0
  %159 = vmatpush2.bf16.msra.mxu0 0
  %160 = vmatprep.subr.bf16.mxu0 0
  %161 = vmatpush2.bf16.msra.mxu0 0
  %162 = vmatprep.mubr.bf16.mxu0 0
  %163 = vmatmul.mubr.bf16.gmra.mxu0 %v114
  %v164 = vpop.f32.mrf.mxu0
  %v165 = vadd.f32 %v128, %v164
  %v166 = vpop.f32.mrf.mxu0
  %v167 = vpop.f32.mrf.mxu0
  %v168 = vadd.f32 %v128, %v167
  %v169 = vpop.f32.mrf.mxu0
  %170 = vdwg.mxu0
  %171 = vst [vmem:[%s5] sm:$0xff] %v165
  %172 = vst [vmem:[%s5 + $0x8] sm:$0xff] %v168
  // Predicated region
  $region22: #{multmodality_forward.15} parent=0 // pred_check
    _
  $region23: #{multmodality_forward.15} parent=0 // pred_check_branch
    %174 = sbr.rel (0) target = $region25
  $region24: #{multmodality_forward.15} parent=0 // pred_region
    _
  $region25: #{multmodality_forward.15} parent=0 // pred_fallthru
    _
  // Predicated region
  $region26: #{multmodality_forward.15} parent=0 // pred_check
    _
  $region27: #{multmodality_forward.15} parent=0 // pred_check_branch
    %176 = sbr.rel (0) target = $region29
  $region28: #{multmodality_forward.15} parent=0 // pred_region
    _
  $region29: #{multmodality_forward.15} parent=0 // pred_fallthru
    _

// kernel: multmodality_forward.16
$region0: #{multmodality_forward.16}
  #allocation0 [shape = 'u32[]', space=smem, size = 0x4, offset = 0x4, fixed_abs, tag = 'smem constant byte address 0x4 - core index']
  #allocation1 [shape = 'u32[144,128]{1,0:T(1,128)}', space=vmem, size = 0x12000, scoped, tag = 'internal scratch']
  %s0 = inlined_call_operand.vmem [shape: f32[24,128], index: 0, kind: input, shape index: {}]
  %s1 = inlined_call_operand.vmem [shape: f32[24,128], index: 1, kind: input, shape index: {}]
  %s2 = inlined_call_operand.vmem [shape: f32[128,128], index: 2, kind: input, shape index: {}]
  %s3 = inlined_call_operand.vmem [shape: f32[128,128], index: 3, kind: input, shape index: {}]
  %s4 = inlined_call_operand.vmem [shape: f32[1,128], index: 4, kind: input, shape index: {}]
  %s5 = inlined_call_operand.vmem [shape: f32[128,128], index: 5, kind: input, shape index: {}]
  %s6 = inlined_call_operand.vmem [shape: f32[1,128], index: 6, kind: input, shape index: {}]
  %s7 = inlined_call_operand.vmem [shape: f32[24,128], index: 7, kind: output, shape index: {}]
  %s8 = sld [smem:[#allocation0]]
  $region38: #{multmodality_forward.16} parent=0
    _
  %s10 = ssub.s32 1, %s8
  %s11 = scalar_select 0, %s10, %s8
  // Predicated region
  $region2: #{multmodality_forward.16} parent=0 // pred_check
    _
  $region3: #{multmodality_forward.16} parent=0 // pred_check_branch
    %13 = sbr.rel (0) target = $region5
  $region4: #{multmodality_forward.16} parent=0 // pred_region
    _
  $region5: #{multmodality_forward.16} parent=0 // pred_fallthru
    _
  // Predicated region
  $region6: #{multmodality_forward.16} parent=0 // pred_check
    _
  $region7: #{multmodality_forward.16} parent=0 // pred_check_branch
    %15 = sbr.rel (0) target = $region9
  $region8: #{multmodality_forward.16} parent=0 // pred_region
    _
  $region9: #{multmodality_forward.16} parent=0 // pred_fallthru
    _
  // Predicated region
  $region10: #{multmodality_forward.16} parent=0 // pred_check
    _
  $region11: #{multmodality_forward.16} parent=0 // pred_check_branch
    %17 = sbr.rel (0) target = $region13
  $region12: #{multmodality_forward.16} parent=0 // pred_region
    _
  $region13: #{multmodality_forward.16} parent=0 // pred_fallthru
    _
  // Predicated region
  $region14: #{multmodality_forward.16} parent=0 // pred_check
    _
  $region15: #{multmodality_forward.16} parent=0 // pred_check_branch
    %19 = sbr.rel (0) target = $region17
  $region16: #{multmodality_forward.16} parent=0 // pred_region
    _
  $region17: #{multmodality_forward.16} parent=0 // pred_fallthru
    _
  // Predicated region
  $region18: #{multmodality_forward.16} parent=0 // pred_check
    _
  $region19: #{multmodality_forward.16} parent=0 // pred_check_branch
    %21 = sbr.rel (0) target = $region21
  $region20: #{multmodality_forward.16} parent=0 // pred_region
    _
  $region21: #{multmodality_forward.16} parent=0 // pred_fallthru
    _
  // Predicated region
  $region22: #{multmodality_forward.16} parent=0 // pred_check
    _
  $region23: #{multmodality_forward.16} parent=0 // pred_check_branch
    %23 = sbr.rel (0) target = $region25
  $region24: #{multmodality_forward.16} parent=0 // pred_region
    _
  $region25: #{multmodality_forward.16} parent=0 // pred_fallthru
    _
  // Predicated region
  $region26: #{multmodality_forward.16} parent=0 // pred_check
    _
  $region27: #{multmodality_forward.16} parent=0 // pred_check_branch
    %25 = sbr.rel (0) target = $region29
  $region28: #{multmodality_forward.16} parent=0 // pred_region
    _
  $region29: #{multmodality_forward.16} parent=0 // pred_fallthru
    _
  %v27 = vld [vmem:[%s0] sm:$0xff]
  %v28 = vld [vmem:[%s0 + $0x8] sm:$0xff]
  %v29 = vld [vmem:[%s0 + $0x10] sm:$0xff]
  %v30 = vld [vmem:[%s2] sm:$0xff]
  %v31 = vld [vmem:[%s2 + $0x8] sm:$0xff]
  %v32 = vld [vmem:[%s2 + $0x10] sm:$0xff]
  %v33 = vld [vmem:[%s2 + $0x18] sm:$0xff]
  %v34 = vld [vmem:[%s2 + $0x20] sm:$0xff]
  %v35 = vld [vmem:[%s2 + $0x28] sm:$0xff]
  %v36 = vld [vmem:[%s2 + $0x30] sm:$0xff]
  %v37 = vld [vmem:[%s2 + $0x38] sm:$0xff]
  %v38 = vld [vmem:[%s2 + $0x40] sm:$0xff]
  %v39 = vld [vmem:[%s2 + $0x48] sm:$0xff]
  %v40 = vld [vmem:[%s2 + $0x50] sm:$0xff]
  %v41 = vld [vmem:[%s2 + $0x58] sm:$0xff]
  %v42 = vld [vmem:[%s2 + $0x60] sm:$0xff]
  %v43 = vld [vmem:[%s2 + $0x68] sm:$0xff]
  %v44 = vld [vmem:[%s2 + $0x70] sm:$0xff]
  %v45 = vld [vmem:[%s2 + $0x78] sm:$0xff]
  %v46 = vpack.c.bf16 %v28, %v27
  %v47 = vpack.c.bf16 %v29, %v29
  %v48 = vpack.c.bf16 %v31, %v30
  %v49 = vpack.c.bf16 %v33, %v32
  %v50 = vpack.c.bf16 %v35, %v34
  %v51 = vpack.c.bf16 %v37, %v36
  %v52 = vpack.c.bf16 %v39, %v38
  %v53 = vpack.c.bf16 %v41, %v40
  %v54 = vpack.c.bf16 %v43, %v42
  %v55 = vpack.c.bf16 %v45, %v44
  %v56 = vld [vmem:[%s1] sm:$0xff]
  %v57 = vld [vmem:[%s1 + $0x8] sm:$0xff]
  %v58 = vld [vmem:[%s1 + $0x10] sm:$0xff]
  %v59 = vld [vmem:[%s3] sm:$0xff]
  %v60 = vld [vmem:[%s3 + $0x8] sm:$0xff]
  %v61 = vld [vmem:[%s3 + $0x10] sm:$0xff]
  %v62 = vld [vmem:[%s3 + $0x18] sm:$0xff]
  %v63 = vld [vmem:[%s3 + $0x20] sm:$0xff]
  %v64 = vld [vmem:[%s3 + $0x28] sm:$0xff]
  %v65 = vld [vmem:[%s3 + $0x30] sm:$0xff]
  %v66 = vld [vmem:[%s3 + $0x38] sm:$0xff]
  %v67 = vld [vmem:[%s3 + $0x40] sm:$0xff]
  %v68 = vld [vmem:[%s3 + $0x48] sm:$0xff]
  %v69 = vld [vmem:[%s3 + $0x50] sm:$0xff]
  %v70 = vld [vmem:[%s3 + $0x58] sm:$0xff]
  %v71 = vld [vmem:[%s3 + $0x60] sm:$0xff]
  %v72 = vld [vmem:[%s3 + $0x68] sm:$0xff]
  %v73 = vld [vmem:[%s3 + $0x70] sm:$0xff]
  %v74 = vld [vmem:[%s3 + $0x78] sm:$0xff]
  %v75 = vpack.c.bf16 %v57, %v56
  %v76 = vpack.c.bf16 %v58, %v58
  %v77 = vpack.c.bf16 %v60, %v59
  %v78 = vpack.c.bf16 %v62, %v61
  %v79 = vpack.c.bf16 %v64, %v63
  %v80 = vpack.c.bf16 %v66, %v65
  %v81 = vpack.c.bf16 %v68, %v67
  %v82 = vpack.c.bf16 %v70, %v69
  %v83 = vpack.c.bf16 %v72, %v71
  %v84 = vpack.c.bf16 %v74, %v73
  %85 = vmatprep.subr.bf16.mxu0 0
  %86 = vmatpush1.bf16.msra.mxu0 %v84
  %87 = vmatprep.subr.bf16.mxu0 0
  %88 = vmatpush1.bf16.msra.mxu0 %v83
  %89 = vmatprep.subr.bf16.mxu0 0
  %90 = vmatpush1.bf16.msra.mxu0 %v82
  %91 = vmatprep.subr.bf16.mxu0 0
  %92 = vmatpush1.bf16.msra.mxu0 %v81
  %93 = vmatprep.subr.bf16.mxu0 0
  %94 = vmatpush1.bf16.msra.mxu0 %v80
  %95 = vmatprep.subr.bf16.mxu0 0
  %96 = vmatpush1.bf16.msra.mxu0 %v79
  %97 = vmatprep.subr.bf16.mxu0 0
  %98 = vmatpush1.bf16.msra.mxu0 %v78
  %99 = vmatprep.subr.bf16.mxu0 0
  %100 = vmatpush1.bf16.msra.mxu0 %v77
  %101 = vmatprep.subr.bf16.mxu0 0
  %102 = vmatpush2.bf16.msra.mxu0 0
  %103 = vmatprep.subr.bf16.mxu0 0
  %104 = vmatpush2.bf16.msra.mxu0 0
  %105 = vmatprep.subr.bf16.mxu0 0
  %106 = vmatpush2.bf16.msra.mxu0 0
  %107 = vmatprep.subr.bf16.mxu0 0
  %108 = vmatpush2.bf16.msra.mxu0 0
  %109 = vmatprep.subr.bf16.mxu0 0
  %110 = vmatpush2.bf16.msra.mxu0 0
  %111 = vmatprep.subr.bf16.mxu0 0
  %112 = vmatpush2.bf16.msra.mxu0 0
  %113 = vmatprep.subr.bf16.mxu0 0
  %114 = vmatpush2.bf16.msra.mxu0 0
  %115 = vmatprep.subr.bf16.mxu0 0
  %116 = vmatpush2.bf16.msra.mxu0 0
  %117 = vmatprep.mubr.bf16.mxu0 0
  %118 = vmatmul.mubr.bf16.gmra.mxu0 %v75
  %v119 = vpop.f32.mrf.mxu0
  %v120 = vadd.f32 0.0, %v119
  %v121 = vpop.f32.mrf.mxu0
  %v122 = vpop.f32.mrf.mxu0
  %v123 = vadd.f32 0.0, %v122
  %v124 = vpop.f32.mrf.mxu0
  %125 = vmatprep.mubr.bf16.mxu0 0
  %126 = vmatmul.mubr.bf16.gmra.mxu0 %v76
  %v127 = vpop.f32.mrf.mxu0
  %v128 = vadd.f32 0.0, %v127
  %v129 = vpop.f32.mrf.mxu0
  %v130 = vpop.f32.mrf.mxu0
  %v131 = vpop.f32.mrf.mxu0
  %132 = vdwg.mxu0
  %133 = vmatprep.subr.bf16.mxu0 0
  %134 = vmatpush1.bf16.msra.mxu0 %v55
  %135 = vmatprep.subr.bf16.mxu0 0
  %136 = vmatpush1.bf16.msra.mxu0 %v54
  %137 = vmatprep.subr.bf16.mxu0 0
  %138 = vmatpush1.bf16.msra.mxu0 %v53
  %139 = vmatprep.subr.bf16.mxu0 0
  %140 = vmatpush1.bf16.msra.mxu0 %v52
  %141 = vmatprep.subr.bf16.mxu0 0
  %142 = vmatpush1.bf16.msra.mxu0 %v51
  %143 = vmatprep.subr.bf16.mxu0 0
  %144 = vmatpush1.bf16.msra.mxu0 %v50
  %145 = vmatprep.subr.bf16.mxu0 0
  %146 = vmatpush1.bf16.msra.mxu0 %v49
  %147 = vmatprep.subr.bf16.mxu0 0
  %148 = vmatpush1.bf16.msra.mxu0 %v48
  %149 = vmatprep.subr.bf16.mxu0 0
  %150 = vmatpush2.bf16.msra.mxu0 0
  %151 = vmatprep.subr.bf16.mxu0 0
  %152 = vmatpush2.bf16.msra.mxu0 0
  %153 = vmatprep.subr.bf16.mxu0 0
  %154 = vmatpush2.bf16.msra.mxu0 0
  %155 = vmatprep.subr.bf16.mxu0 0
  %156 = vmatpush2.bf16.msra.mxu0 0
  %157 = vmatprep.subr.bf16.mxu0 0
  %158 = vmatpush2.bf16.msra.mxu0 0
  %159 = vmatprep.subr.bf16.mxu0 0
  %160 = vmatpush2.bf16.msra.mxu0 0
  %161 = vmatprep.subr.bf16.mxu0 0
  %162 = vmatpush2.bf16.msra.mxu0 0
  %163 = vmatprep.subr.bf16.mxu0 0
  %164 = vmatpush2.bf16.msra.mxu0 0
  %165 = vmatprep.mubr.bf16.mxu0 0
  %166 = vmatmul.mubr.bf16.gmra.mxu0 %v46
  %v167 = vpop.f32.mrf.mxu0
  %v168 = vadd.f32 %v120, %v167
  %v169 = vpop.f32.mrf.mxu0
  %v170 = vpop.f32.mrf.mxu0
  %v171 = vadd.f32 %v123, %v170
  %v172 = vpop.f32.mrf.mxu0
  %173 = vmatprep.mubr.bf16.mxu0 0
  %174 = vmatmul.mubr.bf16.gmra.mxu0 %v47
  %v175 = vpop.f32.mrf.mxu0
  %v176 = vadd.f32 %v128, %v175
  %v177 = vpop.f32.mrf.mxu0
  %v178 = vpop.f32.mrf.mxu0
  %v179 = vpop.f32.mrf.mxu0
  %180 = vdwg.mxu0
  %v181 = vld [vmem:[%s4] sm:$0x1]
  %v183 = vlaneseq
  %v184 = vshrl.u32 %v183, 7
  %v185 = vsub.s32 0, %v184
  %v186 = vrot.slane %v181, %v185
  %v188 = vadd.f32 %v168, %v186
  %v189 = vadd.f32 %v171, %v186
  %v190 = vadd.f32 %v176, %v186
  %v191 = vmax.f32 %v188, 0.0
  %v192 = vmax.f32 %v189, 0.0
  %v193 = vmax.f32 %v190, 0.0
  %v194 = vld [vmem:[%s5] sm:$0xff]
  %v195 = vld [vmem:[%s5 + $0x8] sm:$0xff]
  %v196 = vld [vmem:[%s5 + $0x10] sm:$0xff]
  %v197 = vld [vmem:[%s5 + $0x18] sm:$0xff]
  %v198 = vld [vmem:[%s5 + $0x20] sm:$0xff]
  %v199 = vld [vmem:[%s5 + $0x28] sm:$0xff]
  %v200 = vld [vmem:[%s5 + $0x30] sm:$0xff]
  %v201 = vld [vmem:[%s5 + $0x38] sm:$0xff]
  %v202 = vld [vmem:[%s5 + $0x40] sm:$0xff]
  %v203 = vld [vmem:[%s5 + $0x48] sm:$0xff]
  %v204 = vld [vmem:[%s5 + $0x50] sm:$0xff]
  %v205 = vld [vmem:[%s5 + $0x58] sm:$0xff]
  %v206 = vld [vmem:[%s5 + $0x60] sm:$0xff]
  %v207 = vld [vmem:[%s5 + $0x68] sm:$0xff]
  %v208 = vld [vmem:[%s5 + $0x70] sm:$0xff]
  %v209 = vld [vmem:[%s5 + $0x78] sm:$0xff]
  %v210 = vpack.c.bf16 %v192, %v191
  %v211 = vpack.c.bf16 %v193, %v193
  %v212 = vpack.c.bf16 %v195, %v194
  %v213 = vpack.c.bf16 %v197, %v196
  %v214 = vpack.c.bf16 %v199, %v198
  %v215 = vpack.c.bf16 %v201, %v200
  %v216 = vpack.c.bf16 %v203, %v202
  %v217 = vpack.c.bf16 %v205, %v204
  %v218 = vpack.c.bf16 %v207, %v206
  %v219 = vpack.c.bf16 %v209, %v208
  %v220 = vld [vmem:[%s6] sm:$0x1]
  %v222 = vlaneseq
  %v223 = vshrl.u32 %v222, 7
  %v224 = vsub.s32 0, %v223
  %v225 = vrot.slane %v220, %v224
  %227 = vmatprep.subr.bf16.mxu0 0
  %228 = vmatpush1.bf16.msra.mxu0 %v219
  %229 = vmatprep.subr.bf16.mxu0 0
  %230 = vmatpush1.bf16.msra.mxu0 %v218
  %231 = vmatprep.subr.bf16.mxu0 0
  %232 = vmatpush1.bf16.msra.mxu0 %v217
  %233 = vmatprep.subr.bf16.mxu0 0
  %234 = vmatpush1.bf16.msra.mxu0 %v216
  %235 = vmatprep.subr.bf16.mxu0 0
  %236 = vmatpush1.bf16.msra.mxu0 %v215
  %237 = vmatprep.subr.bf16.mxu0 0
  %238 = vmatpush1.bf16.msra.mxu0 %v214
  %239 = vmatprep.subr.bf16.mxu0 0
  %240 = vmatpush1.bf16.msra.mxu0 %v213
  %241 = vmatprep.subr.bf16.mxu0 0
  %242 = vmatpush1.bf16.msra.mxu0 %v212
  %243 = vmatprep.subr.bf16.mxu0 0
  %244 = vmatpush2.bf16.msra.mxu0 0
  %245 = vmatprep.subr.bf16.mxu0 0
  %246 = vmatpush2.bf16.msra.mxu0 0
  %247 = vmatprep.subr.bf16.mxu0 0
  %248 = vmatpush2.bf16.msra.mxu0 0
  %249 = vmatprep.subr.bf16.mxu0 0
  %250 = vmatpush2.bf16.msra.mxu0 0
  %251 = vmatprep.subr.bf16.mxu0 0
  %252 = vmatpush2.bf16.msra.mxu0 0
  %253 = vmatprep.subr.bf16.mxu0 0
  %254 = vmatpush2.bf16.msra.mxu0 0
  %255 = vmatprep.subr.bf16.mxu0 0
  %256 = vmatpush2.bf16.msra.mxu0 0
  %257 = vmatprep.subr.bf16.mxu0 0
  %258 = vmatpush2.bf16.msra.mxu0 0
  %259 = vmatprep.mubr.bf16.mxu0 0
  %260 = vmatmul.mubr.bf16.gmra.mxu0 %v210
  %v261 = vpop.f32.mrf.mxu0
  %v262 = vadd.f32 %v225, %v261
  %v263 = vpop.f32.mrf.mxu0
  %v264 = vpop.f32.mrf.mxu0
  %v265 = vadd.f32 %v225, %v264
  %v266 = vpop.f32.mrf.mxu0
  %267 = vmatprep.mubr.bf16.mxu0 0
  %268 = vmatmul.mubr.bf16.gmra.mxu0 %v211
  %v269 = vpop.f32.mrf.mxu0
  %v270 = vadd.f32 %v225, %v269
  %v271 = vpop.f32.mrf.mxu0
  %v272 = vpop.f32.mrf.mxu0
  %v273 = vpop.f32.mrf.mxu0
  %274 = vdwg.mxu0
  %275 = vst [vmem:[%s7] sm:$0xff] %v262
  %276 = vst [vmem:[%s7 + $0x8] sm:$0xff] %v265
  %277 = vst [vmem:[%s7 + $0x10] sm:$0xff] %v270
  // Predicated region
  $region30: #{multmodality_forward.16} parent=0 // pred_check
    _
  $region31: #{multmodality_forward.16} parent=0 // pred_check_branch
    %279 = sbr.rel (0) target = $region33
  $region32: #{multmodality_forward.16} parent=0 // pred_region
    _
  $region33: #{multmodality_forward.16} parent=0 // pred_fallthru
    _
  // Predicated region
  $region34: #{multmodality_forward.16} parent=0 // pred_check
    _
  $region35: #{multmodality_forward.16} parent=0 // pred_check_branch
    %281 = sbr.rel (0) target = $region37
  $region36: #{multmodality_forward.16} parent=0 // pred_region
    _
  $region37: #{multmodality_forward.16} parent=0 // pred_fallthru
    _

// kernel: multmodality_forward.17
$region0: #{multmodality_forward.17}
  #allocation0 [shape = 'u32[]', space=smem, size = 0x4, offset = 0x4, fixed_abs, tag = 'smem constant byte address 0x4 - core index']
  #allocation1 [shape = 'u32[144,128]{1,0:T(1,128)}', space=vmem, size = 0x12000, scoped, tag = 'internal scratch']
  %s0 = inlined_call_operand.vmem [shape: f32[8,128], index: 0, kind: input, shape index: {}]
  %s1 = inlined_call_operand.vmem [shape: f32[128,128], index: 1, kind: input, shape index: {}]
  %s2 = inlined_call_operand.vmem [shape: f32[1,128], index: 2, kind: input, shape index: {}]
  %s3 = inlined_call_operand.vmem [shape: f32[8,128], index: 3, kind: output, shape index: {}]
  %s4 = sld [smem:[#allocation0]]
  $region22: #{multmodality_forward.17} parent=0
    _
  %s6 = ssub.s32 1, %s4
  %s7 = scalar_select 0, %s6, %s4
  // Predicated region
  $region2: #{multmodality_forward.17} parent=0 // pred_check
    _
  $region3: #{multmodality_forward.17} parent=0 // pred_check_branch
    %9 = sbr.rel (0) target = $region5
  $region4: #{multmodality_forward.17} parent=0 // pred_region
    _
  $region5: #{multmodality_forward.17} parent=0 // pred_fallthru
    _
  // Predicated region
  $region6: #{multmodality_forward.17} parent=0 // pred_check
    _
  $region7: #{multmodality_forward.17} parent=0 // pred_check_branch
    %11 = sbr.rel (0) target = $region9
  $region8: #{multmodality_forward.17} parent=0 // pred_region
    _
  $region9: #{multmodality_forward.17} parent=0 // pred_fallthru
    _
  // Predicated region
  $region10: #{multmodality_forward.17} parent=0 // pred_check
    _
  $region11: #{multmodality_forward.17} parent=0 // pred_check_branch
    %13 = sbr.rel (0) target = $region13
  $region12: #{multmodality_forward.17} parent=0 // pred_region
    _
  $region13: #{multmodality_forward.17} parent=0 // pred_fallthru
    _
  %v15 = vld [vmem:[%s0] sm:$0xff]
  %v16 = vld [vmem:[%s1] sm:$0xff]
  %v17 = vld [vmem:[%s1 + $0x8] sm:$0xff]
  %v18 = vld [vmem:[%s1 + $0x10] sm:$0xff]
  %v19 = vld [vmem:[%s1 + $0x18] sm:$0xff]
  %v20 = vld [vmem:[%s1 + $0x20] sm:$0xff]
  %v21 = vld [vmem:[%s1 + $0x28] sm:$0xff]
  %v22 = vld [vmem:[%s1 + $0x30] sm:$0xff]
  %v23 = vld [vmem:[%s1 + $0x38] sm:$0xff]
  %v24 = vld [vmem:[%s1 + $0x40] sm:$0xff]
  %v25 = vld [vmem:[%s1 + $0x48] sm:$0xff]
  %v26 = vld [vmem:[%s1 + $0x50] sm:$0xff]
  %v27 = vld [vmem:[%s1 + $0x58] sm:$0xff]
  %v28 = vld [vmem:[%s1 + $0x60] sm:$0xff]
  %v29 = vld [vmem:[%s1 + $0x68] sm:$0xff]
  %v30 = vld [vmem:[%s1 + $0x70] sm:$0xff]
  %v31 = vld [vmem:[%s1 + $0x78] sm:$0xff]
  %v32 = vpack.c.bf16 %v15, %v15
  %v33 = vpack.c.bf16 %v17, %v16
  %v34 = vpack.c.bf16 %v19, %v18
  %v35 = vpack.c.bf16 %v21, %v20
  %v36 = vpack.c.bf16 %v23, %v22
  %v37 = vpack.c.bf16 %v25, %v24
  %v38 = vpack.c.bf16 %v27, %v26
  %v39 = vpack.c.bf16 %v29, %v28
  %v40 = vpack.c.bf16 %v31, %v30
  %v41 = vld [vmem:[%s2] sm:$0x1]
  %v43 = vlaneseq
  %v44 = vshrl.u32 %v43, 7
  %v45 = vsub.s32 0, %v44
  %v46 = vrot.slane %v41, %v45
  %48 = vmatprep.subr.bf16.mxu0 0
  %49 = vmatpush1.bf16.msra.mxu0 %v40
  %50 = vmatprep.subr.bf16.mxu0 0
  %51 = vmatpush1.bf16.msra.mxu0 %v39
  %52 = vmatprep.subr.bf16.mxu0 0
  %53 = vmatpush1.bf16.msra.mxu0 %v38
  %54 = vmatprep.subr.bf16.mxu0 0
  %55 = vmatpush1.bf16.msra.mxu0 %v37
  %56 = vmatprep.subr.bf16.mxu0 0
  %57 = vmatpush1.bf16.msra.mxu0 %v36
  %58 = vmatprep.subr.bf16.mxu0 0
  %59 = vmatpush1.bf16.msra.mxu0 %v35
  %60 = vmatprep.subr.bf16.mxu0 0
  %61 = vmatpush1.bf16.msra.mxu0 %v34
  %62 = vmatprep.subr.bf16.mxu0 0
  %63 = vmatpush1.bf16.msra.mxu0 %v33
  %64 = vmatprep.subr.bf16.mxu0 0
  %65 = vmatpush2.bf16.msra.mxu0 0
  %66 = vmatprep.subr.bf16.mxu0 0
  %67 = vmatpush2.bf16.msra.mxu0 0
  %68 = vmatprep.subr.bf16.mxu0 0
  %69 = vmatpush2.bf16.msra.mxu0 0
  %70 = vmatprep.subr.bf16.mxu0 0
  %71 = vmatpush2.bf16.msra.mxu0 0
  %72 = vmatprep.subr.bf16.mxu0 0
  %73 = vmatpush2.bf16.msra.mxu0 0
  %74 = vmatprep.subr.bf16.mxu0 0
  %75 = vmatpush2.bf16.msra.mxu0 0
  %76 = vmatprep.subr.bf16.mxu0 0
  %77 = vmatpush2.bf16.msra.mxu0 0
  %78 = vmatprep.subr.bf16.mxu0 0
  %79 = vmatpush2.bf16.msra.mxu0 0
  %80 = vmatprep.mubr.bf16.mxu0 0
  %81 = vmatmul.mubr.bf16.gmra.mxu0 %v32
  %v82 = vpop.f32.mrf.mxu0
  %v83 = vadd.f32 %v46, %v82
  %v84 = vpop.f32.mrf.mxu0
  %v85 = vpop.f32.mrf.mxu0
  %v86 = vpop.f32.mrf.mxu0
  %87 = vdwg.mxu0
  %88 = vst [vmem:[%s3] sm:$0xff] %v83
  // Predicated region
  $region14: #{multmodality_forward.17} parent=0 // pred_check
    _
  $region15: #{multmodality_forward.17} parent=0 // pred_check_branch
    %90 = sbr.rel (0) target = $region17
  $region16: #{multmodality_forward.17} parent=0 // pred_region
    _
  $region17: #{multmodality_forward.17} parent=0 // pred_fallthru
    _
  // Predicated region
  $region18: #{multmodality_forward.17} parent=0 // pred_check
    _
  $region19: #{multmodality_forward.17} parent=0 // pred_check_branch
    %92 = sbr.rel (0) target = $region21
  $region20: #{multmodality_forward.17} parent=0 // pred_region
    _
  $region21: #{multmodality_forward.17} parent=0 // pred_fallthru
    _

</llo_original>
